<compile_context>
chip_gen: v6e
topology: v6e:2x2x1
jax: 0.10.0
libtpu: 0.0.40
codegen_flags: <defaults>
</compile_context>

<pallas_src>
import jax
import jax.numpy as jnp
from jax import lax
from jax.experimental import pallas as pl
from jax.experimental.pallas import tpu as pltpu

# ----------------------- synthetic config (small shapes) -----------------------
B = 2                      # batch
S = 16                     # src sequence length
T = 8                      # tgt sequence length
H = 32                     # GRU hidden size
EMB = 8                    # embedding dim per token feature
FEATS = 5                  # token features: [part, pitch, duration, offset, dynamic]
E = FEATS * EMB            # concatenated embedding dim
VOCABS = (4, 20, 16, 12, 6)            # vocab size per feature
V_OUT = VOCABS[1] + VOCABS[2]          # decoder predicts pitch + duration logits

F32 = jnp.float32
BF16 = jnp.bfloat16
VMEM_SPEC = pl.BlockSpec(memory_space=pltpu.MemorySpace.VMEM)


# ------------------------------ fused kernel ------------------------------------
def _gru(x_flat, wih, whh, bi, bhn, h0, bsz, steps):
    """Single-layer GRU (PyTorch gate equations, gate order [r, z, n]).

    x_flat : (bsz*steps, E) bf16 batch-major flattened embeddings
    wih    : (E, 3H)  bf16 fused input weights
    whh    : (H, 3H)  bf16 fused recurrent weights
    bi     : (1, 3H)  f32  folded biases [b_ir + b_hr, b_iz + b_hz, b_in]
    bhn    : (1, H)   f32  b_hn (stays inside r * (...))
    h0     : (bsz, H) f32  initial hidden state
    returns: ((bsz, steps, H) all hidden states, (bsz, H) final hidden) — f32 values
    """
    hdim = whh.shape[0]

    # Hoisted fused input projection: ONE matmul for all gates over all time steps.
    gi = jnp.dot(x_flat, wih, preferred_element_type=F32) + bi          # (B*steps, 3H)
    gi = gi.reshape(bsz, steps, 3 * hdim)                               # leading-dim split only

    h = h0
    hs = []
    # Fully unrolled recurrence: ONE fused (H, 3H) MXU push per step on the serial chain.
    # (Resident-RHS driving via pltpu.matmul_push_rhs skipped on purpose — see header.)
    for t in range(steps):
        hh = jnp.dot(h.astype(BF16), whh, preferred_element_type=F32)   # (B, 3H)
        git = gi[:, t, :]                                                # (B, 3H)
        rz = jax.nn.sigmoid(git[:, :2 * hdim] + hh[:, :2 * hdim])        # r,z in one sigmoid
        r = rz[:, :hdim]
        z = rz[:, hdim:]
        n = jnp.tanh(git[:, 2 * hdim:] + r * (hh[:, 2 * hdim:] + bhn))
        h = (1.0 - z) * n + z * h
        hs.append(h)
    return jnp.stack(hs, axis=1), h                                      # (B, steps, H), (B, H)


def seq2seq_kernel(src_ref, tgt_ref,
                   e_wih_ref, e_whh_ref, e_bi_ref, e_bhn_ref,
                   d_wih_ref, d_whh_ref, d_bi_ref, d_bhn_ref,
                   wp_ref, bp_ref,
                   logits_ref, attnw_ref):
    # ---- Encoder GRU ----
    h0 = jnp.zeros((B, H), F32)
    enc_hs, enc_last = _gru(src_ref[...], e_wih_ref[...], e_whh_ref[...],
                            e_bi_ref[...], e_bhn_ref[...], h0, B, S)

    # ---- Decoder GRU (initial hidden = encoder last hidden) ----
    dec_hs, _ = _gru(tgt_ref[...], d_wih_ref[...], d_whh_ref[...],
                     d_bi_ref[...], d_bhn_ref[...], enc_last, B, T)

    # ---- Dot-product attention (batch unrolled, B is tiny) ----
    attn_list = []
    for b in range(B):
        e_b = enc_hs[b].astype(BF16)          # (S, H)
        d_b = dec_hs[b].astype(BF16)          # (T, H)
        # scores[s, t] = <enc[s], dec[t]>   (A @ B^T)
        scores = lax.dot_general(e_b, d_b, (((1,), (1,)), ((), ())),
                                 preferred_element_type=F32)             # (S, T)
        m = jnp.max(scores, axis=0, keepdims=True)
        p = jnp.exp(scores - m)
        inv = pl.reciprocal(jnp.sum(p, axis=0, keepdims=True), approx=False)
        w = p * inv                                                      # softmax over src
        # attn[t, h] = sum_s w[s, t] * enc[s, h]   (A^T @ B)
        attn_b = lax.dot_general(w.astype(BF16), e_b, (((0,), (0,)), ((), ())),
                                 preferred_element_type=F32)             # (T, H)
        attn_list.append(attn_b)
        attnw_ref[b] = w                                                 # (S, T)

    # ---- Split output projection, batched over all (b, t) rows at once ----
    # cat([dec, attn]) @ Wp  ==  dec @ Wp[:H] + attn @ Wp[H:]   (no lane concat)
    dec_flat = dec_hs.reshape(B * T, H).astype(BF16)                     # (B*T, H)
    attn_flat = jnp.concatenate(attn_list, axis=0).astype(BF16)          # (B*T, H), same row order
    logits_ref[...] = (jnp.dot(dec_flat, wp_ref[0], preferred_element_type=F32)
                       + jnp.dot(attn_flat, wp_ref[1], preferred_element_type=F32)
                       + bp_ref[...])


def fused_seq2seq(src_emb, tgt_emb, kp):
    bsz, s, e = src_emb.shape
    t = tgt_emb.shape[1]
    v = kp['b_proj'].shape[-1]
    # Flatten + cast in the wrapper (free XLA-side layout plumbing, bf16 MXU operands).
    src_flat = src_emb.reshape(bsz * s, e).astype(BF16)
    tgt_flat = tgt_emb.reshape(bsz * t, e).astype(BF16)
    logits_flat, attn_w = pl.pallas_call(
        seq2seq_kernel,
        out_shape=(jax.ShapeDtypeStruct((bsz * t, v), F32),     # logits (B*T, V)
                   jax.ShapeDtypeStruct((bsz, s, t), F32)),     # attention weights (B, S, T)
        in_specs=[VMEM_SPEC] * 12,
        out_specs=(VMEM_SPEC, VMEM_SPEC),
    )(src_flat, tgt_flat,
      kp['enc_wih'], kp['enc_whh'], kp['enc_bi'], kp['enc_bhn'],
      kp['dec_wih'], kp['dec_whh'], kp['dec_bi'], kp['dec_bhn'],
      kp['w_proj'], kp['b_proj'])
    return logits_flat.reshape(bsz, t, v), attn_w


# ------------------------------- parameters -------------------------------------
def make_params(key):
    """PyTorch-layout parameters (W_ih (E,3H), W_hh (H,3H), biases (1,3H), gate order r,z,n)."""
    def nxt():
        nonlocal key
        key, sub = jax.random.split(key)
        return sub

    scale = 0.1
    params = {}
    params['enc_emb'] = [scale * jax.random.normal(nxt(), (v, EMB), F32) for v in VOCABS]
    params['dec_emb'] = [scale * jax.random.normal(nxt(), (v, EMB), F32) for v in VOCABS]
    params['enc_wih'] = scale * jax.random.normal(nxt(), (E, 3 * H), F32)
    params['enc_whh'] = scale * jax.random.normal(nxt(), (H, 3 * H), F32)
    params['enc_bih'] = scale * jax.random.normal(nxt(), (1, 3 * H), F32)
    params['enc_bhh'] = scale * jax.random.normal(nxt(), (1, 3 * H), F32)
    params['dec_wih'] = scale * jax.random.normal(nxt(), (E, 3 * H), F32)
    params['dec_whh'] = scale * jax.random.normal(nxt(), (H, 3 * H), F32)
    params['dec_bih'] = scale * jax.random.normal(nxt(), (1, 3 * H), F32)
    params['dec_bhh'] = scale * jax.random.normal(nxt(), (1, 3 * H), F32)
    params['w_proj'] = scale * jax.random.normal(nxt(), (2 * H, V_OUT), F32)
    params['b_proj'] = scale * jax.random.normal(nxt(), (1, V_OUT), F32)
    return params


def prep_params(p):
    """One-time re-layout: fused (E,3H)/(H,3H) bf16 weights, folded r/z biases, split projection."""
    def fold_gru(wih, whh, bih, bhh):
        h = whh.shape[0]
        # [b_ir + b_hr, b_iz + b_hz, b_in]; b_hn stays separate (inside r * (...)).
        bi = jnp.concatenate([bih[:, :2 * h] + bhh[:, :2 * h], bih[:, 2 * h:]], axis=1)  # (1, 3H)
        bhn = bhh[:, 2 * h:]                                                             # (1, H)
        return wih.astype(BF16), whh.astype(BF16), bi, bhn

    e_wih, e_whh, e_bi, e_bhn = fold_gru(p['enc_wih'], p['enc_whh'], p['enc_bih'], p['enc_bhh'])
    d_wih, d_whh, d_bi, d_bhn = fold_gru(p['dec_wih'], p['dec_whh'], p['dec_bih'], p['dec_bhh'])
    h = p['enc_whh'].shape[0]
    wp = jnp.stack([p['w_proj'][:h], p['w_proj'][h:]], axis=0).astype(BF16)   # (2, H, V)
    return {
        'enc_emb': p['enc_emb'], 'dec_emb': p['dec_emb'],
        'enc_wih': e_wih, 'enc_whh': e_whh, 'enc_bi': e_bi, 'enc_bhn': e_bhn,
        'dec_wih': d_wih, 'dec_whh': d_whh, 'dec_bi': d_bi, 'dec_bhn': d_bhn,
        'w_proj': wp, 'b_proj': p['b_proj'],
    }


def embed_tokens(tokens, tables):
    """tokens: (B, seq, FEATS) int32 -> (B, seq, FEATS*EMB) concatenated embeddings."""
    embs = [tables[f][tokens[..., f]] for f in range(FEATS)]
    return jnp.concatenate(embs, axis=-1)


# ------------------------- AttentionSeq2seq forward -----------------------------
@jax.jit
def attention_seq2seq_forward(kparams, src, tgt):
    src_emb = embed_tokens(src, kparams['enc_emb'])     # (B, S, E)
    tgt_emb = embed_tokens(tgt, kparams['dec_emb'])     # (B, T, E)
    logits, attn_w = fused_seq2seq(src_emb, tgt_emb, kparams)
    # logits: (B, T, pitch_vocab + duration_vocab); attn_w: (B, S, T), softmax over S
    return logits, attn_w


# ----------------------------------- main ----------------------------------------
if __name__ == "__main__":
    key = jax.random.PRNGKey(0)
    k_par, k_src, k_tgt = jax.random.split(key, 3)

    params = make_params(k_par)
    kparams = prep_params(params)

    # integer multi-feature tokens: (B, seq, FEATS), each feature < its vocab size
    maxv = jnp.array(VOCABS, jnp.int32)
    src = (jax.random.randint(k_src, (B, S, FEATS), 0, 1 << 30) % maxv).astype(jnp.int32)
    tgt = (jax.random.randint(k_tgt, (B, T, FEATS), 0, 1 << 30) % maxv).astype(jnp.int32)

    logits, attn_w = attention_seq2seq_forward(kparams, src, tgt)
    jax.block_until_ready((logits, attn_w))

    assert logits.shape == (B, T, V_OUT)
    assert attn_w.shape == (B, S, T)
    # attention weights are a softmax over the source axis
    assert bool(jnp.allclose(jnp.sum(attn_w, axis=1), 1.0, atol=1e-5))

    # TODO(synk): AttnDecoder.sampling_process / autoregressive inference loop not
    # implemented (data-dependent while loop + tokenizer-side Python condition logic).
    print("KERNEL_OK")
</pallas_src>

<mosaic_0001>
module attributes {stable_mosaic.version = 11 : i64} {
  func.func @seq2seq_kernel(%arg0: memref<32x40xbf16, #tpu.memory_space<vmem>>, %arg1: memref<16x40xbf16, #tpu.memory_space<vmem>>, %arg2: memref<40x96xbf16, #tpu.memory_space<vmem>>, %arg3: memref<32x96xbf16, #tpu.memory_space<vmem>>, %arg4: memref<1x96xf32, #tpu.memory_space<vmem>>, %arg5: memref<1x32xf32, #tpu.memory_space<vmem>>, %arg6: memref<40x96xbf16, #tpu.memory_space<vmem>>, %arg7: memref<32x96xbf16, #tpu.memory_space<vmem>>, %arg8: memref<1x96xf32, #tpu.memory_space<vmem>>, %arg9: memref<1x32xf32, #tpu.memory_space<vmem>>, %arg10: memref<2x32x36xbf16, #tpu.memory_space<vmem>>, %arg11: memref<1x36xf32, #tpu.memory_space<vmem>>, %arg12: memref<16x36xf32, #tpu.memory_space<vmem>>, %arg13: memref<2x16x8xf32, #tpu.memory_space<vmem>>) attributes {dimension_semantics = [], scalar_prefetch = 0 : i64, scratch_operands = 0 : i64, tpu.core_type = #tpu.core_type<tc>} {
    %cst = arith.constant 0.000000e+00 : f32
    %0 = vector.broadcast %cst : f32 to vector<2x32xf32>
    %c0 = arith.constant 0 : index
    %c0_0 = arith.constant 0 : index
    %1 = vector.load %arg0[%c0, %c0_0] : memref<32x40xbf16, #tpu.memory_space<vmem>>, vector<32x40xbf16>
    %c0_1 = arith.constant 0 : index
    %c0_2 = arith.constant 0 : index
    %2 = vector.load %arg2[%c0_1, %c0_2] : memref<40x96xbf16, #tpu.memory_space<vmem>>, vector<40x96xbf16>
    %c0_3 = arith.constant 0 : index
    %c0_4 = arith.constant 0 : index
    %3 = vector.load %arg3[%c0_3, %c0_4] : memref<32x96xbf16, #tpu.memory_space<vmem>>, vector<32x96xbf16>
    %c0_5 = arith.constant 0 : index
    %c0_6 = arith.constant 0 : index
    %4 = vector.load %arg4[%c0_5, %c0_6] : memref<1x96xf32, #tpu.memory_space<vmem>>, vector<1x96xf32>
    %c0_7 = arith.constant 0 : index
    %c0_8 = arith.constant 0 : index
    %5 = vector.load %arg5[%c0_7, %c0_8] : memref<1x32xf32, #tpu.memory_space<vmem>>, vector<1x32xf32>
    %cst_9 = arith.constant dense<0.000000e+00> : vector<32x96xf32>
    %6 = tpu.matmul %1, %2, %cst_9 {dimension_numbers = #tpu.dot_dimension_numbers<[1], [0], [0], [1], [0, 0, 1, 1], [], []>} : vector<32x40xbf16>, vector<40x96xbf16>, vector<32x96xf32> -> vector<32x96xf32>
    %7 = vector.broadcast %4 : vector<1x96xf32> to vector<32x96xf32>
    %8 = arith.addf %6, %7 : vector<32x96xf32>
    %9 = vector.shape_cast %8 : vector<32x96xf32> to vector<2x16x96xf32>
    %10 = arith.truncf %0 : vector<2x32xf32> to vector<2x32xbf16>
    %cst_10 = arith.constant dense<0.000000e+00> : vector<2x96xf32>
    %11 = tpu.matmul %10, %3, %cst_10 {dimension_numbers = #tpu.dot_dimension_numbers<[1], [0], [0], [1], [0, 0, 1, 1], [], []>} : vector<2x32xbf16>, vector<32x96xbf16>, vector<2x96xf32> -> vector<2x96xf32>
    %12 = vector.extract_strided_slice %9 {offsets = [0, 0, 0], sizes = [2, 1, 96], strides = [1, 1, 1]} : vector<2x16x96xf32> to vector<2x1x96xf32>
    %13 = vector.shape_cast %12 : vector<2x1x96xf32> to vector<2x96xf32>
    %14 = vector.extract_strided_slice %13 {offsets = [0, 0], sizes = [2, 64], strides = [1, 1]} : vector<2x96xf32> to vector<2x64xf32>
    %15 = vector.extract_strided_slice %11 {offsets = [0, 0], sizes = [2, 64], strides = [1, 1]} : vector<2x96xf32> to vector<2x64xf32>
    %16 = arith.addf %14, %15 : vector<2x64xf32>
    %17 = arith.negf %16 : vector<2x64xf32>
    %18 = math.exp %17 : vector<2x64xf32>
    %cst_11 = arith.constant 1.000000e+00 : f32
    %19 = vector.broadcast %cst_11 : f32 to vector<2x64xf32>
    %20 = arith.addf %19, %18 : vector<2x64xf32>
    %21 = arith.divf %19, %20 : vector<2x64xf32>
    %22 = vector.extract_strided_slice %21 {offsets = [0, 0], sizes = [2, 32], strides = [1, 1]} : vector<2x64xf32> to vector<2x32xf32>
    %23 = vector.extract_strided_slice %21 {offsets = [0, 32], sizes = [2, 32], strides = [1, 1]} : vector<2x64xf32> to vector<2x32xf32>
    %24 = vector.extract_strided_slice %13 {offsets = [0, 64], sizes = [2, 32], strides = [1, 1]} : vector<2x96xf32> to vector<2x32xf32>
    %25 = vector.extract_strided_slice %11 {offsets = [0, 64], sizes = [2, 32], strides = [1, 1]} : vector<2x96xf32> to vector<2x32xf32>
    %26 = vector.broadcast %5 : vector<1x32xf32> to vector<2x32xf32>
    %27 = arith.addf %25, %26 : vector<2x32xf32>
    %28 = arith.mulf %22, %27 : vector<2x32xf32>
    %29 = arith.addf %24, %28 : vector<2x32xf32>
    %30 = math.tanh %29 : vector<2x32xf32>
    %cst_12 = arith.constant 1.000000e+00 : f32
    %31 = vector.broadcast %cst_12 : f32 to vector<2x32xf32>
    %32 = arith.subf %31, %23 : vector<2x32xf32>
    %33 = arith.mulf %32, %30 : vector<2x32xf32>
    %34 = arith.mulf %23, %0 : vector<2x32xf32>
    %35 = arith.addf %33, %34 : vector<2x32xf32>
    %36 = arith.truncf %35 : vector<2x32xf32> to vector<2x32xbf16>
    %cst_13 = arith.constant dense<0.000000e+00> : vector<2x96xf32>
    %37 = tpu.matmul %36, %3, %cst_13 {dimension_numbers = #tpu.dot_dimension_numbers<[1], [0], [0], [1], [0, 0, 1, 1], [], []>} : vector<2x32xbf16>, vector<32x96xbf16>, vector<2x96xf32> -> vector<2x96xf32>
    %38 = vector.extract_strided_slice %9 {offsets = [0, 1, 0], sizes = [2, 1, 96], strides = [1, 1, 1]} : vector<2x16x96xf32> to vector<2x1x96xf32>
    %39 = vector.shape_cast %38 : vector<2x1x96xf32> to vector<2x96xf32>
    %40 = vector.extract_strided_slice %39 {offsets = [0, 0], sizes = [2, 64], strides = [1, 1]} : vector<2x96xf32> to vector<2x64xf32>
    %41 = vector.extract_strided_slice %37 {offsets = [0, 0], sizes = [2, 64], strides = [1, 1]} : vector<2x96xf32> to vector<2x64xf32>
    %42 = arith.addf %40, %41 : vector<2x64xf32>
    %43 = arith.negf %42 : vector<2x64xf32>
    %44 = math.exp %43 : vector<2x64xf32>
    %cst_14 = arith.constant 1.000000e+00 : f32
    %45 = vector.broadcast %cst_14 : f32 to vector<2x64xf32>
    %46 = arith.addf %45, %44 : vector<2x64xf32>
    %47 = arith.divf %45, %46 : vector<2x64xf32>
    %48 = vector.extract_strided_slice %47 {offsets = [0, 0], sizes = [2, 32], strides = [1, 1]} : vector<2x64xf32> to vector<2x32xf32>
    %49 = vector.extract_strided_slice %47 {offsets = [0, 32], sizes = [2, 32], strides = [1, 1]} : vector<2x64xf32> to vector<2x32xf32>
    %50 = vector.extract_strided_slice %39 {offsets = [0, 64], sizes = [2, 32], strides = [1, 1]} : vector<2x96xf32> to vector<2x32xf32>
    %51 = vector.extract_strided_slice %37 {offsets = [0, 64], sizes = [2, 32], strides = [1, 1]} : vector<2x96xf32> to vector<2x32xf32>
    %52 = vector.broadcast %5 : vector<1x32xf32> to vector<2x32xf32>
    %53 = arith.addf %51, %52 : vector<2x32xf32>
    %54 = arith.mulf %48, %53 : vector<2x32xf32>
    %55 = arith.addf %50, %54 : vector<2x32xf32>
    %56 = math.tanh %55 : vector<2x32xf32>
    %cst_15 = arith.constant 1.000000e+00 : f32
    %57 = vector.broadcast %cst_15 : f32 to vector<2x32xf32>
    %58 = arith.subf %57, %49 : vector<2x32xf32>
    %59 = arith.mulf %58, %56 : vector<2x32xf32>
    %60 = arith.mulf %49, %35 : vector<2x32xf32>
    %61 = arith.addf %59, %60 : vector<2x32xf32>
    %62 = arith.truncf %61 : vector<2x32xf32> to vector<2x32xbf16>
    %cst_16 = arith.constant dense<0.000000e+00> : vector<2x96xf32>
    %63 = tpu.matmul %62, %3, %cst_16 {dimension_numbers = #tpu.dot_dimension_numbers<[1], [0], [0], [1], [0, 0, 1, 1], [], []>} : vector<2x32xbf16>, vector<32x96xbf16>, vector<2x96xf32> -> vector<2x96xf32>
    %64 = vector.extract_strided_slice %9 {offsets = [0, 2, 0], sizes = [2, 1, 96], strides = [1, 1, 1]} : vector<2x16x96xf32> to vector<2x1x96xf32>
    %65 = vector.shape_cast %64 : vector<2x1x96xf32> to vector<2x96xf32>
    %66 = vector.extract_strided_slice %65 {offsets = [0, 0], sizes = [2, 64], strides = [1, 1]} : vector<2x96xf32> to vector<2x64xf32>
    %67 = vector.extract_strided_slice %63 {offsets = [0, 0], sizes = [2, 64], strides = [1, 1]} : vector<2x96xf32> to vector<2x64xf32>
    %68 = arith.addf %66, %67 : vector<2x64xf32>
    %69 = arith.negf %68 : vector<2x64xf32>
    %70 = math.exp %69 : vector<2x64xf32>
    %cst_17 = arith.constant 1.000000e+00 : f32
    %71 = vector.broadcast %cst_17 : f32 to vector<2x64xf32>
    %72 = arith.addf %71, %70 : vector<2x64xf32>
    %73 = arith.divf %71, %72 : vector<2x64xf32>
    %74 = vector.extract_strided_slice %73 {offsets = [0, 0], sizes = [2, 32], strides = [1, 1]} : vector<2x64xf32> to vector<2x32xf32>
    %75 = vector.extract_strided_slice %73 {offsets = [0, 32], sizes = [2, 32], strides = [1, 1]} : vector<2x64xf32> to vector<2x32xf32>
    %76 = vector.extract_strided_slice %65 {offsets = [0, 64], sizes = [2, 32], strides = [1, 1]} : vector<2x96xf32> to vector<2x32xf32>
    %77 = vector.extract_strided_slice %63 {offsets = [0, 64], sizes = [2, 32], strides = [1, 1]} : vector<2x96xf32> to vector<2x32xf32>
    %78 = vector.broadcast %5 : vector<1x32xf32> to vector<2x32xf32>
    %79 = arith.addf %77, %78 : vector<2x32xf32>
    %80 = arith.mulf %74, %79 : vector<2x32xf32>
    %81 = arith.addf %76, %80 : vector<2x32xf32>
    %82 = math.tanh %81 : vector<2x32xf32>
    %cst_18 = arith.constant 1.000000e+00 : f32
    %83 = vector.broadcast %cst_18 : f32 to vector<2x32xf32>
    %84 = arith.subf %83, %75 : vector<2x32xf32>
    %85 = arith.mulf %84, %82 : vector<2x32xf32>
    %86 = arith.mulf %75, %61 : vector<2x32xf32>
    %87 = arith.addf %85, %86 : vector<2x32xf32>
    %88 = arith.truncf %87 : vector<2x32xf32> to vector<2x32xbf16>
    %cst_19 = arith.constant dense<0.000000e+00> : vector<2x96xf32>
    %89 = tpu.matmul %88, %3, %cst_19 {dimension_numbers = #tpu.dot_dimension_numbers<[1], [0], [0], [1], [0, 0, 1, 1], [], []>} : vector<2x32xbf16>, vector<32x96xbf16>, vector<2x96xf32> -> vector<2x96xf32>
    %90 = vector.extract_strided_slice %9 {offsets = [0, 3, 0], sizes = [2, 1, 96], strides = [1, 1, 1]} : vector<2x16x96xf32> to vector<2x1x96xf32>
    %91 = vector.shape_cast %90 : vector<2x1x96xf32> to vector<2x96xf32>
    %92 = vector.extract_strided_slice %91 {offsets = [0, 0], sizes = [2, 64], strides = [1, 1]} : vector<2x96xf32> to vector<2x64xf32>
    %93 = vector.extract_strided_slice %89 {offsets = [0, 0], sizes = [2, 64], strides = [1, 1]} : vector<2x96xf32> to vector<2x64xf32>
    %94 = arith.addf %92, %93 : vector<2x64xf32>
    %95 = arith.negf %94 : vector<2x64xf32>
    %96 = math.exp %95 : vector<2x64xf32>
    %cst_20 = arith.constant 1.000000e+00 : f32
    %97 = vector.broadcast %cst_20 : f32 to vector<2x64xf32>
    %98 = arith.addf %97, %96 : vector<2x64xf32>
    %99 = arith.divf %97, %98 : vector<2x64xf32>
    %100 = vector.extract_strided_slice %99 {offsets = [0, 0], sizes = [2, 32], strides = [1, 1]} : vector<2x64xf32> to vector<2x32xf32>
    %101 = vector.extract_strided_slice %99 {offsets = [0, 32], sizes = [2, 32], strides = [1, 1]} : vector<2x64xf32> to vector<2x32xf32>
    %102 = vector.extract_strided_slice %91 {offsets = [0, 64], sizes = [2, 32], strides = [1, 1]} : vector<2x96xf32> to vector<2x32xf32>
    %103 = vector.extract_strided_slice %89 {offsets = [0, 64], sizes = [2, 32], strides = [1, 1]} : vector<2x96xf32> to vector<2x32xf32>
    %104 = vector.broadcast %5 : vector<1x32xf32> to vector<2x32xf32>
    %105 = arith.addf %103, %104 : vector<2x32xf32>
    %106 = arith.mulf %100, %105 : vector<2x32xf32>
    %107 = arith.addf %102, %106 : vector<2x32xf32>
    %108 = math.tanh %107 : vector<2x32xf32>
    %cst_21 = arith.constant 1.000000e+00 : f32
    %109 = vector.broadcast %cst_21 : f32 to vector<2x32xf32>
    %110 = arith.subf %109, %101 : vector<2x32xf32>
    %111 = arith.mulf %110, %108 : vector<2x32xf32>
    %112 = arith.mulf %101, %87 : vector<2x32xf32>
    %113 = arith.addf %111, %112 : vector<2x32xf32>
    %114 = arith.truncf %113 : vector<2x32xf32> to vector<2x32xbf16>
    %cst_22 = arith.constant dense<0.000000e+00> : vector<2x96xf32>
    %115 = tpu.matmul %114, %3, %cst_22 {dimension_numbers = #tpu.dot_dimension_numbers<[1], [0], [0], [1], [0, 0, 1, 1], [], []>} : vector<2x32xbf16>, vector<32x96xbf16>, vector<2x96xf32> -> vector<2x96xf32>
    %116 = vector.extract_strided_slice %9 {offsets = [0, 4, 0], sizes = [2, 1, 96], strides = [1, 1, 1]} : vector<2x16x96xf32> to vector<2x1x96xf32>
    %117 = vector.shape_cast %116 : vector<2x1x96xf32> to vector<2x96xf32>
    %118 = vector.extract_strided_slice %117 {offsets = [0, 0], sizes = [2, 64], strides = [1, 1]} : vector<2x96xf32> to vector<2x64xf32>
    %119 = vector.extract_strided_slice %115 {offsets = [0, 0], sizes = [2, 64], strides = [1, 1]} : vector<2x96xf32> to vector<2x64xf32>
    %120 = arith.addf %118, %119 : vector<2x64xf32>
    %121 = arith.negf %120 : vector<2x64xf32>
    %122 = math.exp %121 : vector<2x64xf32>
    %cst_23 = arith.constant 1.000000e+00 : f32
    %123 = vector.broadcast %cst_23 : f32 to vector<2x64xf32>
    %124 = arith.addf %123, %122 : vector<2x64xf32>
    %125 = arith.divf %123, %124 : vector<2x64xf32>
    %126 = vector.extract_strided_slice %125 {offsets = [0, 0], sizes = [2, 32], strides = [1, 1]} : vector<2x64xf32> to vector<2x32xf32>
    %127 = vector.extract_strided_slice %125 {offsets = [0, 32], sizes = [2, 32], strides = [1, 1]} : vector<2x64xf32> to vector<2x32xf32>
    %128 = vector.extract_strided_slice %117 {offsets = [0, 64], sizes = [2, 32], strides = [1, 1]} : vector<2x96xf32> to vector<2x32xf32>
    %129 = vector.extract_strided_slice %115 {offsets = [0, 64], sizes = [2, 32], strides = [1, 1]} : vector<2x96xf32> to vector<2x32xf32>
    %130 = vector.broadcast %5 : vector<1x32xf32> to vector<2x32xf32>
    %131 = arith.addf %129, %130 : vector<2x32xf32>
    %132 = arith.mulf %126, %131 : vector<2x32xf32>
    %133 = arith.addf %128, %132 : vector<2x32xf32>
    %134 = math.tanh %133 : vector<2x32xf32>
    %cst_24 = arith.constant 1.000000e+00 : f32
    %135 = vector.broadcast %cst_24 : f32 to vector<2x32xf32>
    %136 = arith.subf %135, %127 : vector<2x32xf32>
    %137 = arith.mulf %136, %134 : vector<2x32xf32>
    %138 = arith.mulf %127, %113 : vector<2x32xf32>
    %139 = arith.addf %137, %138 : vector<2x32xf32>
    %140 = arith.truncf %139 : vector<2x32xf32> to vector<2x32xbf16>
    %cst_25 = arith.constant dense<0.000000e+00> : vector<2x96xf32>
    %141 = tpu.matmul %140, %3, %cst_25 {dimension_numbers = #tpu.dot_dimension_numbers<[1], [0], [0], [1], [0, 0, 1, 1], [], []>} : vector<2x32xbf16>, vector<32x96xbf16>, vector<2x96xf32> -> vector<2x96xf32>
    %142 = vector.extract_strided_slice %9 {offsets = [0, 5, 0], sizes = [2, 1, 96], strides = [1, 1, 1]} : vector<2x16x96xf32> to vector<2x1x96xf32>
    %143 = vector.shape_cast %142 : vector<2x1x96xf32> to vector<2x96xf32>
    %144 = vector.extract_strided_slice %143 {offsets = [0, 0], sizes = [2, 64], strides = [1, 1]} : vector<2x96xf32> to vector<2x64xf32>
    %145 = vector.extract_strided_slice %141 {offsets = [0, 0], sizes = [2, 64], strides = [1, 1]} : vector<2x96xf32> to vector<2x64xf32>
    %146 = arith.addf %144, %145 : vector<2x64xf32>
    %147 = arith.negf %146 : vector<2x64xf32>
    %148 = math.exp %147 : vector<2x64xf32>
    %cst_26 = arith.constant 1.000000e+00 : f32
    %149 = vector.broadcast %cst_26 : f32 to vector<2x64xf32>
    %150 = arith.addf %149, %148 : vector<2x64xf32>
    %151 = arith.divf %149, %150 : vector<2x64xf32>
    %152 = vector.extract_strided_slice %151 {offsets = [0, 0], sizes = [2, 32], strides = [1, 1]} : vector<2x64xf32> to vector<2x32xf32>
    %153 = vector.extract_strided_slice %151 {offsets = [0, 32], sizes = [2, 32], strides = [1, 1]} : vector<2x64xf32> to vector<2x32xf32>
    %154 = vector.extract_strided_slice %143 {offsets = [0, 64], sizes = [2, 32], strides = [1, 1]} : vector<2x96xf32> to vector<2x32xf32>
    %155 = vector.extract_strided_slice %141 {offsets = [0, 64], sizes = [2, 32], strides = [1, 1]} : vector<2x96xf32> to vector<2x32xf32>
    %156 = vector.broadcast %5 : vector<1x32xf32> to vector<2x32xf32>
    %157 = arith.addf %155, %156 : vector<2x32xf32>
    %158 = arith.mulf %152, %157 : vector<2x32xf32>
    %159 = arith.addf %154, %158 : vector<2x32xf32>
    %160 = math.tanh %159 : vector<2x32xf32>
    %cst_27 = arith.constant 1.000000e+00 : f32
    %161 = vector.broadcast %cst_27 : f32 to vector<2x32xf32>
    %162 = arith.subf %161, %153 : vector<2x32xf32>
    %163 = arith.mulf %162, %160 : vector<2x32xf32>
    %164 = arith.mulf %153, %139 : vector<2x32xf32>
    %165 = arith.addf %163, %164 : vector<2x32xf32>
    %166 = arith.truncf %165 : vector<2x32xf32> to vector<2x32xbf16>
    %cst_28 = arith.constant dense<0.000000e+00> : vector<2x96xf32>
    %167 = tpu.matmul %166, %3, %cst_28 {dimension_numbers = #tpu.dot_dimension_numbers<[1], [0], [0], [1], [0, 0, 1, 1], [], []>} : vector<2x32xbf16>, vector<32x96xbf16>, vector<2x96xf32> -> vector<2x96xf32>
    %168 = vector.extract_strided_slice %9 {offsets = [0, 6, 0], sizes = [2, 1, 96], strides = [1, 1, 1]} : vector<2x16x96xf32> to vector<2x1x96xf32>
    %169 = vector.shape_cast %168 : vector<2x1x96xf32> to vector<2x96xf32>
    %170 = vector.extract_strided_slice %169 {offsets = [0, 0], sizes = [2, 64], strides = [1, 1]} : vector<2x96xf32> to vector<2x64xf32>
    %171 = vector.extract_strided_slice %167 {offsets = [0, 0], sizes = [2, 64], strides = [1, 1]} : vector<2x96xf32> to vector<2x64xf32>
    %172 = arith.addf %170, %171 : vector<2x64xf32>
    %173 = arith.negf %172 : vector<2x64xf32>
    %174 = math.exp %173 : vector<2x64xf32>
    %cst_29 = arith.constant 1.000000e+00 : f32
    %175 = vector.broadcast %cst_29 : f32 to vector<2x64xf32>
    %176 = arith.addf %175, %174 : vector<2x64xf32>
    %177 = arith.divf %175, %176 : vector<2x64xf32>
    %178 = vector.extract_strided_slice %177 {offsets = [0, 0], sizes = [2, 32], strides = [1, 1]} : vector<2x64xf32> to vector<2x32xf32>
    %179 = vector.extract_strided_slice %177 {offsets = [0, 32], sizes = [2, 32], strides = [1, 1]} : vector<2x64xf32> to vector<2x32xf32>
    %180 = vector.extract_strided_slice %169 {offsets = [0, 64], sizes = [2, 32], strides = [1, 1]} : vector<2x96xf32> to vector<2x32xf32>
    %181 = vector.extract_strided_slice %167 {offsets = [0, 64], sizes = [2, 32], strides = [1, 1]} : vector<2x96xf32> to vector<2x32xf32>
    %182 = vector.broadcast %5 : vector<1x32xf32> to vector<2x32xf32>
    %183 = arith.addf %181, %182 : vector<2x32xf32>
    %184 = arith.mulf %178, %183 : vector<2x32xf32>
    %185 = arith.addf %180, %184 : vector<2x32xf32>
    %186 = math.tanh %185 : vector<2x32xf32>
    %cst_30 = arith.constant 1.000000e+00 : f32
    %187 = vector.broadcast %cst_30 : f32 to vector<2x32xf32>
    %188 = arith.subf %187, %179 : vector<2x32xf32>
    %189 = arith.mulf %188, %186 : vector<2x32xf32>
    %190 = arith.mulf %179, %165 : vector<2x32xf32>
    %191 = arith.addf %189, %190 : vector<2x32xf32>
    %192 = arith.truncf %191 : vector<2x32xf32> to vector<2x32xbf16>
    %cst_31 = arith.constant dense<0.000000e+00> : vector<2x96xf32>
    %193 = tpu.matmul %192, %3, %cst_31 {dimension_numbers = #tpu.dot_dimension_numbers<[1], [0], [0], [1], [0, 0, 1, 1], [], []>} : vector<2x32xbf16>, vector<32x96xbf16>, vector<2x96xf32> -> vector<2x96xf32>
    %194 = vector.extract_strided_slice %9 {offsets = [0, 7, 0], sizes = [2, 1, 96], strides = [1, 1, 1]} : vector<2x16x96xf32> to vector<2x1x96xf32>
    %195 = vector.shape_cast %194 : vector<2x1x96xf32> to vector<2x96xf32>
    %196 = vector.extract_strided_slice %195 {offsets = [0, 0], sizes = [2, 64], strides = [1, 1]} : vector<2x96xf32> to vector<2x64xf32>
    %197 = vector.extract_strided_slice %193 {offsets = [0, 0], sizes = [2, 64], strides = [1, 1]} : vector<2x96xf32> to vector<2x64xf32>
    %198 = arith.addf %196, %197 : vector<2x64xf32>
    %199 = arith.negf %198 : vector<2x64xf32>
    %200 = math.exp %199 : vector<2x64xf32>
    %cst_32 = arith.constant 1.000000e+00 : f32
    %201 = vector.broadcast %cst_32 : f32 to vector<2x64xf32>
    %202 = arith.addf %201, %200 : vector<2x64xf32>
    %203 = arith.divf %201, %202 : vector<2x64xf32>
    %204 = vector.extract_strided_slice %203 {offsets = [0, 0], sizes = [2, 32], strides = [1, 1]} : vector<2x64xf32> to vector<2x32xf32>
    %205 = vector.extract_strided_slice %203 {offsets = [0, 32], sizes = [2, 32], strides = [1, 1]} : vector<2x64xf32> to vector<2x32xf32>
    %206 = vector.extract_strided_slice %195 {offsets = [0, 64], sizes = [2, 32], strides = [1, 1]} : vector<2x96xf32> to vector<2x32xf32>
    %207 = vector.extract_strided_slice %193 {offsets = [0, 64], sizes = [2, 32], strides = [1, 1]} : vector<2x96xf32> to vector<2x32xf32>
    %208 = vector.broadcast %5 : vector<1x32xf32> to vector<2x32xf32>
    %209 = arith.addf %207, %208 : vector<2x32xf32>
    %210 = arith.mulf %204, %209 : vector<2x32xf32>
    %211 = arith.addf %206, %210 : vector<2x32xf32>
    %212 = math.tanh %211 : vector<2x32xf32>
    %cst_33 = arith.constant 1.000000e+00 : f32
    %213 = vector.broadcast %cst_33 : f32 to vector<2x32xf32>
    %214 = arith.subf %213, %205 : vector<2x32xf32>
    %215 = arith.mulf %214, %212 : vector<2x32xf32>
    %216 = arith.mulf %205, %191 : vector<2x32xf32>
    %217 = arith.addf %215, %216 : vector<2x32xf32>
    %218 = arith.truncf %217 : vector<2x32xf32> to vector<2x32xbf16>
    %cst_34 = arith.constant dense<0.000000e+00> : vector<2x96xf32>
    %219 = tpu.matmul %218, %3, %cst_34 {dimension_numbers = #tpu.dot_dimension_numbers<[1], [0], [0], [1], [0, 0, 1, 1], [], []>} : vector<2x32xbf16>, vector<32x96xbf16>, vector<2x96xf32> -> vector<2x96xf32>
    %220 = vector.extract_strided_slice %9 {offsets = [0, 8, 0], sizes = [2, 1, 96], strides = [1, 1, 1]} : vector<2x16x96xf32> to vector<2x1x96xf32>
    %221 = vector.shape_cast %220 : vector<2x1x96xf32> to vector<2x96xf32>
    %222 = vector.extract_strided_slice %221 {offsets = [0, 0], sizes = [2, 64], strides = [1, 1]} : vector<2x96xf32> to vector<2x64xf32>
    %223 = vector.extract_strided_slice %219 {offsets = [0, 0], sizes = [2, 64], strides = [1, 1]} : vector<2x96xf32> to vector<2x64xf32>
    %224 = arith.addf %222, %223 : vector<2x64xf32>
    %225 = arith.negf %224 : vector<2x64xf32>
    %226 = math.exp %225 : vector<2x64xf32>
    %cst_35 = arith.constant 1.000000e+00 : f32
    %227 = vector.broadcast %cst_35 : f32 to vector<2x64xf32>
    %228 = arith.addf %227, %226 : vector<2x64xf32>
    %229 = arith.divf %227, %228 : vector<2x64xf32>
    %230 = vector.extract_strided_slice %229 {offsets = [0, 0], sizes = [2, 32], strides = [1, 1]} : vector<2x64xf32> to vector<2x32xf32>
    %231 = vector.extract_strided_slice %229 {offsets = [0, 32], sizes = [2, 32], strides = [1, 1]} : vector<2x64xf32> to vector<2x32xf32>
    %232 = vector.extract_strided_slice %221 {offsets = [0, 64], sizes = [2, 32], strides = [1, 1]} : vector<2x96xf32> to vector<2x32xf32>
    %233 = vector.extract_strided_slice %219 {offsets = [0, 64], sizes = [2, 32], strides = [1, 1]} : vector<2x96xf32> to vector<2x32xf32>
    %234 = vector.broadcast %5 : vector<1x32xf32> to vector<2x32xf32>
    %235 = arith.addf %233, %234 : vector<2x32xf32>
    %236 = arith.mulf %230, %235 : vector<2x32xf32>
    %237 = arith.addf %232, %236 : vector<2x32xf32>
    %238 = math.tanh %237 : vector<2x32xf32>
    %cst_36 = arith.constant 1.000000e+00 : f32
    %239 = vector.broadcast %cst_36 : f32 to vector<2x32xf32>
    %240 = arith.subf %239, %231 : vector<2x32xf32>
    %241 = arith.mulf %240, %238 : vector<2x32xf32>
    %242 = arith.mulf %231, %217 : vector<2x32xf32>
    %243 = arith.addf %241, %242 : vector<2x32xf32>
    %244 = arith.truncf %243 : vector<2x32xf32> to vector<2x32xbf16>
    %cst_37 = arith.constant dense<0.000000e+00> : vector<2x96xf32>
    %245 = tpu.matmul %244, %3, %cst_37 {dimension_numbers = #tpu.dot_dimension_numbers<[1], [0], [0], [1], [0, 0, 1, 1], [], []>} : vector<2x32xbf16>, vector<32x96xbf16>, vector<2x96xf32> -> vector<2x96xf32>
    %246 = vector.extract_strided_slice %9 {offsets = [0, 9, 0], sizes = [2, 1, 96], strides = [1, 1, 1]} : vector<2x16x96xf32> to vector<2x1x96xf32>
    %247 = vector.shape_cast %246 : vector<2x1x96xf32> to vector<2x96xf32>
    %248 = vector.extract_strided_slice %247 {offsets = [0, 0], sizes = [2, 64], strides = [1, 1]} : vector<2x96xf32> to vector<2x64xf32>
    %249 = vector.extract_strided_slice %245 {offsets = [0, 0], sizes = [2, 64], strides = [1, 1]} : vector<2x96xf32> to vector<2x64xf32>
    %250 = arith.addf %248, %249 : vector<2x64xf32>
    %251 = arith.negf %250 : vector<2x64xf32>
    %252 = math.exp %251 : vector<2x64xf32>
    %cst_38 = arith.constant 1.000000e+00 : f32
    %253 = vector.broadcast %cst_38 : f32 to vector<2x64xf32>
    %254 = arith.addf %253, %252 : vector<2x64xf32>
    %255 = arith.divf %253, %254 : vector<2x64xf32>
    %256 = vector.extract_strided_slice %255 {offsets = [0, 0], sizes = [2, 32], strides = [1, 1]} : vector<2x64xf32> to vector<2x32xf32>
    %257 = vector.extract_strided_slice %255 {offsets = [0, 32], sizes = [2, 32], strides = [1, 1]} : vector<2x64xf32> to vector<2x32xf32>
    %258 = vector.extract_strided_slice %247 {offsets = [0, 64], sizes = [2, 32], strides = [1, 1]} : vector<2x96xf32> to vector<2x32xf32>
    %259 = vector.extract_strided_slice %245 {offsets = [0, 64], sizes = [2, 32], strides = [1, 1]} : vector<2x96xf32> to vector<2x32xf32>
    %260 = vector.broadcast %5 : vector<1x32xf32> to vector<2x32xf32>
    %261 = arith.addf %259, %260 : vector<2x32xf32>
    %262 = arith.mulf %256, %261 : vector<2x32xf32>
    %263 = arith.addf %258, %262 : vector<2x32xf32>
    %264 = math.tanh %263 : vector<2x32xf32>
    %cst_39 = arith.constant 1.000000e+00 : f32
    %265 = vector.broadcast %cst_39 : f32 to vector<2x32xf32>
    %266 = arith.subf %265, %257 : vector<2x32xf32>
    %267 = arith.mulf %266, %264 : vector<2x32xf32>
    %268 = arith.mulf %257, %243 : vector<2x32xf32>
    %269 = arith.addf %267, %268 : vector<2x32xf32>
    %270 = arith.truncf %269 : vector<2x32xf32> to vector<2x32xbf16>
    %cst_40 = arith.constant dense<0.000000e+00> : vector<2x96xf32>
    %271 = tpu.matmul %270, %3, %cst_40 {dimension_numbers = #tpu.dot_dimension_numbers<[1], [0], [0], [1], [0, 0, 1, 1], [], []>} : vector<2x32xbf16>, vector<32x96xbf16>, vector<2x96xf32> -> vector<2x96xf32>
    %272 = vector.extract_strided_slice %9 {offsets = [0, 10, 0], sizes = [2, 1, 96], strides = [1, 1, 1]} : vector<2x16x96xf32> to vector<2x1x96xf32>
    %273 = vector.shape_cast %272 : vector<2x1x96xf32> to vector<2x96xf32>
    %274 = vector.extract_strided_slice %273 {offsets = [0, 0], sizes = [2, 64], strides = [1, 1]} : vector<2x96xf32> to vector<2x64xf32>
    %275 = vector.extract_strided_slice %271 {offsets = [0, 0], sizes = [2, 64], strides = [1, 1]} : vector<2x96xf32> to vector<2x64xf32>
    %276 = arith.addf %274, %275 : vector<2x64xf32>
    %277 = arith.negf %276 : vector<2x64xf32>
    %278 = math.exp %277 : vector<2x64xf32>
    %cst_41 = arith.constant 1.000000e+00 : f32
    %279 = vector.broadcast %cst_41 : f32 to vector<2x64xf32>
    %280 = arith.addf %279, %278 : vector<2x64xf32>
    %281 = arith.divf %279, %280 : vector<2x64xf32>
    %282 = vector.extract_strided_slice %281 {offsets = [0, 0], sizes = [2, 32], strides = [1, 1]} : vector<2x64xf32> to vector<2x32xf32>
    %283 = vector.extract_strided_slice %281 {offsets = [0, 32], sizes = [2, 32], strides = [1, 1]} : vector<2x64xf32> to vector<2x32xf32>
    %284 = vector.extract_strided_slice %273 {offsets = [0, 64], sizes = [2, 32], strides = [1, 1]} : vector<2x96xf32> to vector<2x32xf32>
    %285 = vector.extract_strided_slice %271 {offsets = [0, 64], sizes = [2, 32], strides = [1, 1]} : vector<2x96xf32> to vector<2x32xf32>
    %286 = vector.broadcast %5 : vector<1x32xf32> to vector<2x32xf32>
    %287 = arith.addf %285, %286 : vector<2x32xf32>
    %288 = arith.mulf %282, %287 : vector<2x32xf32>
    %289 = arith.addf %284, %288 : vector<2x32xf32>
    %290 = math.tanh %289 : vector<2x32xf32>
    %cst_42 = arith.constant 1.000000e+00 : f32
    %291 = vector.broadcast %cst_42 : f32 to vector<2x32xf32>
    %292 = arith.subf %291, %283 : vector<2x32xf32>
    %293 = arith.mulf %292, %290 : vector<2x32xf32>
    %294 = arith.mulf %283, %269 : vector<2x32xf32>
    %295 = arith.addf %293, %294 : vector<2x32xf32>
    %296 = arith.truncf %295 : vector<2x32xf32> to vector<2x32xbf16>
    %cst_43 = arith.constant dense<0.000000e+00> : vector<2x96xf32>
    %297 = tpu.matmul %296, %3, %cst_43 {dimension_numbers = #tpu.dot_dimension_numbers<[1], [0], [0], [1], [0, 0, 1, 1], [], []>} : vector<2x32xbf16>, vector<32x96xbf16>, vector<2x96xf32> -> vector<2x96xf32>
    %298 = vector.extract_strided_slice %9 {offsets = [0, 11, 0], sizes = [2, 1, 96], strides = [1, 1, 1]} : vector<2x16x96xf32> to vector<2x1x96xf32>
    %299 = vector.shape_cast %298 : vector<2x1x96xf32> to vector<2x96xf32>
    %300 = vector.extract_strided_slice %299 {offsets = [0, 0], sizes = [2, 64], strides = [1, 1]} : vector<2x96xf32> to vector<2x64xf32>
    %301 = vector.extract_strided_slice %297 {offsets = [0, 0], sizes = [2, 64], strides = [1, 1]} : vector<2x96xf32> to vector<2x64xf32>
    %302 = arith.addf %300, %301 : vector<2x64xf32>
    %303 = arith.negf %302 : vector<2x64xf32>
    %304 = math.exp %303 : vector<2x64xf32>
    %cst_44 = arith.constant 1.000000e+00 : f32
    %305 = vector.broadcast %cst_44 : f32 to vector<2x64xf32>
    %306 = arith.addf %305, %304 : vector<2x64xf32>
    %307 = arith.divf %305, %306 : vector<2x64xf32>
    %308 = vector.extract_strided_slice %307 {offsets = [0, 0], sizes = [2, 32], strides = [1, 1]} : vector<2x64xf32> to vector<2x32xf32>
    %309 = vector.extract_strided_slice %307 {offsets = [0, 32], sizes = [2, 32], strides = [1, 1]} : vector<2x64xf32> to vector<2x32xf32>
    %310 = vector.extract_strided_slice %299 {offsets = [0, 64], sizes = [2, 32], strides = [1, 1]} : vector<2x96xf32> to vector<2x32xf32>
    %311 = vector.extract_strided_slice %297 {offsets = [0, 64], sizes = [2, 32], strides = [1, 1]} : vector<2x96xf32> to vector<2x32xf32>
    %312 = vector.broadcast %5 : vector<1x32xf32> to vector<2x32xf32>
    %313 = arith.addf %311, %312 : vector<2x32xf32>
    %314 = arith.mulf %308, %313 : vector<2x32xf32>
    %315 = arith.addf %310, %314 : vector<2x32xf32>
    %316 = math.tanh %315 : vector<2x32xf32>
    %cst_45 = arith.constant 1.000000e+00 : f32
    %317 = vector.broadcast %cst_45 : f32 to vector<2x32xf32>
    %318 = arith.subf %317, %309 : vector<2x32xf32>
    %319 = arith.mulf %318, %316 : vector<2x32xf32>
    %320 = arith.mulf %309, %295 : vector<2x32xf32>
    %321 = arith.addf %319, %320 : vector<2x32xf32>
    %322 = arith.truncf %321 : vector<2x32xf32> to vector<2x32xbf16>
    %cst_46 = arith.constant dense<0.000000e+00> : vector<2x96xf32>
    %323 = tpu.matmul %322, %3, %cst_46 {dimension_numbers = #tpu.dot_dimension_numbers<[1], [0], [0], [1], [0, 0, 1, 1], [], []>} : vector<2x32xbf16>, vector<32x96xbf16>, vector<2x96xf32> -> vector<2x96xf32>
    %324 = vector.extract_strided_slice %9 {offsets = [0, 12, 0], sizes = [2, 1, 96], strides = [1, 1, 1]} : vector<2x16x96xf32> to vector<2x1x96xf32>
    %325 = vector.shape_cast %324 : vector<2x1x96xf32> to vector<2x96xf32>
    %326 = vector.extract_strided_slice %325 {offsets = [0, 0], sizes = [2, 64], strides = [1, 1]} : vector<2x96xf32> to vector<2x64xf32>
    %327 = vector.extract_strided_slice %323 {offsets = [0, 0], sizes = [2, 64], strides = [1, 1]} : vector<2x96xf32> to vector<2x64xf32>
    %328 = arith.addf %326, %327 : vector<2x64xf32>
    %329 = arith.negf %328 : vector<2x64xf32>
    %330 = math.exp %329 : vector<2x64xf32>
    %cst_47 = arith.constant 1.000000e+00 : f32
    %331 = vector.broadcast %cst_47 : f32 to vector<2x64xf32>
    %332 = arith.addf %331, %330 : vector<2x64xf32>
    %333 = arith.divf %331, %332 : vector<2x64xf32>
    %334 = vector.extract_strided_slice %333 {offsets = [0, 0], sizes = [2, 32], strides = [1, 1]} : vector<2x64xf32> to vector<2x32xf32>
    %335 = vector.extract_strided_slice %333 {offsets = [0, 32], sizes = [2, 32], strides = [1, 1]} : vector<2x64xf32> to vector<2x32xf32>
    %336 = vector.extract_strided_slice %325 {offsets = [0, 64], sizes = [2, 32], strides = [1, 1]} : vector<2x96xf32> to vector<2x32xf32>
    %337 = vector.extract_strided_slice %323 {offsets = [0, 64], sizes = [2, 32], strides = [1, 1]} : vector<2x96xf32> to vector<2x32xf32>
    %338 = vector.broadcast %5 : vector<1x32xf32> to vector<2x32xf32>
    %339 = arith.addf %337, %338 : vector<2x32xf32>
    %340 = arith.mulf %334, %339 : vector<2x32xf32>
    %341 = arith.addf %336, %340 : vector<2x32xf32>
    %342 = math.tanh %341 : vector<2x32xf32>
    %cst_48 = arith.constant 1.000000e+00 : f32
    %343 = vector.broadcast %cst_48 : f32 to vector<2x32xf32>
    %344 = arith.subf %343, %335 : vector<2x32xf32>
    %345 = arith.mulf %344, %342 : vector<2x32xf32>
    %346 = arith.mulf %335, %321 : vector<2x32xf32>
    %347 = arith.addf %345, %346 : vector<2x32xf32>
    %348 = arith.truncf %347 : vector<2x32xf32> to vector<2x32xbf16>
    %cst_49 = arith.constant dense<0.000000e+00> : vector<2x96xf32>
    %349 = tpu.matmul %348, %3, %cst_49 {dimension_numbers = #tpu.dot_dimension_numbers<[1], [0], [0], [1], [0, 0, 1, 1], [], []>} : vector<2x32xbf16>, vector<32x96xbf16>, vector<2x96xf32> -> vector<2x96xf32>
    %350 = vector.extract_strided_slice %9 {offsets = [0, 13, 0], sizes = [2, 1, 96], strides = [1, 1, 1]} : vector<2x16x96xf32> to vector<2x1x96xf32>
    %351 = vector.shape_cast %350 : vector<2x1x96xf32> to vector<2x96xf32>
    %352 = vector.extract_strided_slice %351 {offsets = [0, 0], sizes = [2, 64], strides = [1, 1]} : vector<2x96xf32> to vector<2x64xf32>
    %353 = vector.extract_strided_slice %349 {offsets = [0, 0], sizes = [2, 64], strides = [1, 1]} : vector<2x96xf32> to vector<2x64xf32>
    %354 = arith.addf %352, %353 : vector<2x64xf32>
    %355 = arith.negf %354 : vector<2x64xf32>
    %356 = math.exp %355 : vector<2x64xf32>
    %cst_50 = arith.constant 1.000000e+00 : f32
    %357 = vector.broadcast %cst_50 : f32 to vector<2x64xf32>
    %358 = arith.addf %357, %356 : vector<2x64xf32>
    %359 = arith.divf %357, %358 : vector<2x64xf32>
    %360 = vector.extract_strided_slice %359 {offsets = [0, 0], sizes = [2, 32], strides = [1, 1]} : vector<2x64xf32> to vector<2x32xf32>
    %361 = vector.extract_strided_slice %359 {offsets = [0, 32], sizes = [2, 32], strides = [1, 1]} : vector<2x64xf32> to vector<2x32xf32>
    %362 = vector.extract_strided_slice %351 {offsets = [0, 64], sizes = [2, 32], strides = [1, 1]} : vector<2x96xf32> to vector<2x32xf32>
    %363 = vector.extract_strided_slice %349 {offsets = [0, 64], sizes = [2, 32], strides = [1, 1]} : vector<2x96xf32> to vector<2x32xf32>
    %364 = vector.broadcast %5 : vector<1x32xf32> to vector<2x32xf32>
    %365 = arith.addf %363, %364 : vector<2x32xf32>
    %366 = arith.mulf %360, %365 : vector<2x32xf32>
    %367 = arith.addf %362, %366 : vector<2x32xf32>
    %368 = math.tanh %367 : vector<2x32xf32>
    %cst_51 = arith.constant 1.000000e+00 : f32
    %369 = vector.broadcast %cst_51 : f32 to vector<2x32xf32>
    %370 = arith.subf %369, %361 : vector<2x32xf32>
    %371 = arith.mulf %370, %368 : vector<2x32xf32>
    %372 = arith.mulf %361, %347 : vector<2x32xf32>
    %373 = arith.addf %371, %372 : vector<2x32xf32>
    %374 = arith.truncf %373 : vector<2x32xf32> to vector<2x32xbf16>
    %cst_52 = arith.constant dense<0.000000e+00> : vector<2x96xf32>
    %375 = tpu.matmul %374, %3, %cst_52 {dimension_numbers = #tpu.dot_dimension_numbers<[1], [0], [0], [1], [0, 0, 1, 1], [], []>} : vector<2x32xbf16>, vector<32x96xbf16>, vector<2x96xf32> -> vector<2x96xf32>
    %376 = vector.extract_strided_slice %9 {offsets = [0, 14, 0], sizes = [2, 1, 96], strides = [1, 1, 1]} : vector<2x16x96xf32> to vector<2x1x96xf32>
    %377 = vector.shape_cast %376 : vector<2x1x96xf32> to vector<2x96xf32>
    %378 = vector.extract_strided_slice %377 {offsets = [0, 0], sizes = [2, 64], strides = [1, 1]} : vector<2x96xf32> to vector<2x64xf32>
    %379 = vector.extract_strided_slice %375 {offsets = [0, 0], sizes = [2, 64], strides = [1, 1]} : vector<2x96xf32> to vector<2x64xf32>
    %380 = arith.addf %378, %379 : vector<2x64xf32>
    %381 = arith.negf %380 : vector<2x64xf32>
    %382 = math.exp %381 : vector<2x64xf32>
    %cst_53 = arith.constant 1.000000e+00 : f32
    %383 = vector.broadcast %cst_53 : f32 to vector<2x64xf32>
    %384 = arith.addf %383, %382 : vector<2x64xf32>
    %385 = arith.divf %383, %384 : vector<2x64xf32>
    %386 = vector.extract_strided_slice %385 {offsets = [0, 0], sizes = [2, 32], strides = [1, 1]} : vector<2x64xf32> to vector<2x32xf32>
    %387 = vector.extract_strided_slice %385 {offsets = [0, 32], sizes = [2, 32], strides = [1, 1]} : vector<2x64xf32> to vector<2x32xf32>
    %388 = vector.extract_strided_slice %377 {offsets = [0, 64], sizes = [2, 32], strides = [1, 1]} : vector<2x96xf32> to vector<2x32xf32>
    %389 = vector.extract_strided_slice %375 {offsets = [0, 64], sizes = [2, 32], strides = [1, 1]} : vector<2x96xf32> to vector<2x32xf32>
    %390 = vector.broadcast %5 : vector<1x32xf32> to vector<2x32xf32>
    %391 = arith.addf %389, %390 : vector<2x32xf32>
    %392 = arith.mulf %386, %391 : vector<2x32xf32>
    %393 = arith.addf %388, %392 : vector<2x32xf32>
    %394 = math.tanh %393 : vector<2x32xf32>
    %cst_54 = arith.constant 1.000000e+00 : f32
    %395 = vector.broadcast %cst_54 : f32 to vector<2x32xf32>
    %396 = arith.subf %395, %387 : vector<2x32xf32>
    %397 = arith.mulf %396, %394 : vector<2x32xf32>
    %398 = arith.mulf %387, %373 : vector<2x32xf32>
    %399 = arith.addf %397, %398 : vector<2x32xf32>
    %400 = arith.truncf %399 : vector<2x32xf32> to vector<2x32xbf16>
    %cst_55 = arith.constant dense<0.000000e+00> : vector<2x96xf32>
    %401 = tpu.matmul %400, %3, %cst_55 {dimension_numbers = #tpu.dot_dimension_numbers<[1], [0], [0], [1], [0, 0, 1, 1], [], []>} : vector<2x32xbf16>, vector<32x96xbf16>, vector<2x96xf32> -> vector<2x96xf32>
    %402 = vector.extract_strided_slice %9 {offsets = [0, 15, 0], sizes = [2, 1, 96], strides = [1, 1, 1]} : vector<2x16x96xf32> to vector<2x1x96xf32>
    %403 = vector.shape_cast %402 : vector<2x1x96xf32> to vector<2x96xf32>
    %404 = vector.extract_strided_slice %403 {offsets = [0, 0], sizes = [2, 64], strides = [1, 1]} : vector<2x96xf32> to vector<2x64xf32>
    %405 = vector.extract_strided_slice %401 {offsets = [0, 0], sizes = [2, 64], strides = [1, 1]} : vector<2x96xf32> to vector<2x64xf32>
    %406 = arith.addf %404, %405 : vector<2x64xf32>
    %407 = arith.negf %406 : vector<2x64xf32>
    %408 = math.exp %407 : vector<2x64xf32>
    %cst_56 = arith.constant 1.000000e+00 : f32
    %409 = vector.broadcast %cst_56 : f32 to vector<2x64xf32>
    %410 = arith.addf %409, %408 : vector<2x64xf32>
    %411 = arith.divf %409, %410 : vector<2x64xf32>
    %412 = vector.extract_strided_slice %411 {offsets = [0, 0], sizes = [2, 32], strides = [1, 1]} : vector<2x64xf32> to vector<2x32xf32>
    %413 = vector.extract_strided_slice %411 {offsets = [0, 32], sizes = [2, 32], strides = [1, 1]} : vector<2x64xf32> to vector<2x32xf32>
    %414 = vector.extract_strided_slice %403 {offsets = [0, 64], sizes = [2, 32], strides = [1, 1]} : vector<2x96xf32> to vector<2x32xf32>
    %415 = vector.extract_strided_slice %401 {offsets = [0, 64], sizes = [2, 32], strides = [1, 1]} : vector<2x96xf32> to vector<2x32xf32>
    %416 = vector.broadcast %5 : vector<1x32xf32> to vector<2x32xf32>
    %417 = arith.addf %415, %416 : vector<2x32xf32>
    %418 = arith.mulf %412, %417 : vector<2x32xf32>
    %419 = arith.addf %414, %418 : vector<2x32xf32>
    %420 = math.tanh %419 : vector<2x32xf32>
    %cst_57 = arith.constant 1.000000e+00 : f32
    %421 = vector.broadcast %cst_57 : f32 to vector<2x32xf32>
    %422 = arith.subf %421, %413 : vector<2x32xf32>
    %423 = arith.mulf %422, %420 : vector<2x32xf32>
    %424 = arith.mulf %413, %399 : vector<2x32xf32>
    %425 = arith.addf %423, %424 : vector<2x32xf32>
    %426 = vector.shape_cast %35 : vector<2x32xf32> to vector<2x1x32xf32>
    %427 = vector.shape_cast %61 : vector<2x32xf32> to vector<2x1x32xf32>
    %428 = vector.shape_cast %87 : vector<2x32xf32> to vector<2x1x32xf32>
    %429 = vector.shape_cast %113 : vector<2x32xf32> to vector<2x1x32xf32>
    %430 = vector.shape_cast %139 : vector<2x32xf32> to vector<2x1x32xf32>
    %431 = vector.shape_cast %165 : vector<2x32xf32> to vector<2x1x32xf32>
    %432 = vector.shape_cast %191 : vector<2x32xf32> to vector<2x1x32xf32>
    %433 = vector.shape_cast %217 : vector<2x32xf32> to vector<2x1x32xf32>
    %434 = vector.shape_cast %243 : vector<2x32xf32> to vector<2x1x32xf32>
    %435 = vector.shape_cast %269 : vector<2x32xf32> to vector<2x1x32xf32>
    %436 = vector.shape_cast %295 : vector<2x32xf32> to vector<2x1x32xf32>
    %437 = vector.shape_cast %321 : vector<2x32xf32> to vector<2x1x32xf32>
    %438 = vector.shape_cast %347 : vector<2x32xf32> to vector<2x1x32xf32>
    %439 = vector.shape_cast %373 : vector<2x32xf32> to vector<2x1x32xf32>
    %440 = vector.shape_cast %399 : vector<2x32xf32> to vector<2x1x32xf32>
    %441 = vector.shape_cast %425 : vector<2x32xf32> to vector<2x1x32xf32>
    %442 = tpu.concatenate %426, %427, %428, %429, %430, %431, %432, %433, %434, %435, %436, %437, %438, %439, %440, %441 in 1 : vector<2x1x32xf32>, vector<2x1x32xf32>, vector<2x1x32xf32>, vector<2x1x32xf32>, vector<2x1x32xf32>, vector<2x1x32xf32>, vector<2x1x32xf32>, vector<2x1x32xf32>, vector<2x1x32xf32>, vector<2x1x32xf32>, vector<2x1x32xf32>, vector<2x1x32xf32>, vector<2x1x32xf32>, vector<2x1x32xf32>, vector<2x1x32xf32>, vector<2x1x32xf32> -> vector<2x16x32xf32>
    %c0_58 = arith.constant 0 : index
    %c0_59 = arith.constant 0 : index
    %443 = vector.load %arg1[%c0_58, %c0_59] : memref<16x40xbf16, #tpu.memory_space<vmem>>, vector<16x40xbf16>
    %c0_60 = arith.constant 0 : index
    %c0_61 = arith.constant 0 : index
    %444 = vector.load %arg6[%c0_60, %c0_61] : memref<40x96xbf16, #tpu.memory_space<vmem>>, vector<40x96xbf16>
    %c0_62 = arith.constant 0 : index
    %c0_63 = arith.constant 0 : index
    %445 = vector.load %arg7[%c0_62, %c0_63] : memref<32x96xbf16, #tpu.memory_space<vmem>>, vector<32x96xbf16>
    %c0_64 = arith.constant 0 : index
    %c0_65 = arith.constant 0 : index
    %446 = vector.load %arg8[%c0_64, %c0_65] : memref<1x96xf32, #tpu.memory_space<vmem>>, vector<1x96xf32>
    %c0_66 = arith.constant 0 : index
    %c0_67 = arith.constant 0 : index
    %447 = vector.load %arg9[%c0_66, %c0_67] : memref<1x32xf32, #tpu.memory_space<vmem>>, vector<1x32xf32>
    %cst_68 = arith.constant dense<0.000000e+00> : vector<16x96xf32>
    %448 = tpu.matmul %443, %444, %cst_68 {dimension_numbers = #tpu.dot_dimension_numbers<[1], [0], [0], [1], [0, 0, 1, 1], [], []>} : vector<16x40xbf16>, vector<40x96xbf16>, vector<16x96xf32> -> vector<16x96xf32>
    %449 = vector.broadcast %446 : vector<1x96xf32> to vector<16x96xf32>
    %450 = arith.addf %448, %449 : vector<16x96xf32>
    %451 = vector.shape_cast %450 : vector<16x96xf32> to vector<2x8x96xf32>
    %452 = arith.truncf %425 : vector<2x32xf32> to vector<2x32xbf16>
    %cst_69 = arith.constant dense<0.000000e+00> : vector<2x96xf32>
    %453 = tpu.matmul %452, %445, %cst_69 {dimension_numbers = #tpu.dot_dimension_numbers<[1], [0], [0], [1], [0, 0, 1, 1], [], []>} : vector<2x32xbf16>, vector<32x96xbf16>, vector<2x96xf32> -> vector<2x96xf32>
    %454 = vector.extract_strided_slice %451 {offsets = [0, 0, 0], sizes = [2, 1, 96], strides = [1, 1, 1]} : vector<2x8x96xf32> to vector<2x1x96xf32>
    %455 = vector.shape_cast %454 : vector<2x1x96xf32> to vector<2x96xf32>
    %456 = vector.extract_strided_slice %455 {offsets = [0, 0], sizes = [2, 64], strides = [1, 1]} : vector<2x96xf32> to vector<2x64xf32>
    %457 = vector.extract_strided_slice %453 {offsets = [0, 0], sizes = [2, 64], strides = [1, 1]} : vector<2x96xf32> to vector<2x64xf32>
    %458 = arith.addf %456, %457 : vector<2x64xf32>
    %459 = arith.negf %458 : vector<2x64xf32>
    %460 = math.exp %459 : vector<2x64xf32>
    %cst_70 = arith.constant 1.000000e+00 : f32
    %461 = vector.broadcast %cst_70 : f32 to vector<2x64xf32>
    %462 = arith.addf %461, %460 : vector<2x64xf32>
    %463 = arith.divf %461, %462 : vector<2x64xf32>
    %464 = vector.extract_strided_slice %463 {offsets = [0, 0], sizes = [2, 32], strides = [1, 1]} : vector<2x64xf32> to vector<2x32xf32>
    %465 = vector.extract_strided_slice %463 {offsets = [0, 32], sizes = [2, 32], strides = [1, 1]} : vector<2x64xf32> to vector<2x32xf32>
    %466 = vector.extract_strided_slice %455 {offsets = [0, 64], sizes = [2, 32], strides = [1, 1]} : vector<2x96xf32> to vector<2x32xf32>
    %467 = vector.extract_strided_slice %453 {offsets = [0, 64], sizes = [2, 32], strides = [1, 1]} : vector<2x96xf32> to vector<2x32xf32>
    %468 = vector.broadcast %447 : vector<1x32xf32> to vector<2x32xf32>
    %469 = arith.addf %467, %468 : vector<2x32xf32>
    %470 = arith.mulf %464, %469 : vector<2x32xf32>
    %471 = arith.addf %466, %470 : vector<2x32xf32>
    %472 = math.tanh %471 : vector<2x32xf32>
    %cst_71 = arith.constant 1.000000e+00 : f32
    %473 = vector.broadcast %cst_71 : f32 to vector<2x32xf32>
    %474 = arith.subf %473, %465 : vector<2x32xf32>
    %475 = arith.mulf %474, %472 : vector<2x32xf32>
    %476 = arith.mulf %465, %425 : vector<2x32xf32>
    %477 = arith.addf %475, %476 : vector<2x32xf32>
    %478 = arith.truncf %477 : vector<2x32xf32> to vector<2x32xbf16>
    %cst_72 = arith.constant dense<0.000000e+00> : vector<2x96xf32>
    %479 = tpu.matmul %478, %445, %cst_72 {dimension_numbers = #tpu.dot_dimension_numbers<[1], [0], [0], [1], [0, 0, 1, 1], [], []>} : vector<2x32xbf16>, vector<32x96xbf16>, vector<2x96xf32> -> vector<2x96xf32>
    %480 = vector.extract_strided_slice %451 {offsets = [0, 1, 0], sizes = [2, 1, 96], strides = [1, 1, 1]} : vector<2x8x96xf32> to vector<2x1x96xf32>
    %481 = vector.shape_cast %480 : vector<2x1x96xf32> to vector<2x96xf32>
    %482 = vector.extract_strided_slice %481 {offsets = [0, 0], sizes = [2, 64], strides = [1, 1]} : vector<2x96xf32> to vector<2x64xf32>
    %483 = vector.extract_strided_slice %479 {offsets = [0, 0], sizes = [2, 64], strides = [1, 1]} : vector<2x96xf32> to vector<2x64xf32>
    %484 = arith.addf %482, %483 : vector<2x64xf32>
    %485 = arith.negf %484 : vector<2x64xf32>
    %486 = math.exp %485 : vector<2x64xf32>
    %cst_73 = arith.constant 1.000000e+00 : f32
    %487 = vector.broadcast %cst_73 : f32 to vector<2x64xf32>
    %488 = arith.addf %487, %486 : vector<2x64xf32>
    %489 = arith.divf %487, %488 : vector<2x64xf32>
    %490 = vector.extract_strided_slice %489 {offsets = [0, 0], sizes = [2, 32], strides = [1, 1]} : vector<2x64xf32> to vector<2x32xf32>
    %491 = vector.extract_strided_slice %489 {offsets = [0, 32], sizes = [2, 32], strides = [1, 1]} : vector<2x64xf32> to vector<2x32xf32>
    %492 = vector.extract_strided_slice %481 {offsets = [0, 64], sizes = [2, 32], strides = [1, 1]} : vector<2x96xf32> to vector<2x32xf32>
    %493 = vector.extract_strided_slice %479 {offsets = [0, 64], sizes = [2, 32], strides = [1, 1]} : vector<2x96xf32> to vector<2x32xf32>
    %494 = vector.broadcast %447 : vector<1x32xf32> to vector<2x32xf32>
    %495 = arith.addf %493, %494 : vector<2x32xf32>
    %496 = arith.mulf %490, %495 : vector<2x32xf32>
    %497 = arith.addf %492, %496 : vector<2x32xf32>
    %498 = math.tanh %497 : vector<2x32xf32>
    %cst_74 = arith.constant 1.000000e+00 : f32
    %499 = vector.broadcast %cst_74 : f32 to vector<2x32xf32>
    %500 = arith.subf %499, %491 : vector<2x32xf32>
    %501 = arith.mulf %500, %498 : vector<2x32xf32>
    %502 = arith.mulf %491, %477 : vector<2x32xf32>
    %503 = arith.addf %501, %502 : vector<2x32xf32>
    %504 = arith.truncf %503 : vector<2x32xf32> to vector<2x32xbf16>
    %cst_75 = arith.constant dense<0.000000e+00> : vector<2x96xf32>
    %505 = tpu.matmul %504, %445, %cst_75 {dimension_numbers = #tpu.dot_dimension_numbers<[1], [0], [0], [1], [0, 0, 1, 1], [], []>} : vector<2x32xbf16>, vector<32x96xbf16>, vector<2x96xf32> -> vector<2x96xf32>
    %506 = vector.extract_strided_slice %451 {offsets = [0, 2, 0], sizes = [2, 1, 96], strides = [1, 1, 1]} : vector<2x8x96xf32> to vector<2x1x96xf32>
    %507 = vector.shape_cast %506 : vector<2x1x96xf32> to vector<2x96xf32>
    %508 = vector.extract_strided_slice %507 {offsets = [0, 0], sizes = [2, 64], strides = [1, 1]} : vector<2x96xf32> to vector<2x64xf32>
    %509 = vector.extract_strided_slice %505 {offsets = [0, 0], sizes = [2, 64], strides = [1, 1]} : vector<2x96xf32> to vector<2x64xf32>
    %510 = arith.addf %508, %509 : vector<2x64xf32>
    %511 = arith.negf %510 : vector<2x64xf32>
    %512 = math.exp %511 : vector<2x64xf32>
    %cst_76 = arith.constant 1.000000e+00 : f32
    %513 = vector.broadcast %cst_76 : f32 to vector<2x64xf32>
    %514 = arith.addf %513, %512 : vector<2x64xf32>
    %515 = arith.divf %513, %514 : vector<2x64xf32>
    %516 = vector.extract_strided_slice %515 {offsets = [0, 0], sizes = [2, 32], strides = [1, 1]} : vector<2x64xf32> to vector<2x32xf32>
    %517 = vector.extract_strided_slice %515 {offsets = [0, 32], sizes = [2, 32], strides = [1, 1]} : vector<2x64xf32> to vector<2x32xf32>
    %518 = vector.extract_strided_slice %507 {offsets = [0, 64], sizes = [2, 32], strides = [1, 1]} : vector<2x96xf32> to vector<2x32xf32>
    %519 = vector.extract_strided_slice %505 {offsets = [0, 64], sizes = [2, 32], strides = [1, 1]} : vector<2x96xf32> to vector<2x32xf32>
    %520 = vector.broadcast %447 : vector<1x32xf32> to vector<2x32xf32>
    %521 = arith.addf %519, %520 : vector<2x32xf32>
    %522 = arith.mulf %516, %521 : vector<2x32xf32>
    %523 = arith.addf %518, %522 : vector<2x32xf32>
    %524 = math.tanh %523 : vector<2x32xf32>
    %cst_77 = arith.constant 1.000000e+00 : f32
    %525 = vector.broadcast %cst_77 : f32 to vector<2x32xf32>
    %526 = arith.subf %525, %517 : vector<2x32xf32>
    %527 = arith.mulf %526, %524 : vector<2x32xf32>
    %528 = arith.mulf %517, %503 : vector<2x32xf32>
    %529 = arith.addf %527, %528 : vector<2x32xf32>
    %530 = arith.truncf %529 : vector<2x32xf32> to vector<2x32xbf16>
    %cst_78 = arith.constant dense<0.000000e+00> : vector<2x96xf32>
    %531 = tpu.matmul %530, %445, %cst_78 {dimension_numbers = #tpu.dot_dimension_numbers<[1], [0], [0], [1], [0, 0, 1, 1], [], []>} : vector<2x32xbf16>, vector<32x96xbf16>, vector<2x96xf32> -> vector<2x96xf32>
    %532 = vector.extract_strided_slice %451 {offsets = [0, 3, 0], sizes = [2, 1, 96], strides = [1, 1, 1]} : vector<2x8x96xf32> to vector<2x1x96xf32>
    %533 = vector.shape_cast %532 : vector<2x1x96xf32> to vector<2x96xf32>
    %534 = vector.extract_strided_slice %533 {offsets = [0, 0], sizes = [2, 64], strides = [1, 1]} : vector<2x96xf32> to vector<2x64xf32>
    %535 = vector.extract_strided_slice %531 {offsets = [0, 0], sizes = [2, 64], strides = [1, 1]} : vector<2x96xf32> to vector<2x64xf32>
    %536 = arith.addf %534, %535 : vector<2x64xf32>
    %537 = arith.negf %536 : vector<2x64xf32>
    %538 = math.exp %537 : vector<2x64xf32>
    %cst_79 = arith.constant 1.000000e+00 : f32
    %539 = vector.broadcast %cst_79 : f32 to vector<2x64xf32>
    %540 = arith.addf %539, %538 : vector<2x64xf32>
    %541 = arith.divf %539, %540 : vector<2x64xf32>
    %542 = vector.extract_strided_slice %541 {offsets = [0, 0], sizes = [2, 32], strides = [1, 1]} : vector<2x64xf32> to vector<2x32xf32>
    %543 = vector.extract_strided_slice %541 {offsets = [0, 32], sizes = [2, 32], strides = [1, 1]} : vector<2x64xf32> to vector<2x32xf32>
    %544 = vector.extract_strided_slice %533 {offsets = [0, 64], sizes = [2, 32], strides = [1, 1]} : vector<2x96xf32> to vector<2x32xf32>
    %545 = vector.extract_strided_slice %531 {offsets = [0, 64], sizes = [2, 32], strides = [1, 1]} : vector<2x96xf32> to vector<2x32xf32>
    %546 = vector.broadcast %447 : vector<1x32xf32> to vector<2x32xf32>
    %547 = arith.addf %545, %546 : vector<2x32xf32>
    %548 = arith.mulf %542, %547 : vector<2x32xf32>
    %549 = arith.addf %544, %548 : vector<2x32xf32>
    %550 = math.tanh %549 : vector<2x32xf32>
    %cst_80 = arith.constant 1.000000e+00 : f32
    %551 = vector.broadcast %cst_80 : f32 to vector<2x32xf32>
    %552 = arith.subf %551, %543 : vector<2x32xf32>
    %553 = arith.mulf %552, %550 : vector<2x32xf32>
    %554 = arith.mulf %543, %529 : vector<2x32xf32>
    %555 = arith.addf %553, %554 : vector<2x32xf32>
    %556 = arith.truncf %555 : vector<2x32xf32> to vector<2x32xbf16>
    %cst_81 = arith.constant dense<0.000000e+00> : vector<2x96xf32>
    %557 = tpu.matmul %556, %445, %cst_81 {dimension_numbers = #tpu.dot_dimension_numbers<[1], [0], [0], [1], [0, 0, 1, 1], [], []>} : vector<2x32xbf16>, vector<32x96xbf16>, vector<2x96xf32> -> vector<2x96xf32>
    %558 = vector.extract_strided_slice %451 {offsets = [0, 4, 0], sizes = [2, 1, 96], strides = [1, 1, 1]} : vector<2x8x96xf32> to vector<2x1x96xf32>
    %559 = vector.shape_cast %558 : vector<2x1x96xf32> to vector<2x96xf32>
    %560 = vector.extract_strided_slice %559 {offsets = [0, 0], sizes = [2, 64], strides = [1, 1]} : vector<2x96xf32> to vector<2x64xf32>
    %561 = vector.extract_strided_slice %557 {offsets = [0, 0], sizes = [2, 64], strides = [1, 1]} : vector<2x96xf32> to vector<2x64xf32>
    %562 = arith.addf %560, %561 : vector<2x64xf32>
    %563 = arith.negf %562 : vector<2x64xf32>
    %564 = math.exp %563 : vector<2x64xf32>
    %cst_82 = arith.constant 1.000000e+00 : f32
    %565 = vector.broadcast %cst_82 : f32 to vector<2x64xf32>
    %566 = arith.addf %565, %564 : vector<2x64xf32>
    %567 = arith.divf %565, %566 : vector<2x64xf32>
    %568 = vector.extract_strided_slice %567 {offsets = [0, 0], sizes = [2, 32], strides = [1, 1]} : vector<2x64xf32> to vector<2x32xf32>
    %569 = vector.extract_strided_slice %567 {offsets = [0, 32], sizes = [2, 32], strides = [1, 1]} : vector<2x64xf32> to vector<2x32xf32>
    %570 = vector.extract_strided_slice %559 {offsets = [0, 64], sizes = [2, 32], strides = [1, 1]} : vector<2x96xf32> to vector<2x32xf32>
    %571 = vector.extract_strided_slice %557 {offsets = [0, 64], sizes = [2, 32], strides = [1, 1]} : vector<2x96xf32> to vector<2x32xf32>
    %572 = vector.broadcast %447 : vector<1x32xf32> to vector<2x32xf32>
    %573 = arith.addf %571, %572 : vector<2x32xf32>
    %574 = arith.mulf %568, %573 : vector<2x32xf32>
    %575 = arith.addf %570, %574 : vector<2x32xf32>
    %576 = math.tanh %575 : vector<2x32xf32>
    %cst_83 = arith.constant 1.000000e+00 : f32
    %577 = vector.broadcast %cst_83 : f32 to vector<2x32xf32>
    %578 = arith.subf %577, %569 : vector<2x32xf32>
    %579 = arith.mulf %578, %576 : vector<2x32xf32>
    %580 = arith.mulf %569, %555 : vector<2x32xf32>
    %581 = arith.addf %579, %580 : vector<2x32xf32>
    %582 = arith.truncf %581 : vector<2x32xf32> to vector<2x32xbf16>
    %cst_84 = arith.constant dense<0.000000e+00> : vector<2x96xf32>
    %583 = tpu.matmul %582, %445, %cst_84 {dimension_numbers = #tpu.dot_dimension_numbers<[1], [0], [0], [1], [0, 0, 1, 1], [], []>} : vector<2x32xbf16>, vector<32x96xbf16>, vector<2x96xf32> -> vector<2x96xf32>
    %584 = vector.extract_strided_slice %451 {offsets = [0, 5, 0], sizes = [2, 1, 96], strides = [1, 1, 1]} : vector<2x8x96xf32> to vector<2x1x96xf32>
    %585 = vector.shape_cast %584 : vector<2x1x96xf32> to vector<2x96xf32>
    %586 = vector.extract_strided_slice %585 {offsets = [0, 0], sizes = [2, 64], strides = [1, 1]} : vector<2x96xf32> to vector<2x64xf32>
    %587 = vector.extract_strided_slice %583 {offsets = [0, 0], sizes = [2, 64], strides = [1, 1]} : vector<2x96xf32> to vector<2x64xf32>
    %588 = arith.addf %586, %587 : vector<2x64xf32>
    %589 = arith.negf %588 : vector<2x64xf32>
    %590 = math.exp %589 : vector<2x64xf32>
    %cst_85 = arith.constant 1.000000e+00 : f32
    %591 = vector.broadcast %cst_85 : f32 to vector<2x64xf32>
    %592 = arith.addf %591, %590 : vector<2x64xf32>
    %593 = arith.divf %591, %592 : vector<2x64xf32>
    %594 = vector.extract_strided_slice %593 {offsets = [0, 0], sizes = [2, 32], strides = [1, 1]} : vector<2x64xf32> to vector<2x32xf32>
    %595 = vector.extract_strided_slice %593 {offsets = [0, 32], sizes = [2, 32], strides = [1, 1]} : vector<2x64xf32> to vector<2x32xf32>
    %596 = vector.extract_strided_slice %585 {offsets = [0, 64], sizes = [2, 32], strides = [1, 1]} : vector<2x96xf32> to vector<2x32xf32>
    %597 = vector.extract_strided_slice %583 {offsets = [0, 64], sizes = [2, 32], strides = [1, 1]} : vector<2x96xf32> to vector<2x32xf32>
    %598 = vector.broadcast %447 : vector<1x32xf32> to vector<2x32xf32>
    %599 = arith.addf %597, %598 : vector<2x32xf32>
    %600 = arith.mulf %594, %599 : vector<2x32xf32>
    %601 = arith.addf %596, %600 : vector<2x32xf32>
    %602 = math.tanh %601 : vector<2x32xf32>
    %cst_86 = arith.constant 1.000000e+00 : f32
    %603 = vector.broadcast %cst_86 : f32 to vector<2x32xf32>
    %604 = arith.subf %603, %595 : vector<2x32xf32>
    %605 = arith.mulf %604, %602 : vector<2x32xf32>
    %606 = arith.mulf %595, %581 : vector<2x32xf32>
    %607 = arith.addf %605, %606 : vector<2x32xf32>
    %608 = arith.truncf %607 : vector<2x32xf32> to vector<2x32xbf16>
    %cst_87 = arith.constant dense<0.000000e+00> : vector<2x96xf32>
    %609 = tpu.matmul %608, %445, %cst_87 {dimension_numbers = #tpu.dot_dimension_numbers<[1], [0], [0], [1], [0, 0, 1, 1], [], []>} : vector<2x32xbf16>, vector<32x96xbf16>, vector<2x96xf32> -> vector<2x96xf32>
    %610 = vector.extract_strided_slice %451 {offsets = [0, 6, 0], sizes = [2, 1, 96], strides = [1, 1, 1]} : vector<2x8x96xf32> to vector<2x1x96xf32>
    %611 = vector.shape_cast %610 : vector<2x1x96xf32> to vector<2x96xf32>
    %612 = vector.extract_strided_slice %611 {offsets = [0, 0], sizes = [2, 64], strides = [1, 1]} : vector<2x96xf32> to vector<2x64xf32>
    %613 = vector.extract_strided_slice %609 {offsets = [0, 0], sizes = [2, 64], strides = [1, 1]} : vector<2x96xf32> to vector<2x64xf32>
    %614 = arith.addf %612, %613 : vector<2x64xf32>
    %615 = arith.negf %614 : vector<2x64xf32>
    %616 = math.exp %615 : vector<2x64xf32>
    %cst_88 = arith.constant 1.000000e+00 : f32
    %617 = vector.broadcast %cst_88 : f32 to vector<2x64xf32>
    %618 = arith.addf %617, %616 : vector<2x64xf32>
    %619 = arith.divf %617, %618 : vector<2x64xf32>
    %620 = vector.extract_strided_slice %619 {offsets = [0, 0], sizes = [2, 32], strides = [1, 1]} : vector<2x64xf32> to vector<2x32xf32>
    %621 = vector.extract_strided_slice %619 {offsets = [0, 32], sizes = [2, 32], strides = [1, 1]} : vector<2x64xf32> to vector<2x32xf32>
    %622 = vector.extract_strided_slice %611 {offsets = [0, 64], sizes = [2, 32], strides = [1, 1]} : vector<2x96xf32> to vector<2x32xf32>
    %623 = vector.extract_strided_slice %609 {offsets = [0, 64], sizes = [2, 32], strides = [1, 1]} : vector<2x96xf32> to vector<2x32xf32>
    %624 = vector.broadcast %447 : vector<1x32xf32> to vector<2x32xf32>
    %625 = arith.addf %623, %624 : vector<2x32xf32>
    %626 = arith.mulf %620, %625 : vector<2x32xf32>
    %627 = arith.addf %622, %626 : vector<2x32xf32>
    %628 = math.tanh %627 : vector<2x32xf32>
    %cst_89 = arith.constant 1.000000e+00 : f32
    %629 = vector.broadcast %cst_89 : f32 to vector<2x32xf32>
    %630 = arith.subf %629, %621 : vector<2x32xf32>
    %631 = arith.mulf %630, %628 : vector<2x32xf32>
    %632 = arith.mulf %621, %607 : vector<2x32xf32>
    %633 = arith.addf %631, %632 : vector<2x32xf32>
    %634 = arith.truncf %633 : vector<2x32xf32> to vector<2x32xbf16>
    %cst_90 = arith.constant dense<0.000000e+00> : vector<2x96xf32>
    %635 = tpu.matmul %634, %445, %cst_90 {dimension_numbers = #tpu.dot_dimension_numbers<[1], [0], [0], [1], [0, 0, 1, 1], [], []>} : vector<2x32xbf16>, vector<32x96xbf16>, vector<2x96xf32> -> vector<2x96xf32>
    %636 = vector.extract_strided_slice %451 {offsets = [0, 7, 0], sizes = [2, 1, 96], strides = [1, 1, 1]} : vector<2x8x96xf32> to vector<2x1x96xf32>
    %637 = vector.shape_cast %636 : vector<2x1x96xf32> to vector<2x96xf32>
    %638 = vector.extract_strided_slice %637 {offsets = [0, 0], sizes = [2, 64], strides = [1, 1]} : vector<2x96xf32> to vector<2x64xf32>
    %639 = vector.extract_strided_slice %635 {offsets = [0, 0], sizes = [2, 64], strides = [1, 1]} : vector<2x96xf32> to vector<2x64xf32>
    %640 = arith.addf %638, %639 : vector<2x64xf32>
    %641 = arith.negf %640 : vector<2x64xf32>
    %642 = math.exp %641 : vector<2x64xf32>
    %cst_91 = arith.constant 1.000000e+00 : f32
    %643 = vector.broadcast %cst_91 : f32 to vector<2x64xf32>
    %644 = arith.addf %643, %642 : vector<2x64xf32>
    %645 = arith.divf %643, %644 : vector<2x64xf32>
    %646 = vector.extract_strided_slice %645 {offsets = [0, 0], sizes = [2, 32], strides = [1, 1]} : vector<2x64xf32> to vector<2x32xf32>
    %647 = vector.extract_strided_slice %645 {offsets = [0, 32], sizes = [2, 32], strides = [1, 1]} : vector<2x64xf32> to vector<2x32xf32>
    %648 = vector.extract_strided_slice %637 {offsets = [0, 64], sizes = [2, 32], strides = [1, 1]} : vector<2x96xf32> to vector<2x32xf32>
    %649 = vector.extract_strided_slice %635 {offsets = [0, 64], sizes = [2, 32], strides = [1, 1]} : vector<2x96xf32> to vector<2x32xf32>
    %650 = vector.broadcast %447 : vector<1x32xf32> to vector<2x32xf32>
    %651 = arith.addf %649, %650 : vector<2x32xf32>
    %652 = arith.mulf %646, %651 : vector<2x32xf32>
    %653 = arith.addf %648, %652 : vector<2x32xf32>
    %654 = math.tanh %653 : vector<2x32xf32>
    %cst_92 = arith.constant 1.000000e+00 : f32
    %655 = vector.broadcast %cst_92 : f32 to vector<2x32xf32>
    %656 = arith.subf %655, %647 : vector<2x32xf32>
    %657 = arith.mulf %656, %654 : vector<2x32xf32>
    %658 = arith.mulf %647, %633 : vector<2x32xf32>
    %659 = arith.addf %657, %658 : vector<2x32xf32>
    %660 = vector.shape_cast %477 : vector<2x32xf32> to vector<2x1x32xf32>
    %661 = vector.shape_cast %503 : vector<2x32xf32> to vector<2x1x32xf32>
    %662 = vector.shape_cast %529 : vector<2x32xf32> to vector<2x1x32xf32>
    %663 = vector.shape_cast %555 : vector<2x32xf32> to vector<2x1x32xf32>
    %664 = vector.shape_cast %581 : vector<2x32xf32> to vector<2x1x32xf32>
    %665 = vector.shape_cast %607 : vector<2x32xf32> to vector<2x1x32xf32>
    %666 = vector.shape_cast %633 : vector<2x32xf32> to vector<2x1x32xf32>
    %667 = vector.shape_cast %659 : vector<2x32xf32> to vector<2x1x32xf32>
    %668 = tpu.concatenate %660, %661, %662, %663, %664, %665, %666, %667 in 1 : vector<2x1x32xf32>, vector<2x1x32xf32>, vector<2x1x32xf32>, vector<2x1x32xf32>, vector<2x1x32xf32>, vector<2x1x32xf32>, vector<2x1x32xf32>, vector<2x1x32xf32> -> vector<2x8x32xf32>
    %669 = vector.extract_strided_slice %442 {offsets = [0, 0, 0], sizes = [1, 16, 32], strides = [1, 1, 1]} : vector<2x16x32xf32> to vector<1x16x32xf32>
    %670 = vector.shape_cast %669 : vector<1x16x32xf32> to vector<16x32xf32>
    %671 = arith.truncf %670 : vector<16x32xf32> to vector<16x32xbf16>
    %672 = vector.extract_strided_slice %668 {offsets = [0, 0, 0], sizes = [1, 8, 32], strides = [1, 1, 1]} : vector<2x8x32xf32> to vector<1x8x32xf32>
    %673 = vector.shape_cast %672 : vector<1x8x32xf32> to vector<8x32xf32>
    %674 = arith.truncf %673 : vector<8x32xf32> to vector<8x32xbf16>
    %cst_93 = arith.constant dense<0.000000e+00> : vector<16x8xf32>
    %675 = tpu.matmul %671, %674, %cst_93 {dimension_numbers = #tpu.dot_dimension_numbers<[1], [1], [0], [0], [0, 0, 1, 0], [], []>} : vector<16x32xbf16>, vector<8x32xbf16>, vector<16x8xf32> -> vector<16x8xf32>
    %cst_94 = arith.constant dense<0xFF800000> : vector<8xf32>
    %676 = vector.multi_reduction <maximumf>, %675, %cst_94 [0] : vector<16x8xf32> to vector<8xf32>
    %677 = vector.shape_cast %676 : vector<8xf32> to vector<1x8xf32>
    %678 = vector.broadcast %677 : vector<1x8xf32> to vector<16x8xf32>
    %679 = arith.subf %675, %678 : vector<16x8xf32>
    %680 = math.exp %679 : vector<16x8xf32>
    %cst_95 = arith.constant dense<0.000000e+00> : vector<8xf32>
    %681 = vector.multi_reduction <add>, %680, %cst_95 [0] : vector<16x8xf32> to vector<8xf32>
    %682 = vector.shape_cast %681 : vector<8xf32> to vector<1x8xf32>
    %683 = tpu.reciprocal %682 : vector<1x8xf32> -> vector<1x8xf32>
    %684 = vector.broadcast %683 : vector<1x8xf32> to vector<16x8xf32>
    %685 = arith.mulf %680, %684 : vector<16x8xf32>
    %686 = arith.truncf %685 : vector<16x8xf32> to vector<16x8xbf16>
    %cst_96 = arith.constant dense<0.000000e+00> : vector<8x32xf32>
    %687 = tpu.matmul %686, %671, %cst_96 {dimension_numbers = #tpu.dot_dimension_numbers<[0], [0], [1], [1], [0, 1, 1, 1], [], []>} : vector<16x8xbf16>, vector<16x32xbf16>, vector<8x32xf32> -> vector<8x32xf32>
    %c0_97 = arith.constant 0 : index
    %c0_98 = arith.constant 0 : index
    %c0_99 = arith.constant 0 : index
    %688 = vector.load %arg13[%c0_97, %c0_98, %c0_99] : memref<2x16x8xf32, #tpu.memory_space<vmem>>, vector<1x16x8xf32>
    %689 = vector.shape_cast %688 : vector<1x16x8xf32> to vector<16x8xf32>
    %690 = vector.shape_cast %685 : vector<16x8xf32> to vector<1x16x8xf32>
    tpu.vector_store %arg13[%c0_97, %c0_98, %c0_99], %690 {strides = array<i32>} : memref<2x16x8xf32, #tpu.memory_space<vmem>>, vector<1x16x8xf32>,
    %691 = vector.extract_strided_slice %442 {offsets = [1, 0, 0], sizes = [1, 16, 32], strides = [1, 1, 1]} : vector<2x16x32xf32> to vector<1x16x32xf32>
    %692 = vector.shape_cast %691 : vector<1x16x32xf32> to vector<16x32xf32>
    %693 = arith.truncf %692 : vector<16x32xf32> to vector<16x32xbf16>
    %694 = vector.extract_strided_slice %668 {offsets = [1, 0, 0], sizes = [1, 8, 32], strides = [1, 1, 1]} : vector<2x8x32xf32> to vector<1x8x32xf32>
    %695 = vector.shape_cast %694 : vector<1x8x32xf32> to vector<8x32xf32>
    %696 = arith.truncf %695 : vector<8x32xf32> to vector<8x32xbf16>
    %cst_100 = arith.constant dense<0.000000e+00> : vector<16x8xf32>
    %697 = tpu.matmul %693, %696, %cst_100 {dimension_numbers = #tpu.dot_dimension_numbers<[1], [1], [0], [0], [0, 0, 1, 0], [], []>} : vector<16x32xbf16>, vector<8x32xbf16>, vector<16x8xf32> -> vector<16x8xf32>
    %cst_101 = arith.constant dense<0xFF800000> : vector<8xf32>
    %698 = vector.multi_reduction <maximumf>, %697, %cst_101 [0] : vector<16x8xf32> to vector<8xf32>
    %699 = vector.shape_cast %698 : vector<8xf32> to vector<1x8xf32>
    %700 = vector.broadcast %699 : vector<1x8xf32> to vector<16x8xf32>
    %701 = arith.subf %697, %700 : vector<16x8xf32>
    %702 = math.exp %701 : vector<16x8xf32>
    %cst_102 = arith.constant dense<0.000000e+00> : vector<8xf32>
    %703 = vector.multi_reduction <add>, %702, %cst_102 [0] : vector<16x8xf32> to vector<8xf32>
    %704 = vector.shape_cast %703 : vector<8xf32> to vector<1x8xf32>
    %705 = tpu.reciprocal %704 : vector<1x8xf32> -> vector<1x8xf32>
    %706 = vector.broadcast %705 : vector<1x8xf32> to vector<16x8xf32>
    %707 = arith.mulf %702, %706 : vector<16x8xf32>
    %708 = arith.truncf %707 : vector<16x8xf32> to vector<16x8xbf16>
    %cst_103 = arith.constant dense<0.000000e+00> : vector<8x32xf32>
    %709 = tpu.matmul %708, %693, %cst_103 {dimension_numbers = #tpu.dot_dimension_numbers<[0], [0], [1], [1], [0, 1, 1, 1], [], []>} : vector<16x8xbf16>, vector<16x32xbf16>, vector<8x32xf32> -> vector<8x32xf32>
    %c1 = arith.constant 1 : index
    %c0_104 = arith.constant 0 : index
    %c0_105 = arith.constant 0 : index
    %710 = vector.load %arg13[%c1, %c0_104, %c0_105] : memref<2x16x8xf32, #tpu.memory_space<vmem>>, vector<1x16x8xf32>
    %711 = vector.shape_cast %710 : vector<1x16x8xf32> to vector<16x8xf32>
    %712 = vector.shape_cast %707 : vector<16x8xf32> to vector<1x16x8xf32>
    tpu.vector_store %arg13[%c1, %c0_104, %c0_105], %712 {strides = array<i32>} : memref<2x16x8xf32, #tpu.memory_space<vmem>>, vector<1x16x8xf32>,
    %713 = vector.shape_cast %668 : vector<2x8x32xf32> to vector<16x32xf32>
    %714 = arith.truncf %713 : vector<16x32xf32> to vector<16x32xbf16>
    %715 = tpu.concatenate %687, %709 in 0 : vector<8x32xf32>, vector<8x32xf32> -> vector<16x32xf32>
    %716 = arith.truncf %715 : vector<16x32xf32> to vector<16x32xbf16>
    %c0_106 = arith.constant 0 : index
    %c0_107 = arith.constant 0 : index
    %c0_108 = arith.constant 0 : index
    %717 = vector.load %arg10[%c0_106, %c0_107, %c0_108] : memref<2x32x36xbf16, #tpu.memory_space<vmem>>, vector<1x32x36xbf16>
    %718 = vector.shape_cast %717 : vector<1x32x36xbf16> to vector<32x36xbf16>
    %cst_109 = arith.constant dense<0.000000e+00> : vector<16x36xf32>
    %719 = tpu.matmul %714, %718, %cst_109 {dimension_numbers = #tpu.dot_dimension_numbers<[1], [0], [0], [1], [0, 0, 1, 1], [], []>} : vector<16x32xbf16>, vector<32x36xbf16>, vector<16x36xf32> -> vector<16x36xf32>
    %c1_110 = arith.constant 1 : index
    %c0_111 = arith.constant 0 : index
    %c0_112 = arith.constant 0 : index
    %720 = vector.load %arg10[%c1_110, %c0_111, %c0_112] : memref<2x32x36xbf16, #tpu.memory_space<vmem>>, vector<1x32x36xbf16>
    %721 = vector.shape_cast %720 : vector<1x32x36xbf16> to vector<32x36xbf16>
    %cst_113 = arith.constant dense<0.000000e+00> : vector<16x36xf32>
    %722 = tpu.matmul %716, %721, %cst_113 {dimension_numbers = #tpu.dot_dimension_numbers<[1], [0], [0], [1], [0, 0, 1, 1], [], []>} : vector<16x32xbf16>, vector<32x36xbf16>, vector<16x36xf32> -> vector<16x36xf32>
    %723 = arith.addf %719, %722 : vector<16x36xf32>
    %c0_114 = arith.constant 0 : index
    %c0_115 = arith.constant 0 : index
    %724 = vector.load %arg11[%c0_114, %c0_115] : memref<1x36xf32, #tpu.memory_space<vmem>>, vector<1x36xf32>
    %725 = vector.broadcast %724 : vector<1x36xf32> to vector<16x36xf32>
    %726 = arith.addf %723, %725 : vector<16x36xf32>
    %c0_116 = arith.constant 0 : index
    %c0_117 = arith.constant 0 : index
    %727 = vector.load %arg12[%c0_116, %c0_117] : memref<16x36xf32, #tpu.memory_space<vmem>>, vector<16x36xf32>
    tpu.vector_store %arg12[%c0_116, %c0_117], %726 {strides = array<i32>} : memref<16x36xf32, #tpu.memory_space<vmem>>, vector<16x36xf32>,
    return
  }
}

</mosaic_0001>

<llo_original>
// kernel: attention_seq2seq_forward.1
$region0: #{attention_seq2seq_forward.1}
  #allocation0 [shape = 'u32[]', space=smem, size = 0x4, offset = 0x4, fixed_abs, tag = 'smem constant byte address 0x4 - core index']
  #allocation1 [shape = 'u32[144,128]{1,0:T(1,128)}', space=vmem, size = 0x12000, scoped, tag = 'internal scratch']
  %s0 = inlined_call_operand.vmem [shape: bf16[32,40], index: 0, kind: input, shape index: {}]
  %s1 = inlined_call_operand.vmem [shape: bf16[16,40], index: 1, kind: input, shape index: {}]
  %s2 = inlined_call_operand.vmem [shape: bf16[40,96], index: 2, kind: input, shape index: {}]
  %s3 = inlined_call_operand.vmem [shape: bf16[32,96], index: 3, kind: input, shape index: {}]
  %s4 = inlined_call_operand.vmem [shape: f32[1,96], index: 4, kind: input, shape index: {}]
  %s5 = inlined_call_operand.vmem [shape: f32[1,32], index: 5, kind: input, shape index: {}]
  %s6 = inlined_call_operand.vmem [shape: bf16[40,96], index: 6, kind: input, shape index: {}]
  %s7 = inlined_call_operand.vmem [shape: bf16[32,96], index: 7, kind: input, shape index: {}]
  %s8 = inlined_call_operand.vmem [shape: f32[1,96], index: 8, kind: input, shape index: {}]
  %s9 = inlined_call_operand.vmem [shape: f32[1,32], index: 9, kind: input, shape index: {}]
  %s10 = inlined_call_operand.vmem [shape: bf16[2,32,36], index: 10, kind: input, shape index: {}]
  %s11 = inlined_call_operand.vmem [shape: f32[1,36], index: 11, kind: input, shape index: {}]
  %s12 = inlined_call_operand.hbm [shape: f32[16,36], index: 12, kind: output, shape index: {0}]
  %s13 = inlined_call_operand.vmem [shape: f32[2,16,8], index: 13, kind: output, shape index: {1}]
  %14 = xla_tuple %s12, %s13
  %s15 = sld [smem:[#allocation0]]
  $region66: #{attention_seq2seq_forward.1} parent=0
    _
  %s17 = ssub.s32 1, %s15
  %s18 = scalar_select 0, %s17, %s15
  $region1: #{attention_seq2seq_forward.1} parent=0
    #allocation2 [shape = 'u8[8192]{0}', space=vmem, size = 0x2000, scoped, tag = 'output window, operand 0, single buffered']
    #allocation3 [shape = 's32[1]{0}', space=sflag, size = 0x4, scoped, tag = 'scoped memory for attention_seq2seq_forward.1']
    %19 = vsyncpa [#allocation3], 0
    // Predicated region
    $region2: #{attention_seq2seq_forward.1} parent=1 // pred_check
      _
    $region3: #{attention_seq2seq_forward.1} parent=1 // pred_check_branch
      %21 = sbr.rel (0) target = $region5
    $region4: #{attention_seq2seq_forward.1} parent=1 // pred_region
      _
    $region5: #{attention_seq2seq_forward.1} parent=1 // pred_fallthru
      _
    // Predicated region
    $region6: #{attention_seq2seq_forward.1} parent=1 // pred_check
      _
    $region7: #{attention_seq2seq_forward.1} parent=1 // pred_check_branch
      %23 = sbr.rel (0) target = $region9
    $region8: #{attention_seq2seq_forward.1} parent=1 // pred_region
      _
    $region9: #{attention_seq2seq_forward.1} parent=1 // pred_fallthru
      _
    // Predicated region
    $region10: #{attention_seq2seq_forward.1} parent=1 // pred_check
      _
    $region11: #{attention_seq2seq_forward.1} parent=1 // pred_check_branch
      %25 = sbr.rel (0) target = $region13
    $region12: #{attention_seq2seq_forward.1} parent=1 // pred_region
      _
    $region13: #{attention_seq2seq_forward.1} parent=1 // pred_fallthru
      _
    // Predicated region
    $region14: #{attention_seq2seq_forward.1} parent=1 // pred_check
      _
    $region15: #{attention_seq2seq_forward.1} parent=1 // pred_check_branch
      %27 = sbr.rel (0) target = $region17
    $region16: #{attention_seq2seq_forward.1} parent=1 // pred_region
      _
    $region17: #{attention_seq2seq_forward.1} parent=1 // pred_fallthru
      _
    // Predicated region
    $region18: #{attention_seq2seq_forward.1} parent=1 // pred_check
      _
    $region19: #{attention_seq2seq_forward.1} parent=1 // pred_check_branch
      %29 = sbr.rel (0) target = $region21
    $region20: #{attention_seq2seq_forward.1} parent=1 // pred_region
      _
    $region21: #{attention_seq2seq_forward.1} parent=1 // pred_fallthru
      _
    // Predicated region
    $region22: #{attention_seq2seq_forward.1} parent=1 // pred_check
      _
    $region23: #{attention_seq2seq_forward.1} parent=1 // pred_check_branch
      %31 = sbr.rel (0) target = $region25
    $region24: #{attention_seq2seq_forward.1} parent=1 // pred_region
      _
    $region25: #{attention_seq2seq_forward.1} parent=1 // pred_fallthru
      _
    // Predicated region
    $region26: #{attention_seq2seq_forward.1} parent=1 // pred_check
      _
    $region27: #{attention_seq2seq_forward.1} parent=1 // pred_check_branch
      %33 = sbr.rel (0) target = $region29
    $region28: #{attention_seq2seq_forward.1} parent=1 // pred_region
      _
    $region29: #{attention_seq2seq_forward.1} parent=1 // pred_fallthru
      _
    // Predicated region
    $region30: #{attention_seq2seq_forward.1} parent=1 // pred_check
      _
    $region31: #{attention_seq2seq_forward.1} parent=1 // pred_check_branch
      %35 = sbr.rel (0) target = $region33
    $region32: #{attention_seq2seq_forward.1} parent=1 // pred_region
      _
    $region33: #{attention_seq2seq_forward.1} parent=1 // pred_fallthru
      _
    // Predicated region
    $region34: #{attention_seq2seq_forward.1} parent=1 // pred_check
      _
    $region35: #{attention_seq2seq_forward.1} parent=1 // pred_check_branch
      %37 = sbr.rel (0) target = $region37
    $region36: #{attention_seq2seq_forward.1} parent=1 // pred_region
      _
    $region37: #{attention_seq2seq_forward.1} parent=1 // pred_fallthru
      _
    // Predicated region
    $region38: #{attention_seq2seq_forward.1} parent=1 // pred_check
      _
    $region39: #{attention_seq2seq_forward.1} parent=1 // pred_check_branch
      %39 = sbr.rel (0) target = $region41
    $region40: #{attention_seq2seq_forward.1} parent=1 // pred_region
      _
    $region41: #{attention_seq2seq_forward.1} parent=1 // pred_fallthru
      _
    // Predicated region
    $region42: #{attention_seq2seq_forward.1} parent=1 // pred_check
      _
    $region43: #{attention_seq2seq_forward.1} parent=1 // pred_check_branch
      %41 = sbr.rel (0) target = $region45
    $region44: #{attention_seq2seq_forward.1} parent=1 // pred_region
      _
    $region45: #{attention_seq2seq_forward.1} parent=1 // pred_fallthru
      _
    // Predicated region
    $region46: #{attention_seq2seq_forward.1} parent=1 // pred_check
      _
    $region47: #{attention_seq2seq_forward.1} parent=1 // pred_check_branch
      %43 = sbr.rel (0) target = $region49
    $region48: #{attention_seq2seq_forward.1} parent=1 // pred_region
      _
    $region49: #{attention_seq2seq_forward.1} parent=1 // pred_fallthru
      _
    %v45 = vld [vmem:[%s0] sm:$0xf]
    %v46 = vld [vmem:[%s0 + $0x4] sm:$0xf]
    %v47 = vld [vmem:[%s0 + $0x8] sm:$0xf]
    %v48 = vld [vmem:[%s0 + $0xc] sm:$0xf]
    %v49 = vld [vmem:[%s2] sm:$0xf]
    %v50 = vld [vmem:[%s2 + $0x4] sm:$0xf]
    %v51 = vld [vmem:[%s2 + $0x8] sm:$0xf]
    %v52 = vld [vmem:[%s2 + $0xc] sm:$0xf]
    %v53 = vld [vmem:[%s2 + $0x10] sm:$0xf]
    %v54 = vld [vmem:[%s3] sm:$0xf]
    %v55 = vld [vmem:[%s3 + $0x4] sm:$0xf]
    %v56 = vld [vmem:[%s3 + $0x8] sm:$0xf]
    %v57 = vld [vmem:[%s3 + $0xc] sm:$0xf]
    %v58 = vld [vmem:[%s4] sm:$0x1]
    %v59 = vld [vmem:[%s5] sm:$0x1]
    %v61 = vlaneseq
    %v62 = vshrl.u32 %v61, 7
    %v63 = vsub.s32 0, %v62
    %v64 = vrot.slane %v58, %v63
    %v70 = vunpack.c.l.b16 %v45
    %v71 = vunpack.c.l.b16 %v46
    %v72 = vunpack.c.l.b16 %v47
    %v73 = vunpack.c.l.b16 %v48
    %v74 = vpack.c.b16 %v71, %v70
    %v75 = vpack.c.b16 %v73, %v72
    %v81 = vunpack.c.l.b16 %v49
    %v82 = vunpack.c.l.b16 %v50
    %v83 = vunpack.c.l.b16 %v51
    %v84 = vunpack.c.l.b16 %v52
    %v85 = vunpack.c.l.b16 %v53
    %v86 = vpack.c.b16 %v82, %v81
    %v87 = vpack.c.b16 %v84, %v83
    %v88 = vpack.c.b16 %v85, %v85
    %vm91 = vcmask 326656
    %v93 = vsel %vm91, %v74, 0
    %v96 = vsel %vm91, %v75, 0
    %vm98 = vcmask 1043456
    %v100 = vsel %vm98, %v88, 0
    %102 = vmatprep.subr.bf16.mxu0 0
    %103 = vmatpush1.bf16.msra.mxu0 0
    %104 = vmatprep.subr.bf16.mxu0 0
    %105 = vmatpush1.bf16.msra.mxu0 0
    %106 = vmatprep.subr.bf16.mxu0 0
    %107 = vmatpush1.bf16.msra.mxu0 0
    %108 = vmatprep.subr.bf16.mxu0 0
    %109 = vmatpush1.bf16.msra.mxu0 0
    %110 = vmatprep.subr.bf16.mxu0 0
    %111 = vmatpush1.bf16.msra.mxu0 0
    %112 = vmatprep.subr.bf16.mxu0 0
    %113 = vmatpush1.bf16.msra.mxu0 %v100
    %114 = vmatprep.subr.bf16.mxu0 0
    %115 = vmatpush1.bf16.msra.mxu0 %v87
    %116 = vmatprep.subr.bf16.mxu0 0
    %117 = vmatpush1.bf16.msra.mxu0 %v86
    %118 = vmatprep.subr.bf16.mxu0 0
    %119 = vmatpush2.bf16.msra.mxu0 0
    %120 = vmatprep.subr.bf16.mxu0 0
    %121 = vmatpush2.bf16.msra.mxu0 0
    %122 = vmatprep.subr.bf16.mxu0 0
    %123 = vmatpush2.bf16.msra.mxu0 0
    %124 = vmatprep.subr.bf16.mxu0 0
    %125 = vmatpush2.bf16.msra.mxu0 0
    %126 = vmatprep.subr.bf16.mxu0 0
    %127 = vmatpush2.bf16.msra.mxu0 0
    %128 = vmatprep.subr.bf16.mxu0 0
    %129 = vmatpush2.bf16.msra.mxu0 0
    %130 = vmatprep.subr.bf16.mxu0 0
    %131 = vmatpush2.bf16.msra.mxu0 0
    %132 = vmatprep.subr.bf16.mxu0 0
    %133 = vmatpush2.bf16.msra.mxu0 0
    %134 = vmatprep.mubr.bf16.mxu0 0
    %135 = vmatmul.mubr.bf16.gmra.mxu0 %v93
    %v136 = vpop.f32.mrf.mxu0
    %v137 = vadd.f32 %v64, %v136
    %v138 = vpop.f32.mrf.mxu0
    %v139 = vpop.f32.mrf.mxu0
    %v140 = vadd.f32 %v64, %v139
    %v141 = vpop.f32.mrf.mxu0
    %142 = vmatprep.mubr.bf16.mxu0 0
    %143 = vmatmul.mubr.bf16.gmra.mxu0 %v96
    %v144 = vpop.f32.mrf.mxu0
    %v145 = vadd.f32 %v64, %v144
    %v146 = vpop.f32.mrf.mxu0
    %v147 = vpop.f32.mrf.mxu0
    %v148 = vadd.f32 %v64, %v147
    %v149 = vpop.f32.mrf.mxu0
    %150 = vdwg.mxu0
    %v155 = vunpack.c.l.b16 %v54
    %v156 = vunpack.c.l.b16 %v55
    %v157 = vunpack.c.l.b16 %v56
    %v158 = vunpack.c.l.b16 %v57
    %v159 = vpack.c.b16 %v156, %v155
    %v160 = vpack.c.b16 %v158, %v157
    %vm163 = vcmask 261120
    %v165 = vsel %vm163, 0, 0
    %167 = vmatprep.subr.bf16.mxu0 0
    %168 = vmatpush1.bf16.msra.mxu0 0
    %169 = vmatprep.subr.bf16.mxu0 0
    %170 = vmatpush1.bf16.msra.mxu0 0
    %171 = vmatprep.subr.bf16.mxu0 0
    %172 = vmatpush1.bf16.msra.mxu0 0
    %173 = vmatprep.subr.bf16.mxu0 0
    %174 = vmatpush1.bf16.msra.mxu0 0
    %175 = vmatprep.subr.bf16.mxu0 0
    %176 = vmatpush1.bf16.msra.mxu0 0
    %177 = vmatprep.subr.bf16.mxu0 0
    %178 = vmatpush1.bf16.msra.mxu0 0
    %179 = vmatprep.subr.bf16.mxu0 0
    %180 = vmatpush1.bf16.msra.mxu0 %v160
    %181 = vmatprep.subr.bf16.mxu0 0
    %182 = vmatpush1.bf16.msra.mxu0 %v159
    %183 = vmatprep.subr.bf16.mxu0 0
    %184 = vmatpush2.bf16.msra.mxu0 0
    %185 = vmatprep.subr.bf16.mxu0 0
    %186 = vmatpush2.bf16.msra.mxu0 0
    %187 = vmatprep.subr.bf16.mxu0 0
    %188 = vmatpush2.bf16.msra.mxu0 0
    %189 = vmatprep.subr.bf16.mxu0 0
    %190 = vmatpush2.bf16.msra.mxu0 0
    %191 = vmatprep.subr.bf16.mxu0 0
    %192 = vmatpush2.bf16.msra.mxu0 0
    %193 = vmatprep.subr.bf16.mxu0 0
    %194 = vmatpush2.bf16.msra.mxu0 0
    %195 = vmatprep.subr.bf16.mxu0 0
    %196 = vmatpush2.bf16.msra.mxu0 0
    %197 = vmatprep.subr.bf16.mxu0 0
    %198 = vmatpush2.bf16.msra.mxu0 0
    %199 = vmatprep.mubr.bf16.mxu0 0
    %200 = vmatmul.mubr.bf16.gmra.mxu0 %v165
    %v201 = vpop.f32.mrf.mxu0
    %v202 = vadd.f32 0.0, %v201
    %v203 = vpop.f32.mrf.mxu0
    %v204 = vpop.f32.mrf.mxu0
    %v205 = vpop.f32.mrf.mxu0
    %206 = vdwg.mxu0
    %v208 = vrot.slane %v202, 1
    %v211 = vadd.f32 %v137, %v202
    %v212 = vadd.f32 %v145, %v208
    %v213 = vxor.u32 %v211, 2147483648
    %v214 = vxor.u32 %v212, 2147483648
    %v215 = vmul.f32 %v213, 1.442695
    %v216 = vpow.pop %v215
    %v217 = vmul.f32 %v214, 1.442695
    %v218 = vpow.pop %v217
    %v219 = vadd.f32 %v216, 1.0
    %v220 = vadd.f32 %v218, 1.0
    %v221 = vrcp.pop %v219
    %v222 = vmul.f32 1.0, %v221
    %v223 = vrcp.pop %v220
    %v224 = vmul.f32 1.0, %v223
    %v226 = vlaneseq
    %v227 = vshrl.u32 %v226, 7
    %v228 = vsub.s32 0, %v227
    %v229 = vrot.slane %v59, %v228
    %230 = vrot.lane.b32.xlu0 %v229, 64
    %v231 = vpop.permute.xlu0 %230
    %v233 = vadd.f32 %v202, %v231
    %v235 = vrot.slane %v233, 1
    %236 = vrot.lane.b32.xlu0 %v233, 64
    %v237 = vpop.permute.xlu0 %236
    %238 = vrot.lane.b32.xlu0 %v235, 64
    %v239 = vpop.permute.xlu0 %238
    %v242 = vmul.f32 %v222, %v237
    %v243 = vmul.f32 %v224, %v239
    %246 = vrot.lane.b32.xlu0 %v242, 64
    %v247 = vpop.permute.xlu0 %246
    %248 = vrot.lane.b32.xlu0 %v243, 64
    %v249 = vpop.permute.xlu0 %248
    %v252 = vadd.f32 %v137, %v247
    %v253 = vadd.f32 %v145, %v249
    %v254 = vtanh.pop %v252
    %v255 = vtanh.pop %v253
    %v256 = vsub.f32 1.0, %v222
    %v257 = vsub.f32 1.0, %v224
    %260 = vrot.lane.b32.xlu0 %v254, 96
    %v261 = vpop.permute.xlu0 %260
    %262 = vrot.lane.b32.xlu0 %v255, 96
    %v263 = vpop.permute.xlu0 %262
    %v266 = vmul.f32 %v256, %v261
    %v267 = vmul.f32 %v257, %v263
    %v268 = vmul.f32 %v222, 0.0
    %v269 = vmul.f32 %v224, 0.0
    %v270 = vadd.f32 %v266, %v268
    %v271 = vadd.f32 %v267, %v269
    %v272 = vpack.c.bf16 %v270, %v270
    %v273 = vpack.c.bf16 %v271, %v271
    %v276 = vunpack.c.l.b16 %v272
    %v277 = vunpack.c.l.b16 %v273
    %v278 = vrot.slane %v277, 7
    %vm279 = vcmask 1041409
    %v280 = vsel %vm279, %v278, %v276
    %v281 = vpack.c.b16 %v280, %v280
    %282 = vrot.lane.b32.xlu0 %v281, 96
    %v283 = vpop.permute.xlu0 %282
    %v285 = vsel %vm163, %v283, 0
    %287 = vmatprep.subr.bf16.mxu0 0
    %288 = vmatpush1.bf16.msra.mxu0 0
    %289 = vmatprep.subr.bf16.mxu0 0
    %290 = vmatpush1.bf16.msra.mxu0 0
    %291 = vmatprep.subr.bf16.mxu0 0
    %292 = vmatpush1.bf16.msra.mxu0 0
    %293 = vmatprep.subr.bf16.mxu0 0
    %294 = vmatpush1.bf16.msra.mxu0 0
    %295 = vmatprep.subr.bf16.mxu0 0
    %296 = vmatpush1.bf16.msra.mxu0 0
    %297 = vmatprep.subr.bf16.mxu0 0
    %298 = vmatpush1.bf16.msra.mxu0 0
    %299 = vmatprep.subr.bf16.mxu0 0
    %300 = vmatpush1.bf16.msra.mxu0 %v160
    %301 = vmatprep.subr.bf16.mxu0 0
    %302 = vmatpush1.bf16.msra.mxu0 %v159
    %303 = vmatprep.subr.bf16.mxu0 0
    %304 = vmatpush2.bf16.msra.mxu0 0
    %305 = vmatprep.subr.bf16.mxu0 0
    %306 = vmatpush2.bf16.msra.mxu0 0
    %307 = vmatprep.subr.bf16.mxu0 0
    %308 = vmatpush2.bf16.msra.mxu0 0
    %309 = vmatprep.subr.bf16.mxu0 0
    %310 = vmatpush2.bf16.msra.mxu0 0
    %311 = vmatprep.subr.bf16.mxu0 0
    %312 = vmatpush2.bf16.msra.mxu0 0
    %313 = vmatprep.subr.bf16.mxu0 0
    %314 = vmatpush2.bf16.msra.mxu0 0
    %315 = vmatprep.subr.bf16.mxu0 0
    %316 = vmatpush2.bf16.msra.mxu0 0
    %317 = vmatprep.subr.bf16.mxu0 0
    %318 = vmatpush2.bf16.msra.mxu0 0
    %319 = vmatprep.mubr.bf16.mxu0 0
    %320 = vmatmul.mubr.bf16.gmra.mxu0 %v285
    %v321 = vpop.f32.mrf.mxu0
    %v322 = vadd.f32 0.0, %v321
    %v323 = vpop.f32.mrf.mxu0
    %v324 = vpop.f32.mrf.mxu0
    %v325 = vpop.f32.mrf.mxu0
    %326 = vdwg.mxu0
    %v328 = vrot.slane %v322, 7
    %v331 = vadd.f32 %v137, %v328
    %v332 = vadd.f32 %v145, %v322
    %v333 = vxor.u32 %v331, 2147483648
    %v334 = vxor.u32 %v332, 2147483648
    %v335 = vmul.f32 %v333, 1.442695
    %v336 = vpow.pop %v335
    %v337 = vmul.f32 %v334, 1.442695
    %v338 = vpow.pop %v337
    %v339 = vadd.f32 %v336, 1.0
    %v340 = vadd.f32 %v338, 1.0
    %v341 = vrcp.pop %v339
    %v342 = vmul.f32 1.0, %v341
    %v343 = vrcp.pop %v340
    %v344 = vmul.f32 1.0, %v343
    %v345 = vadd.f32 %v322, %v231
    %v347 = vrot.slane %v345, 7
    %348 = vrot.lane.b32.xlu0 %v347, 64
    %v349 = vpop.permute.xlu0 %348
    %350 = vrot.lane.b32.xlu0 %v345, 64
    %v351 = vpop.permute.xlu0 %350
    %v354 = vmul.f32 %v342, %v349
    %v355 = vmul.f32 %v344, %v351
    %358 = vrot.lane.b32.xlu0 %v354, 64
    %v359 = vpop.permute.xlu0 %358
    %360 = vrot.lane.b32.xlu0 %v355, 64
    %v361 = vpop.permute.xlu0 %360
    %v364 = vadd.f32 %v137, %v359
    %v365 = vadd.f32 %v145, %v361
    %v366 = vtanh.pop %v364
    %v367 = vtanh.pop %v365
    %v368 = vsub.f32 1.0, %v342
    %v369 = vsub.f32 1.0, %v344
    %372 = vrot.lane.b32.xlu0 %v366, 96
    %v373 = vpop.permute.xlu0 %372
    %374 = vrot.lane.b32.xlu0 %v367, 96
    %v375 = vpop.permute.xlu0 %374
    %v378 = vmul.f32 %v368, %v373
    %v379 = vmul.f32 %v369, %v375
    %v382 = vrot.slane %v270, 7
    %v383 = vrot.slane %v271, 7
    %v386 = vmul.f32 %v342, %v382
    %v387 = vmul.f32 %v344, %v383
    %v388 = vadd.f32 %v378, %v386
    %v389 = vadd.f32 %v379, %v387
    %v390 = vpack.c.bf16 %v388, %v388
    %v391 = vpack.c.bf16 %v389, %v389
    %v394 = vunpack.c.l.b16 %v390
    %v395 = vunpack.c.l.b16 %v391
    %v396 = vrot.slane %v394, 1
    %v397 = vsel %vm279, %v395, %v396
    %v398 = vpack.c.b16 %v397, %v397
    %399 = vrot.lane.b32.xlu0 %v398, 96
    %v400 = vpop.permute.xlu0 %399
    %v402 = vsel %vm163, %v400, 0
    %404 = vmatprep.subr.bf16.mxu0 0
    %405 = vmatpush1.bf16.msra.mxu0 0
    %406 = vmatprep.subr.bf16.mxu0 0
    %407 = vmatpush1.bf16.msra.mxu0 0
    %408 = vmatprep.subr.bf16.mxu0 0
    %409 = vmatpush1.bf16.msra.mxu0 0
    %410 = vmatprep.subr.bf16.mxu0 0
    %411 = vmatpush1.bf16.msra.mxu0 0
    %412 = vmatprep.subr.bf16.mxu0 0
    %413 = vmatpush1.bf16.msra.mxu0 0
    %414 = vmatprep.subr.bf16.mxu0 0
    %415 = vmatpush1.bf16.msra.mxu0 0
    %416 = vmatprep.subr.bf16.mxu0 0
    %417 = vmatpush1.bf16.msra.mxu0 %v160
    %418 = vmatprep.subr.bf16.mxu0 0
    %419 = vmatpush1.bf16.msra.mxu0 %v159
    %420 = vmatprep.subr.bf16.mxu0 0
    %421 = vmatpush2.bf16.msra.mxu0 0
    %422 = vmatprep.subr.bf16.mxu0 0
    %423 = vmatpush2.bf16.msra.mxu0 0
    %424 = vmatprep.subr.bf16.mxu0 0
    %425 = vmatpush2.bf16.msra.mxu0 0
    %426 = vmatprep.subr.bf16.mxu0 0
    %427 = vmatpush2.bf16.msra.mxu0 0
    %428 = vmatprep.subr.bf16.mxu0 0
    %429 = vmatpush2.bf16.msra.mxu0 0
    %430 = vmatprep.subr.bf16.mxu0 0
    %431 = vmatpush2.bf16.msra.mxu0 0
    %432 = vmatprep.subr.bf16.mxu0 0
    %433 = vmatpush2.bf16.msra.mxu0 0
    %434 = vmatprep.subr.bf16.mxu0 0
    %435 = vmatpush2.bf16.msra.mxu0 0
    %436 = vmatprep.mubr.bf16.mxu0 0
    %437 = vmatmul.mubr.bf16.gmra.mxu0 %v402
    %v438 = vpop.f32.mrf.mxu0
    %v439 = vadd.f32 0.0, %v438
    %v440 = vpop.f32.mrf.mxu0
    %v441 = vpop.f32.mrf.mxu0
    %v442 = vpop.f32.mrf.mxu0
    %443 = vdwg.mxu0
    %v445 = vrot.slane %v439, 6
    %v446 = vrot.slane %v439, 7
    %v449 = vadd.f32 %v137, %v445
    %v450 = vadd.f32 %v145, %v446
    %v451 = vxor.u32 %v449, 2147483648
    %v452 = vxor.u32 %v450, 2147483648
    %v453 = vmul.f32 %v451, 1.442695
    %v454 = vpow.pop %v453
    %v455 = vmul.f32 %v452, 1.442695
    %v456 = vpow.pop %v455
    %v457 = vadd.f32 %v454, 1.0
    %v458 = vadd.f32 %v456, 1.0
    %v459 = vrcp.pop %v457
    %v460 = vmul.f32 1.0, %v459
    %v461 = vrcp.pop %v458
    %v462 = vmul.f32 1.0, %v461
    %v463 = vadd.f32 %v439, %v231
    %v465 = vrot.slane %v463, 6
    %v466 = vrot.slane %v463, 7
    %467 = vrot.lane.b32.xlu0 %v465, 64
    %v468 = vpop.permute.xlu0 %467
    %469 = vrot.lane.b32.xlu0 %v466, 64
    %v470 = vpop.permute.xlu0 %469
    %v473 = vmul.f32 %v460, %v468
    %v474 = vmul.f32 %v462, %v470
    %477 = vrot.lane.b32.xlu0 %v473, 64
    %v478 = vpop.permute.xlu0 %477
    %479 = vrot.lane.b32.xlu0 %v474, 64
    %v480 = vpop.permute.xlu0 %479
    %v483 = vadd.f32 %v137, %v478
    %v484 = vadd.f32 %v145, %v480
    %v485 = vtanh.pop %v483
    %v486 = vtanh.pop %v484
    %v487 = vsub.f32 1.0, %v460
    %v488 = vsub.f32 1.0, %v462
    %491 = vrot.lane.b32.xlu0 %v485, 96
    %v492 = vpop.permute.xlu0 %491
    %493 = vrot.lane.b32.xlu0 %v486, 96
    %v494 = vpop.permute.xlu0 %493
    %v497 = vmul.f32 %v487, %v492
    %v498 = vmul.f32 %v488, %v494
    %v501 = vrot.slane %v388, 7
    %v502 = vrot.slane %v389, 7
    %v505 = vmul.f32 %v460, %v501
    %v506 = vmul.f32 %v462, %v502
    %v507 = vadd.f32 %v497, %v505
    %v508 = vadd.f32 %v498, %v506
    %v509 = vpack.c.bf16 %v507, %v507
    %v510 = vpack.c.bf16 %v508, %v508
    %v513 = vunpack.c.l.b16 %v509
    %v514 = vunpack.c.l.b16 %v510
    %v515 = vrot.slane %v513, 2
    %v516 = vrot.slane %v514, 1
    %v517 = vsel %vm279, %v516, %v515
    %v518 = vpack.c.b16 %v517, %v517
    %519 = vrot.lane.b32.xlu0 %v518, 96
    %v520 = vpop.permute.xlu0 %519
    %v522 = vsel %vm163, %v520, 0
    %524 = vmatprep.subr.bf16.mxu0 0
    %525 = vmatpush1.bf16.msra.mxu0 0
    %526 = vmatprep.subr.bf16.mxu0 0
    %527 = vmatpush1.bf16.msra.mxu0 0
    %528 = vmatprep.subr.bf16.mxu0 0
    %529 = vmatpush1.bf16.msra.mxu0 0
    %530 = vmatprep.subr.bf16.mxu0 0
    %531 = vmatpush1.bf16.msra.mxu0 0
    %532 = vmatprep.subr.bf16.mxu0 0
    %533 = vmatpush1.bf16.msra.mxu0 0
    %534 = vmatprep.subr.bf16.mxu0 0
    %535 = vmatpush1.bf16.msra.mxu0 0
    %536 = vmatprep.subr.bf16.mxu0 0
    %537 = vmatpush1.bf16.msra.mxu0 %v160
    %538 = vmatprep.subr.bf16.mxu0 0
    %539 = vmatpush1.bf16.msra.mxu0 %v159
    %540 = vmatprep.subr.bf16.mxu0 0
    %541 = vmatpush2.bf16.msra.mxu0 0
    %542 = vmatprep.subr.bf16.mxu0 0
    %543 = vmatpush2.bf16.msra.mxu0 0
    %544 = vmatprep.subr.bf16.mxu0 0
    %545 = vmatpush2.bf16.msra.mxu0 0
    %546 = vmatprep.subr.bf16.mxu0 0
    %547 = vmatpush2.bf16.msra.mxu0 0
    %548 = vmatprep.subr.bf16.mxu0 0
    %549 = vmatpush2.bf16.msra.mxu0 0
    %550 = vmatprep.subr.bf16.mxu0 0
    %551 = vmatpush2.bf16.msra.mxu0 0
    %552 = vmatprep.subr.bf16.mxu0 0
    %553 = vmatpush2.bf16.msra.mxu0 0
    %554 = vmatprep.subr.bf16.mxu0 0
    %555 = vmatpush2.bf16.msra.mxu0 0
    %556 = vmatprep.mubr.bf16.mxu0 0
    %557 = vmatmul.mubr.bf16.gmra.mxu0 %v522
    %v558 = vpop.f32.mrf.mxu0
    %v559 = vadd.f32 0.0, %v558
    %v560 = vpop.f32.mrf.mxu0
    %v561 = vpop.f32.mrf.mxu0
    %v562 = vpop.f32.mrf.mxu0
    %563 = vdwg.mxu0
    %v565 = vrot.slane %v559, 5
    %v566 = vrot.slane %v559, 6
    %v569 = vadd.f32 %v137, %v565
    %v570 = vadd.f32 %v145, %v566
    %v571 = vxor.u32 %v569, 2147483648
    %v572 = vxor.u32 %v570, 2147483648
    %v573 = vmul.f32 %v571, 1.442695
    %v574 = vpow.pop %v573
    %v575 = vmul.f32 %v572, 1.442695
    %v576 = vpow.pop %v575
    %v577 = vadd.f32 %v574, 1.0
    %v578 = vadd.f32 %v576, 1.0
    %v579 = vrcp.pop %v577
    %v580 = vmul.f32 1.0, %v579
    %v581 = vrcp.pop %v578
    %v582 = vmul.f32 1.0, %v581
    %v583 = vadd.f32 %v559, %v231
    %v585 = vrot.slane %v583, 5
    %v586 = vrot.slane %v583, 6
    %587 = vrot.lane.b32.xlu0 %v585, 64
    %v588 = vpop.permute.xlu0 %587
    %589 = vrot.lane.b32.xlu0 %v586, 64
    %v590 = vpop.permute.xlu0 %589
    %v593 = vmul.f32 %v580, %v588
    %v594 = vmul.f32 %v582, %v590
    %597 = vrot.lane.b32.xlu0 %v593, 64
    %v598 = vpop.permute.xlu0 %597
    %599 = vrot.lane.b32.xlu0 %v594, 64
    %v600 = vpop.permute.xlu0 %599
    %v603 = vadd.f32 %v137, %v598
    %v604 = vadd.f32 %v145, %v600
    %v605 = vtanh.pop %v603
    %v606 = vtanh.pop %v604
    %v607 = vsub.f32 1.0, %v580
    %v608 = vsub.f32 1.0, %v582
    %611 = vrot.lane.b32.xlu0 %v605, 96
    %v612 = vpop.permute.xlu0 %611
    %613 = vrot.lane.b32.xlu0 %v606, 96
    %v614 = vpop.permute.xlu0 %613
    %v617 = vmul.f32 %v607, %v612
    %v618 = vmul.f32 %v608, %v614
    %v621 = vrot.slane %v507, 7
    %v622 = vrot.slane %v508, 7
    %v625 = vmul.f32 %v580, %v621
    %v626 = vmul.f32 %v582, %v622
    %v627 = vadd.f32 %v617, %v625
    %v628 = vadd.f32 %v618, %v626
    %v629 = vpack.c.bf16 %v627, %v627
    %v630 = vpack.c.bf16 %v628, %v628
    %v633 = vunpack.c.l.b16 %v629
    %v634 = vunpack.c.l.b16 %v630
    %v635 = vrot.slane %v633, 3
    %v636 = vrot.slane %v634, 2
    %v637 = vsel %vm279, %v636, %v635
    %v638 = vpack.c.b16 %v637, %v637
    %639 = vrot.lane.b32.xlu0 %v638, 96
    %v640 = vpop.permute.xlu0 %639
    %v642 = vsel %vm163, %v640, 0
    %644 = vmatprep.subr.bf16.mxu0 0
    %645 = vmatpush1.bf16.msra.mxu0 0
    %646 = vmatprep.subr.bf16.mxu0 0
    %647 = vmatpush1.bf16.msra.mxu0 0
    %648 = vmatprep.subr.bf16.mxu0 0
    %649 = vmatpush1.bf16.msra.mxu0 0
    %650 = vmatprep.subr.bf16.mxu0 0
    %651 = vmatpush1.bf16.msra.mxu0 0
    %652 = vmatprep.subr.bf16.mxu0 0
    %653 = vmatpush1.bf16.msra.mxu0 0
    %654 = vmatprep.subr.bf16.mxu0 0
    %655 = vmatpush1.bf16.msra.mxu0 0
    %656 = vmatprep.subr.bf16.mxu0 0
    %657 = vmatpush1.bf16.msra.mxu0 %v160
    %658 = vmatprep.subr.bf16.mxu0 0
    %659 = vmatpush1.bf16.msra.mxu0 %v159
    %660 = vmatprep.subr.bf16.mxu0 0
    %661 = vmatpush2.bf16.msra.mxu0 0
    %662 = vmatprep.subr.bf16.mxu0 0
    %663 = vmatpush2.bf16.msra.mxu0 0
    %664 = vmatprep.subr.bf16.mxu0 0
    %665 = vmatpush2.bf16.msra.mxu0 0
    %666 = vmatprep.subr.bf16.mxu0 0
    %667 = vmatpush2.bf16.msra.mxu0 0
    %668 = vmatprep.subr.bf16.mxu0 0
    %669 = vmatpush2.bf16.msra.mxu0 0
    %670 = vmatprep.subr.bf16.mxu0 0
    %671 = vmatpush2.bf16.msra.mxu0 0
    %672 = vmatprep.subr.bf16.mxu0 0
    %673 = vmatpush2.bf16.msra.mxu0 0
    %674 = vmatprep.subr.bf16.mxu0 0
    %675 = vmatpush2.bf16.msra.mxu0 0
    %676 = vmatprep.mubr.bf16.mxu0 0
    %677 = vmatmul.mubr.bf16.gmra.mxu0 %v642
    %v678 = vpop.f32.mrf.mxu0
    %v679 = vadd.f32 0.0, %v678
    %v680 = vpop.f32.mrf.mxu0
    %v681 = vpop.f32.mrf.mxu0
    %v682 = vpop.f32.mrf.mxu0
    %683 = vdwg.mxu0
    %v685 = vrot.slane %v679, 4
    %v686 = vrot.slane %v679, 5
    %v689 = vadd.f32 %v137, %v685
    %v690 = vadd.f32 %v145, %v686
    %v691 = vxor.u32 %v689, 2147483648
    %v692 = vxor.u32 %v690, 2147483648
    %v693 = vmul.f32 %v691, 1.442695
    %v694 = vpow.pop %v693
    %v695 = vmul.f32 %v692, 1.442695
    %v696 = vpow.pop %v695
    %v697 = vadd.f32 %v694, 1.0
    %v698 = vadd.f32 %v696, 1.0
    %v699 = vrcp.pop %v697
    %v700 = vmul.f32 1.0, %v699
    %v701 = vrcp.pop %v698
    %v702 = vmul.f32 1.0, %v701
    %v703 = vadd.f32 %v679, %v231
    %v705 = vrot.slane %v703, 4
    %v706 = vrot.slane %v703, 5
    %707 = vrot.lane.b32.xlu0 %v705, 64
    %v708 = vpop.permute.xlu0 %707
    %709 = vrot.lane.b32.xlu0 %v706, 64
    %v710 = vpop.permute.xlu0 %709
    %v713 = vmul.f32 %v700, %v708
    %v714 = vmul.f32 %v702, %v710
    %717 = vrot.lane.b32.xlu0 %v713, 64
    %v718 = vpop.permute.xlu0 %717
    %719 = vrot.lane.b32.xlu0 %v714, 64
    %v720 = vpop.permute.xlu0 %719
    %v723 = vadd.f32 %v137, %v718
    %v724 = vadd.f32 %v145, %v720
    %v725 = vtanh.pop %v723
    %v726 = vtanh.pop %v724
    %v727 = vsub.f32 1.0, %v700
    %v728 = vsub.f32 1.0, %v702
    %731 = vrot.lane.b32.xlu0 %v725, 96
    %v732 = vpop.permute.xlu0 %731
    %733 = vrot.lane.b32.xlu0 %v726, 96
    %v734 = vpop.permute.xlu0 %733
    %v737 = vmul.f32 %v727, %v732
    %v738 = vmul.f32 %v728, %v734
    %v741 = vrot.slane %v627, 7
    %v742 = vrot.slane %v628, 7
    %v745 = vmul.f32 %v700, %v741
    %v746 = vmul.f32 %v702, %v742
    %v747 = vadd.f32 %v737, %v745
    %v748 = vadd.f32 %v738, %v746
    %v749 = vpack.c.bf16 %v747, %v747
    %v750 = vpack.c.bf16 %v748, %v748
    %v753 = vunpack.c.l.b16 %v749
    %v754 = vunpack.c.l.b16 %v750
    %v755 = vrot.slane %v753, 4
    %v756 = vrot.slane %v754, 3
    %v757 = vsel %vm279, %v756, %v755
    %v758 = vpack.c.b16 %v757, %v757
    %759 = vrot.lane.b32.xlu0 %v758, 96
    %v760 = vpop.permute.xlu0 %759
    %v762 = vsel %vm163, %v760, 0
    %764 = vmatprep.subr.bf16.mxu0 0
    %765 = vmatpush1.bf16.msra.mxu0 0
    %766 = vmatprep.subr.bf16.mxu0 0
    %767 = vmatpush1.bf16.msra.mxu0 0
    %768 = vmatprep.subr.bf16.mxu0 0
    %769 = vmatpush1.bf16.msra.mxu0 0
    %770 = vmatprep.subr.bf16.mxu0 0
    %771 = vmatpush1.bf16.msra.mxu0 0
    %772 = vmatprep.subr.bf16.mxu0 0
    %773 = vmatpush1.bf16.msra.mxu0 0
    %774 = vmatprep.subr.bf16.mxu0 0
    %775 = vmatpush1.bf16.msra.mxu0 0
    %776 = vmatprep.subr.bf16.mxu0 0
    %777 = vmatpush1.bf16.msra.mxu0 %v160
    %778 = vmatprep.subr.bf16.mxu0 0
    %779 = vmatpush1.bf16.msra.mxu0 %v159
    %780 = vmatprep.subr.bf16.mxu0 0
    %781 = vmatpush2.bf16.msra.mxu0 0
    %782 = vmatprep.subr.bf16.mxu0 0
    %783 = vmatpush2.bf16.msra.mxu0 0
    %784 = vmatprep.subr.bf16.mxu0 0
    %785 = vmatpush2.bf16.msra.mxu0 0
    %786 = vmatprep.subr.bf16.mxu0 0
    %787 = vmatpush2.bf16.msra.mxu0 0
    %788 = vmatprep.subr.bf16.mxu0 0
    %789 = vmatpush2.bf16.msra.mxu0 0
    %790 = vmatprep.subr.bf16.mxu0 0
    %791 = vmatpush2.bf16.msra.mxu0 0
    %792 = vmatprep.subr.bf16.mxu0 0
    %793 = vmatpush2.bf16.msra.mxu0 0
    %794 = vmatprep.subr.bf16.mxu0 0
    %795 = vmatpush2.bf16.msra.mxu0 0
    %796 = vmatprep.mubr.bf16.mxu0 0
    %797 = vmatmul.mubr.bf16.gmra.mxu0 %v762
    %v798 = vpop.f32.mrf.mxu0
    %v799 = vadd.f32 0.0, %v798
    %v800 = vpop.f32.mrf.mxu0
    %v801 = vpop.f32.mrf.mxu0
    %v802 = vpop.f32.mrf.mxu0
    %803 = vdwg.mxu0
    %v805 = vrot.slane %v799, 3
    %v806 = vrot.slane %v799, 4
    %v809 = vadd.f32 %v137, %v805
    %v810 = vadd.f32 %v145, %v806
    %v811 = vxor.u32 %v809, 2147483648
    %v812 = vxor.u32 %v810, 2147483648
    %v813 = vmul.f32 %v811, 1.442695
    %v814 = vpow.pop %v813
    %v815 = vmul.f32 %v812, 1.442695
    %v816 = vpow.pop %v815
    %v817 = vadd.f32 %v814, 1.0
    %v818 = vadd.f32 %v816, 1.0
    %v819 = vrcp.pop %v817
    %v820 = vmul.f32 1.0, %v819
    %v821 = vrcp.pop %v818
    %v822 = vmul.f32 1.0, %v821
    %v823 = vadd.f32 %v799, %v231
    %v825 = vrot.slane %v823, 3
    %v826 = vrot.slane %v823, 4
    %827 = vrot.lane.b32.xlu0 %v825, 64
    %v828 = vpop.permute.xlu0 %827
    %829 = vrot.lane.b32.xlu0 %v826, 64
    %v830 = vpop.permute.xlu0 %829
    %v833 = vmul.f32 %v820, %v828
    %v834 = vmul.f32 %v822, %v830
    %837 = vrot.lane.b32.xlu0 %v833, 64
    %v838 = vpop.permute.xlu0 %837
    %839 = vrot.lane.b32.xlu0 %v834, 64
    %v840 = vpop.permute.xlu0 %839
    %v843 = vadd.f32 %v137, %v838
    %v844 = vadd.f32 %v145, %v840
    %v845 = vtanh.pop %v843
    %v846 = vtanh.pop %v844
    %v847 = vsub.f32 1.0, %v820
    %v848 = vsub.f32 1.0, %v822
    %851 = vrot.lane.b32.xlu0 %v845, 96
    %v852 = vpop.permute.xlu0 %851
    %853 = vrot.lane.b32.xlu0 %v846, 96
    %v854 = vpop.permute.xlu0 %853
    %v857 = vmul.f32 %v847, %v852
    %v858 = vmul.f32 %v848, %v854
    %v861 = vrot.slane %v747, 7
    %v862 = vrot.slane %v748, 7
    %v865 = vmul.f32 %v820, %v861
    %v866 = vmul.f32 %v822, %v862
    %v867 = vadd.f32 %v857, %v865
    %v868 = vadd.f32 %v858, %v866
    %v869 = vpack.c.bf16 %v867, %v867
    %v870 = vpack.c.bf16 %v868, %v868
    %v873 = vunpack.c.l.b16 %v869
    %v874 = vunpack.c.l.b16 %v870
    %v875 = vrot.slane %v873, 5
    %v876 = vrot.slane %v874, 4
    %v877 = vsel %vm279, %v876, %v875
    %v878 = vpack.c.b16 %v877, %v877
    %879 = vrot.lane.b32.xlu0 %v878, 96
    %v880 = vpop.permute.xlu0 %879
    %v882 = vsel %vm163, %v880, 0
    %884 = vmatprep.subr.bf16.mxu0 0
    %885 = vmatpush1.bf16.msra.mxu0 0
    %886 = vmatprep.subr.bf16.mxu0 0
    %887 = vmatpush1.bf16.msra.mxu0 0
    %888 = vmatprep.subr.bf16.mxu0 0
    %889 = vmatpush1.bf16.msra.mxu0 0
    %890 = vmatprep.subr.bf16.mxu0 0
    %891 = vmatpush1.bf16.msra.mxu0 0
    %892 = vmatprep.subr.bf16.mxu0 0
    %893 = vmatpush1.bf16.msra.mxu0 0
    %894 = vmatprep.subr.bf16.mxu0 0
    %895 = vmatpush1.bf16.msra.mxu0 0
    %896 = vmatprep.subr.bf16.mxu0 0
    %897 = vmatpush1.bf16.msra.mxu0 %v160
    %898 = vmatprep.subr.bf16.mxu0 0
    %899 = vmatpush1.bf16.msra.mxu0 %v159
    %900 = vmatprep.subr.bf16.mxu0 0
    %901 = vmatpush2.bf16.msra.mxu0 0
    %902 = vmatprep.subr.bf16.mxu0 0
    %903 = vmatpush2.bf16.msra.mxu0 0
    %904 = vmatprep.subr.bf16.mxu0 0
    %905 = vmatpush2.bf16.msra.mxu0 0
    %906 = vmatprep.subr.bf16.mxu0 0
    %907 = vmatpush2.bf16.msra.mxu0 0
    %908 = vmatprep.subr.bf16.mxu0 0
    %909 = vmatpush2.bf16.msra.mxu0 0
    %910 = vmatprep.subr.bf16.mxu0 0
    %911 = vmatpush2.bf16.msra.mxu0 0
    %912 = vmatprep.subr.bf16.mxu0 0
    %913 = vmatpush2.bf16.msra.mxu0 0
    %914 = vmatprep.subr.bf16.mxu0 0
    %915 = vmatpush2.bf16.msra.mxu0 0
    %916 = vmatprep.mubr.bf16.mxu0 0
    %917 = vmatmul.mubr.bf16.gmra.mxu0 %v882
    %v918 = vpop.f32.mrf.mxu0
    %v919 = vadd.f32 0.0, %v918
    %v920 = vpop.f32.mrf.mxu0
    %v921 = vpop.f32.mrf.mxu0
    %v922 = vpop.f32.mrf.mxu0
    %923 = vdwg.mxu0
    %v925 = vrot.slane %v919, 2
    %v926 = vrot.slane %v919, 3
    %v929 = vadd.f32 %v137, %v925
    %v930 = vadd.f32 %v145, %v926
    %v931 = vxor.u32 %v929, 2147483648
    %v932 = vxor.u32 %v930, 2147483648
    %v933 = vmul.f32 %v931, 1.442695
    %v934 = vpow.pop %v933
    %v935 = vmul.f32 %v932, 1.442695
    %v936 = vpow.pop %v935
    %v937 = vadd.f32 %v934, 1.0
    %v938 = vadd.f32 %v936, 1.0
    %v939 = vrcp.pop %v937
    %v940 = vmul.f32 1.0, %v939
    %v941 = vrcp.pop %v938
    %v942 = vmul.f32 1.0, %v941
    %v943 = vadd.f32 %v919, %v231
    %v945 = vrot.slane %v943, 2
    %v946 = vrot.slane %v943, 3
    %947 = vrot.lane.b32.xlu0 %v945, 64
    %v948 = vpop.permute.xlu0 %947
    %949 = vrot.lane.b32.xlu0 %v946, 64
    %v950 = vpop.permute.xlu0 %949
    %v953 = vmul.f32 %v940, %v948
    %v954 = vmul.f32 %v942, %v950
    %957 = vrot.lane.b32.xlu0 %v953, 64
    %v958 = vpop.permute.xlu0 %957
    %959 = vrot.lane.b32.xlu0 %v954, 64
    %v960 = vpop.permute.xlu0 %959
    %v963 = vadd.f32 %v137, %v958
    %v964 = vadd.f32 %v145, %v960
    %v965 = vtanh.pop %v963
    %v966 = vtanh.pop %v964
    %v967 = vsub.f32 1.0, %v940
    %v968 = vsub.f32 1.0, %v942
    %971 = vrot.lane.b32.xlu0 %v965, 96
    %v972 = vpop.permute.xlu0 %971
    %973 = vrot.lane.b32.xlu0 %v966, 96
    %v974 = vpop.permute.xlu0 %973
    %v977 = vmul.f32 %v967, %v972
    %v978 = vmul.f32 %v968, %v974
    %v981 = vrot.slane %v867, 7
    %v982 = vrot.slane %v868, 7
    %v985 = vmul.f32 %v940, %v981
    %v986 = vmul.f32 %v942, %v982
    %v987 = vadd.f32 %v977, %v985
    %v988 = vadd.f32 %v978, %v986
    %v989 = vpack.c.bf16 %v987, %v987
    %v990 = vpack.c.bf16 %v988, %v988
    %v993 = vunpack.c.l.b16 %v989
    %v994 = vunpack.c.l.b16 %v990
    %v995 = vrot.slane %v993, 6
    %v996 = vrot.slane %v994, 5
    %v997 = vsel %vm279, %v996, %v995
    %v998 = vpack.c.b16 %v997, %v997
    %999 = vrot.lane.b32.xlu0 %v998, 96
    %v1000 = vpop.permute.xlu0 %999
    %v1002 = vsel %vm163, %v1000, 0
    %1004 = vmatprep.subr.bf16.mxu0 0
    %1005 = vmatpush1.bf16.msra.mxu0 0
    %1006 = vmatprep.subr.bf16.mxu0 0
    %1007 = vmatpush1.bf16.msra.mxu0 0
    %1008 = vmatprep.subr.bf16.mxu0 0
    %1009 = vmatpush1.bf16.msra.mxu0 0
    %1010 = vmatprep.subr.bf16.mxu0 0
    %1011 = vmatpush1.bf16.msra.mxu0 0
    %1012 = vmatprep.subr.bf16.mxu0 0
    %1013 = vmatpush1.bf16.msra.mxu0 0
    %1014 = vmatprep.subr.bf16.mxu0 0
    %1015 = vmatpush1.bf16.msra.mxu0 0
    %1016 = vmatprep.subr.bf16.mxu0 0
    %1017 = vmatpush1.bf16.msra.mxu0 %v160
    %1018 = vmatprep.subr.bf16.mxu0 0
    %1019 = vmatpush1.bf16.msra.mxu0 %v159
    %1020 = vmatprep.subr.bf16.mxu0 0
    %1021 = vmatpush2.bf16.msra.mxu0 0
    %1022 = vmatprep.subr.bf16.mxu0 0
    %1023 = vmatpush2.bf16.msra.mxu0 0
    %1024 = vmatprep.subr.bf16.mxu0 0
    %1025 = vmatpush2.bf16.msra.mxu0 0
    %1026 = vmatprep.subr.bf16.mxu0 0
    %1027 = vmatpush2.bf16.msra.mxu0 0
    %1028 = vmatprep.subr.bf16.mxu0 0
    %1029 = vmatpush2.bf16.msra.mxu0 0
    %1030 = vmatprep.subr.bf16.mxu0 0
    %1031 = vmatpush2.bf16.msra.mxu0 0
    %1032 = vmatprep.subr.bf16.mxu0 0
    %1033 = vmatpush2.bf16.msra.mxu0 0
    %1034 = vmatprep.subr.bf16.mxu0 0
    %1035 = vmatpush2.bf16.msra.mxu0 0
    %1036 = vmatprep.mubr.bf16.mxu0 0
    %1037 = vmatmul.mubr.bf16.gmra.mxu0 %v1002
    %v1038 = vpop.f32.mrf.mxu0
    %v1039 = vadd.f32 0.0, %v1038
    %v1040 = vpop.f32.mrf.mxu0
    %v1041 = vpop.f32.mrf.mxu0
    %v1042 = vpop.f32.mrf.mxu0
    %1043 = vdwg.mxu0
    %v1045 = vrot.slane %v1039, 1
    %v1046 = vrot.slane %v1039, 2
    %v1049 = vadd.f32 %v137, %v1045
    %v1050 = vadd.f32 %v145, %v1046
    %v1051 = vxor.u32 %v1049, 2147483648
    %v1052 = vxor.u32 %v1050, 2147483648
    %v1053 = vmul.f32 %v1051, 1.442695
    %v1054 = vpow.pop %v1053
    %v1055 = vmul.f32 %v1052, 1.442695
    %v1056 = vpow.pop %v1055
    %v1057 = vadd.f32 %v1054, 1.0
    %v1058 = vadd.f32 %v1056, 1.0
    %v1059 = vrcp.pop %v1057
    %v1060 = vmul.f32 1.0, %v1059
    %v1061 = vrcp.pop %v1058
    %v1062 = vmul.f32 1.0, %v1061
    %v1063 = vadd.f32 %v1039, %v231
    %v1065 = vrot.slane %v1063, 1
    %v1066 = vrot.slane %v1063, 2
    %1067 = vrot.lane.b32.xlu0 %v1065, 64
    %v1068 = vpop.permute.xlu0 %1067
    %1069 = vrot.lane.b32.xlu0 %v1066, 64
    %v1070 = vpop.permute.xlu0 %1069
    %v1073 = vmul.f32 %v1060, %v1068
    %v1074 = vmul.f32 %v1062, %v1070
    %1077 = vrot.lane.b32.xlu0 %v1073, 64
    %v1078 = vpop.permute.xlu0 %1077
    %1079 = vrot.lane.b32.xlu0 %v1074, 64
    %v1080 = vpop.permute.xlu0 %1079
    %v1083 = vadd.f32 %v137, %v1078
    %v1084 = vadd.f32 %v145, %v1080
    %v1085 = vtanh.pop %v1083
    %v1086 = vtanh.pop %v1084
    %v1087 = vsub.f32 1.0, %v1060
    %v1088 = vsub.f32 1.0, %v1062
    %1091 = vrot.lane.b32.xlu0 %v1085, 96
    %v1092 = vpop.permute.xlu0 %1091
    %1093 = vrot.lane.b32.xlu0 %v1086, 96
    %v1094 = vpop.permute.xlu0 %1093
    %v1097 = vmul.f32 %v1087, %v1092
    %v1098 = vmul.f32 %v1088, %v1094
    %v1101 = vrot.slane %v987, 7
    %v1102 = vrot.slane %v988, 7
    %v1105 = vmul.f32 %v1060, %v1101
    %v1106 = vmul.f32 %v1062, %v1102
    %v1107 = vadd.f32 %v1097, %v1105
    %v1108 = vadd.f32 %v1098, %v1106
    %v1109 = vpack.c.bf16 %v1107, %v1107
    %v1110 = vpack.c.bf16 %v1108, %v1108
    %v1113 = vunpack.c.l.b16 %v1109
    %v1114 = vunpack.c.l.b16 %v1110
    %v1115 = vrot.slane %v1113, 7
    %v1116 = vrot.slane %v1114, 6
    %v1117 = vsel %vm279, %v1116, %v1115
    %v1118 = vpack.c.b16 %v1117, %v1117
    %1119 = vrot.lane.b32.xlu0 %v1118, 96
    %v1120 = vpop.permute.xlu0 %1119
    %v1122 = vsel %vm163, %v1120, 0
    %1124 = vmatprep.subr.bf16.mxu0 0
    %1125 = vmatpush1.bf16.msra.mxu0 0
    %1126 = vmatprep.subr.bf16.mxu0 0
    %1127 = vmatpush1.bf16.msra.mxu0 0
    %1128 = vmatprep.subr.bf16.mxu0 0
    %1129 = vmatpush1.bf16.msra.mxu0 0
    %1130 = vmatprep.subr.bf16.mxu0 0
    %1131 = vmatpush1.bf16.msra.mxu0 0
    %1132 = vmatprep.subr.bf16.mxu0 0
    %1133 = vmatpush1.bf16.msra.mxu0 0
    %1134 = vmatprep.subr.bf16.mxu0 0
    %1135 = vmatpush1.bf16.msra.mxu0 0
    %1136 = vmatprep.subr.bf16.mxu0 0
    %1137 = vmatpush1.bf16.msra.mxu0 %v160
    %1138 = vmatprep.subr.bf16.mxu0 0
    %1139 = vmatpush1.bf16.msra.mxu0 %v159
    %1140 = vmatprep.subr.bf16.mxu0 0
    %1141 = vmatpush2.bf16.msra.mxu0 0
    %1142 = vmatprep.subr.bf16.mxu0 0
    %1143 = vmatpush2.bf16.msra.mxu0 0
    %1144 = vmatprep.subr.bf16.mxu0 0
    %1145 = vmatpush2.bf16.msra.mxu0 0
    %1146 = vmatprep.subr.bf16.mxu0 0
    %1147 = vmatpush2.bf16.msra.mxu0 0
    %1148 = vmatprep.subr.bf16.mxu0 0
    %1149 = vmatpush2.bf16.msra.mxu0 0
    %1150 = vmatprep.subr.bf16.mxu0 0
    %1151 = vmatpush2.bf16.msra.mxu0 0
    %1152 = vmatprep.subr.bf16.mxu0 0
    %1153 = vmatpush2.bf16.msra.mxu0 0
    %1154 = vmatprep.subr.bf16.mxu0 0
    %1155 = vmatpush2.bf16.msra.mxu0 0
    %1156 = vmatprep.mubr.bf16.mxu0 0
    %1157 = vmatmul.mubr.bf16.gmra.mxu0 %v1122
    %v1158 = vpop.f32.mrf.mxu0
    %v1159 = vadd.f32 0.0, %v1158
    %v1160 = vpop.f32.mrf.mxu0
    %v1161 = vpop.f32.mrf.mxu0
    %v1162 = vpop.f32.mrf.mxu0
    %1163 = vdwg.mxu0
    %v1165 = vrot.slane %v1159, 1
    %v1168 = vadd.f32 %v140, %v1159
    %v1169 = vadd.f32 %v148, %v1165
    %v1170 = vxor.u32 %v1168, 2147483648
    %v1171 = vxor.u32 %v1169, 2147483648
    %v1172 = vmul.f32 %v1170, 1.442695
    %v1173 = vpow.pop %v1172
    %v1174 = vmul.f32 %v1171, 1.442695
    %v1175 = vpow.pop %v1174
    %v1176 = vadd.f32 %v1173, 1.0
    %v1177 = vadd.f32 %v1175, 1.0
    %v1178 = vrcp.pop %v1176
    %v1179 = vmul.f32 1.0, %v1178
    %v1180 = vrcp.pop %v1177
    %v1181 = vmul.f32 1.0, %v1180
    %v1182 = vadd.f32 %v1159, %v231
    %v1184 = vrot.slane %v1182, 1
    %1185 = vrot.lane.b32.xlu0 %v1182, 64
    %v1186 = vpop.permute.xlu0 %1185
    %1187 = vrot.lane.b32.xlu0 %v1184, 64
    %v1188 = vpop.permute.xlu0 %1187
    %v1191 = vmul.f32 %v1179, %v1186
    %v1192 = vmul.f32 %v1181, %v1188
    %1195 = vrot.lane.b32.xlu0 %v1191, 64
    %v1196 = vpop.permute.xlu0 %1195
    %1197 = vrot.lane.b32.xlu0 %v1192, 64
    %v1198 = vpop.permute.xlu0 %1197
    %v1201 = vadd.f32 %v140, %v1196
    %v1202 = vadd.f32 %v148, %v1198
    %v1203 = vtanh.pop %v1201
    %v1204 = vtanh.pop %v1202
    %v1205 = vsub.f32 1.0, %v1179
    %v1206 = vsub.f32 1.0, %v1181
    %1209 = vrot.lane.b32.xlu0 %v1203, 96
    %v1210 = vpop.permute.xlu0 %1209
    %1211 = vrot.lane.b32.xlu0 %v1204, 96
    %v1212 = vpop.permute.xlu0 %1211
    %v1215 = vmul.f32 %v1205, %v1210
    %v1216 = vmul.f32 %v1206, %v1212
    %v1219 = vrot.slane %v1107, 7
    %v1220 = vrot.slane %v1108, 7
    %v1223 = vmul.f32 %v1179, %v1219
    %v1224 = vmul.f32 %v1181, %v1220
    %v1225 = vadd.f32 %v1215, %v1223
    %v1226 = vadd.f32 %v1216, %v1224
    %v1227 = vpack.c.bf16 %v1225, %v1225
    %v1228 = vpack.c.bf16 %v1226, %v1226
    %v1231 = vunpack.c.l.b16 %v1227
    %v1232 = vunpack.c.l.b16 %v1228
    %v1233 = vrot.slane %v1232, 7
    %v1234 = vsel %vm279, %v1233, %v1231
    %v1235 = vpack.c.b16 %v1234, %v1234
    %1236 = vrot.lane.b32.xlu0 %v1235, 96
    %v1237 = vpop.permute.xlu0 %1236
    %v1239 = vsel %vm163, %v1237, 0
    %1241 = vmatprep.subr.bf16.mxu0 0
    %1242 = vmatpush1.bf16.msra.mxu0 0
    %1243 = vmatprep.subr.bf16.mxu0 0
    %1244 = vmatpush1.bf16.msra.mxu0 0
    %1245 = vmatprep.subr.bf16.mxu0 0
    %1246 = vmatpush1.bf16.msra.mxu0 0
    %1247 = vmatprep.subr.bf16.mxu0 0
    %1248 = vmatpush1.bf16.msra.mxu0 0
    %1249 = vmatprep.subr.bf16.mxu0 0
    %1250 = vmatpush1.bf16.msra.mxu0 0
    %1251 = vmatprep.subr.bf16.mxu0 0
    %1252 = vmatpush1.bf16.msra.mxu0 0
    %1253 = vmatprep.subr.bf16.mxu0 0
    %1254 = vmatpush1.bf16.msra.mxu0 %v160
    %1255 = vmatprep.subr.bf16.mxu0 0
    %1256 = vmatpush1.bf16.msra.mxu0 %v159
    %1257 = vmatprep.subr.bf16.mxu0 0
    %1258 = vmatpush2.bf16.msra.mxu0 0
    %1259 = vmatprep.subr.bf16.mxu0 0
    %1260 = vmatpush2.bf16.msra.mxu0 0
    %1261 = vmatprep.subr.bf16.mxu0 0
    %1262 = vmatpush2.bf16.msra.mxu0 0
    %1263 = vmatprep.subr.bf16.mxu0 0
    %1264 = vmatpush2.bf16.msra.mxu0 0
    %1265 = vmatprep.subr.bf16.mxu0 0
    %1266 = vmatpush2.bf16.msra.mxu0 0
    %1267 = vmatprep.subr.bf16.mxu0 0
    %1268 = vmatpush2.bf16.msra.mxu0 0
    %1269 = vmatprep.subr.bf16.mxu0 0
    %1270 = vmatpush2.bf16.msra.mxu0 0
    %1271 = vmatprep.subr.bf16.mxu0 0
    %1272 = vmatpush2.bf16.msra.mxu0 0
    %1273 = vmatprep.mubr.bf16.mxu0 0
    %1274 = vmatmul.mubr.bf16.gmra.mxu0 %v1239
    %v1275 = vpop.f32.mrf.mxu0
    %v1276 = vadd.f32 0.0, %v1275
    %v1277 = vpop.f32.mrf.mxu0
    %v1278 = vpop.f32.mrf.mxu0
    %v1279 = vpop.f32.mrf.mxu0
    %1280 = vdwg.mxu0
    %v1282 = vrot.slane %v1276, 7
    %v1285 = vadd.f32 %v140, %v1282
    %v1286 = vadd.f32 %v148, %v1276
    %v1287 = vxor.u32 %v1285, 2147483648
    %v1288 = vxor.u32 %v1286, 2147483648
    %v1289 = vmul.f32 %v1287, 1.442695
    %v1290 = vpow.pop %v1289
    %v1291 = vmul.f32 %v1288, 1.442695
    %v1292 = vpow.pop %v1291
    %v1293 = vadd.f32 %v1290, 1.0
    %v1294 = vadd.f32 %v1292, 1.0
    %v1295 = vrcp.pop %v1293
    %v1296 = vmul.f32 1.0, %v1295
    %v1297 = vrcp.pop %v1294
    %v1298 = vmul.f32 1.0, %v1297
    %v1299 = vadd.f32 %v1276, %v231
    %v1301 = vrot.slane %v1299, 7
    %1302 = vrot.lane.b32.xlu0 %v1301, 64
    %v1303 = vpop.permute.xlu0 %1302
    %1304 = vrot.lane.b32.xlu0 %v1299, 64
    %v1305 = vpop.permute.xlu0 %1304
    %v1308 = vmul.f32 %v1296, %v1303
    %v1309 = vmul.f32 %v1298, %v1305
    %1312 = vrot.lane.b32.xlu0 %v1308, 64
    %v1313 = vpop.permute.xlu0 %1312
    %1314 = vrot.lane.b32.xlu0 %v1309, 64
    %v1315 = vpop.permute.xlu0 %1314
    %v1318 = vadd.f32 %v140, %v1313
    %v1319 = vadd.f32 %v148, %v1315
    %v1320 = vtanh.pop %v1318
    %v1321 = vtanh.pop %v1319
    %v1322 = vsub.f32 1.0, %v1296
    %v1323 = vsub.f32 1.0, %v1298
    %1326 = vrot.lane.b32.xlu0 %v1320, 96
    %v1327 = vpop.permute.xlu0 %1326
    %1328 = vrot.lane.b32.xlu0 %v1321, 96
    %v1329 = vpop.permute.xlu0 %1328
    %v1332 = vmul.f32 %v1322, %v1327
    %v1333 = vmul.f32 %v1323, %v1329
    %v1336 = vrot.slane %v1225, 7
    %v1337 = vrot.slane %v1226, 7
    %v1340 = vmul.f32 %v1296, %v1336
    %v1341 = vmul.f32 %v1298, %v1337
    %v1342 = vadd.f32 %v1332, %v1340
    %v1343 = vadd.f32 %v1333, %v1341
    %v1344 = vpack.c.bf16 %v1342, %v1342
    %v1345 = vpack.c.bf16 %v1343, %v1343
    %v1348 = vunpack.c.l.b16 %v1344
    %v1349 = vunpack.c.l.b16 %v1345
    %v1350 = vrot.slane %v1348, 1
    %v1351 = vsel %vm279, %v1349, %v1350
    %v1352 = vpack.c.b16 %v1351, %v1351
    %1353 = vrot.lane.b32.xlu0 %v1352, 96
    %v1354 = vpop.permute.xlu0 %1353
    %v1356 = vsel %vm163, %v1354, 0
    %1358 = vmatprep.subr.bf16.mxu0 0
    %1359 = vmatpush1.bf16.msra.mxu0 0
    %1360 = vmatprep.subr.bf16.mxu0 0
    %1361 = vmatpush1.bf16.msra.mxu0 0
    %1362 = vmatprep.subr.bf16.mxu0 0
    %1363 = vmatpush1.bf16.msra.mxu0 0
    %1364 = vmatprep.subr.bf16.mxu0 0
    %1365 = vmatpush1.bf16.msra.mxu0 0
    %1366 = vmatprep.subr.bf16.mxu0 0
    %1367 = vmatpush1.bf16.msra.mxu0 0
    %1368 = vmatprep.subr.bf16.mxu0 0
    %1369 = vmatpush1.bf16.msra.mxu0 0
    %1370 = vmatprep.subr.bf16.mxu0 0
    %1371 = vmatpush1.bf16.msra.mxu0 %v160
    %1372 = vmatprep.subr.bf16.mxu0 0
    %1373 = vmatpush1.bf16.msra.mxu0 %v159
    %1374 = vmatprep.subr.bf16.mxu0 0
    %1375 = vmatpush2.bf16.msra.mxu0 0
    %1376 = vmatprep.subr.bf16.mxu0 0
    %1377 = vmatpush2.bf16.msra.mxu0 0
    %1378 = vmatprep.subr.bf16.mxu0 0
    %1379 = vmatpush2.bf16.msra.mxu0 0
    %1380 = vmatprep.subr.bf16.mxu0 0
    %1381 = vmatpush2.bf16.msra.mxu0 0
    %1382 = vmatprep.subr.bf16.mxu0 0
    %1383 = vmatpush2.bf16.msra.mxu0 0
    %1384 = vmatprep.subr.bf16.mxu0 0
    %1385 = vmatpush2.bf16.msra.mxu0 0
    %1386 = vmatprep.subr.bf16.mxu0 0
    %1387 = vmatpush2.bf16.msra.mxu0 0
    %1388 = vmatprep.subr.bf16.mxu0 0
    %1389 = vmatpush2.bf16.msra.mxu0 0
    %1390 = vmatprep.mubr.bf16.mxu0 0
    %1391 = vmatmul.mubr.bf16.gmra.mxu0 %v1356
    %v1392 = vpop.f32.mrf.mxu0
    %v1393 = vadd.f32 0.0, %v1392
    %v1394 = vpop.f32.mrf.mxu0
    %v1395 = vpop.f32.mrf.mxu0
    %v1396 = vpop.f32.mrf.mxu0
    %1397 = vdwg.mxu0
    %v1399 = vrot.slane %v1393, 6
    %v1400 = vrot.slane %v1393, 7
    %v1403 = vadd.f32 %v140, %v1399
    %v1404 = vadd.f32 %v148, %v1400
    %v1405 = vxor.u32 %v1403, 2147483648
    %v1406 = vxor.u32 %v1404, 2147483648
    %v1407 = vmul.f32 %v1405, 1.442695
    %v1408 = vpow.pop %v1407
    %v1409 = vmul.f32 %v1406, 1.442695
    %v1410 = vpow.pop %v1409
    %v1411 = vadd.f32 %v1408, 1.0
    %v1412 = vadd.f32 %v1410, 1.0
    %v1413 = vrcp.pop %v1411
    %v1414 = vmul.f32 1.0, %v1413
    %v1415 = vrcp.pop %v1412
    %v1416 = vmul.f32 1.0, %v1415
    %v1417 = vadd.f32 %v1393, %v231
    %v1419 = vrot.slane %v1417, 6
    %v1420 = vrot.slane %v1417, 7
    %1421 = vrot.lane.b32.xlu0 %v1419, 64
    %v1422 = vpop.permute.xlu0 %1421
    %1423 = vrot.lane.b32.xlu0 %v1420, 64
    %v1424 = vpop.permute.xlu0 %1423
    %v1427 = vmul.f32 %v1414, %v1422
    %v1428 = vmul.f32 %v1416, %v1424
    %1431 = vrot.lane.b32.xlu0 %v1427, 64
    %v1432 = vpop.permute.xlu0 %1431
    %1433 = vrot.lane.b32.xlu0 %v1428, 64
    %v1434 = vpop.permute.xlu0 %1433
    %v1437 = vadd.f32 %v140, %v1432
    %v1438 = vadd.f32 %v148, %v1434
    %v1439 = vtanh.pop %v1437
    %v1440 = vtanh.pop %v1438
    %v1441 = vsub.f32 1.0, %v1414
    %v1442 = vsub.f32 1.0, %v1416
    %1445 = vrot.lane.b32.xlu0 %v1439, 96
    %v1446 = vpop.permute.xlu0 %1445
    %1447 = vrot.lane.b32.xlu0 %v1440, 96
    %v1448 = vpop.permute.xlu0 %1447
    %v1451 = vmul.f32 %v1441, %v1446
    %v1452 = vmul.f32 %v1442, %v1448
    %v1455 = vrot.slane %v1342, 7
    %v1456 = vrot.slane %v1343, 7
    %v1459 = vmul.f32 %v1414, %v1455
    %v1460 = vmul.f32 %v1416, %v1456
    %v1461 = vadd.f32 %v1451, %v1459
    %v1462 = vadd.f32 %v1452, %v1460
    %v1463 = vpack.c.bf16 %v1461, %v1461
    %v1464 = vpack.c.bf16 %v1462, %v1462
    %v1467 = vunpack.c.l.b16 %v1463
    %v1468 = vunpack.c.l.b16 %v1464
    %v1469 = vrot.slane %v1467, 2
    %v1470 = vrot.slane %v1468, 1
    %v1471 = vsel %vm279, %v1470, %v1469
    %v1472 = vpack.c.b16 %v1471, %v1471
    %1473 = vrot.lane.b32.xlu0 %v1472, 96
    %v1474 = vpop.permute.xlu0 %1473
    %v1476 = vsel %vm163, %v1474, 0
    %1478 = vmatprep.subr.bf16.mxu0 0
    %1479 = vmatpush1.bf16.msra.mxu0 0
    %1480 = vmatprep.subr.bf16.mxu0 0
    %1481 = vmatpush1.bf16.msra.mxu0 0
    %1482 = vmatprep.subr.bf16.mxu0 0
    %1483 = vmatpush1.bf16.msra.mxu0 0
    %1484 = vmatprep.subr.bf16.mxu0 0
    %1485 = vmatpush1.bf16.msra.mxu0 0
    %1486 = vmatprep.subr.bf16.mxu0 0
    %1487 = vmatpush1.bf16.msra.mxu0 0
    %1488 = vmatprep.subr.bf16.mxu0 0
    %1489 = vmatpush1.bf16.msra.mxu0 0
    %1490 = vmatprep.subr.bf16.mxu0 0
    %1491 = vmatpush1.bf16.msra.mxu0 %v160
    %1492 = vmatprep.subr.bf16.mxu0 0
    %1493 = vmatpush1.bf16.msra.mxu0 %v159
    %1494 = vmatprep.subr.bf16.mxu0 0
    %1495 = vmatpush2.bf16.msra.mxu0 0
    %1496 = vmatprep.subr.bf16.mxu0 0
    %1497 = vmatpush2.bf16.msra.mxu0 0
    %1498 = vmatprep.subr.bf16.mxu0 0
    %1499 = vmatpush2.bf16.msra.mxu0 0
    %1500 = vmatprep.subr.bf16.mxu0 0
    %1501 = vmatpush2.bf16.msra.mxu0 0
    %1502 = vmatprep.subr.bf16.mxu0 0
    %1503 = vmatpush2.bf16.msra.mxu0 0
    %1504 = vmatprep.subr.bf16.mxu0 0
    %1505 = vmatpush2.bf16.msra.mxu0 0
    %1506 = vmatprep.subr.bf16.mxu0 0
    %1507 = vmatpush2.bf16.msra.mxu0 0
    %1508 = vmatprep.subr.bf16.mxu0 0
    %1509 = vmatpush2.bf16.msra.mxu0 0
    %1510 = vmatprep.mubr.bf16.mxu0 0
    %1511 = vmatmul.mubr.bf16.gmra.mxu0 %v1476
    %v1512 = vpop.f32.mrf.mxu0
    %v1513 = vadd.f32 0.0, %v1512
    %v1514 = vpop.f32.mrf.mxu0
    %v1515 = vpop.f32.mrf.mxu0
    %v1516 = vpop.f32.mrf.mxu0
    %1517 = vdwg.mxu0
    %v1519 = vrot.slane %v1513, 5
    %v1520 = vrot.slane %v1513, 6
    %v1523 = vadd.f32 %v140, %v1519
    %v1524 = vadd.f32 %v148, %v1520
    %v1525 = vxor.u32 %v1523, 2147483648
    %v1526 = vxor.u32 %v1524, 2147483648
    %v1527 = vmul.f32 %v1525, 1.442695
    %v1528 = vpow.pop %v1527
    %v1529 = vmul.f32 %v1526, 1.442695
    %v1530 = vpow.pop %v1529
    %v1531 = vadd.f32 %v1528, 1.0
    %v1532 = vadd.f32 %v1530, 1.0
    %v1533 = vrcp.pop %v1531
    %v1534 = vmul.f32 1.0, %v1533
    %v1535 = vrcp.pop %v1532
    %v1536 = vmul.f32 1.0, %v1535
    %v1537 = vadd.f32 %v1513, %v231
    %v1539 = vrot.slane %v1537, 5
    %v1540 = vrot.slane %v1537, 6
    %1541 = vrot.lane.b32.xlu0 %v1539, 64
    %v1542 = vpop.permute.xlu0 %1541
    %1543 = vrot.lane.b32.xlu0 %v1540, 64
    %v1544 = vpop.permute.xlu0 %1543
    %v1547 = vmul.f32 %v1534, %v1542
    %v1548 = vmul.f32 %v1536, %v1544
    %1551 = vrot.lane.b32.xlu0 %v1547, 64
    %v1552 = vpop.permute.xlu0 %1551
    %1553 = vrot.lane.b32.xlu0 %v1548, 64
    %v1554 = vpop.permute.xlu0 %1553
    %v1557 = vadd.f32 %v140, %v1552
    %v1558 = vadd.f32 %v148, %v1554
    %v1559 = vtanh.pop %v1557
    %v1560 = vtanh.pop %v1558
    %v1561 = vsub.f32 1.0, %v1534
    %v1562 = vsub.f32 1.0, %v1536
    %1565 = vrot.lane.b32.xlu0 %v1559, 96
    %v1566 = vpop.permute.xlu0 %1565
    %1567 = vrot.lane.b32.xlu0 %v1560, 96
    %v1568 = vpop.permute.xlu0 %1567
    %v1571 = vmul.f32 %v1561, %v1566
    %v1572 = vmul.f32 %v1562, %v1568
    %v1575 = vrot.slane %v1461, 7
    %v1576 = vrot.slane %v1462, 7
    %v1579 = vmul.f32 %v1534, %v1575
    %v1580 = vmul.f32 %v1536, %v1576
    %v1581 = vadd.f32 %v1571, %v1579
    %v1582 = vadd.f32 %v1572, %v1580
    %v1583 = vpack.c.bf16 %v1581, %v1581
    %v1584 = vpack.c.bf16 %v1582, %v1582
    %v1587 = vunpack.c.l.b16 %v1583
    %v1588 = vunpack.c.l.b16 %v1584
    %v1589 = vrot.slane %v1587, 3
    %v1590 = vrot.slane %v1588, 2
    %v1591 = vsel %vm279, %v1590, %v1589
    %v1592 = vpack.c.b16 %v1591, %v1591
    %1593 = vrot.lane.b32.xlu0 %v1592, 96
    %v1594 = vpop.permute.xlu0 %1593
    %v1596 = vsel %vm163, %v1594, 0
    %1598 = vmatprep.subr.bf16.mxu0 0
    %1599 = vmatpush1.bf16.msra.mxu0 0
    %1600 = vmatprep.subr.bf16.mxu0 0
    %1601 = vmatpush1.bf16.msra.mxu0 0
    %1602 = vmatprep.subr.bf16.mxu0 0
    %1603 = vmatpush1.bf16.msra.mxu0 0
    %1604 = vmatprep.subr.bf16.mxu0 0
    %1605 = vmatpush1.bf16.msra.mxu0 0
    %1606 = vmatprep.subr.bf16.mxu0 0
    %1607 = vmatpush1.bf16.msra.mxu0 0
    %1608 = vmatprep.subr.bf16.mxu0 0
    %1609 = vmatpush1.bf16.msra.mxu0 0
    %1610 = vmatprep.subr.bf16.mxu0 0
    %1611 = vmatpush1.bf16.msra.mxu0 %v160
    %1612 = vmatprep.subr.bf16.mxu0 0
    %1613 = vmatpush1.bf16.msra.mxu0 %v159
    %1614 = vmatprep.subr.bf16.mxu0 0
    %1615 = vmatpush2.bf16.msra.mxu0 0
    %1616 = vmatprep.subr.bf16.mxu0 0
    %1617 = vmatpush2.bf16.msra.mxu0 0
    %1618 = vmatprep.subr.bf16.mxu0 0
    %1619 = vmatpush2.bf16.msra.mxu0 0
    %1620 = vmatprep.subr.bf16.mxu0 0
    %1621 = vmatpush2.bf16.msra.mxu0 0
    %1622 = vmatprep.subr.bf16.mxu0 0
    %1623 = vmatpush2.bf16.msra.mxu0 0
    %1624 = vmatprep.subr.bf16.mxu0 0
    %1625 = vmatpush2.bf16.msra.mxu0 0
    %1626 = vmatprep.subr.bf16.mxu0 0
    %1627 = vmatpush2.bf16.msra.mxu0 0
    %1628 = vmatprep.subr.bf16.mxu0 0
    %1629 = vmatpush2.bf16.msra.mxu0 0
    %1630 = vmatprep.mubr.bf16.mxu0 0
    %1631 = vmatmul.mubr.bf16.gmra.mxu0 %v1596
    %v1632 = vpop.f32.mrf.mxu0
    %v1633 = vadd.f32 0.0, %v1632
    %v1634 = vpop.f32.mrf.mxu0
    %v1635 = vpop.f32.mrf.mxu0
    %v1636 = vpop.f32.mrf.mxu0
    %1637 = vdwg.mxu0
    %v1639 = vrot.slane %v1633, 4
    %v1640 = vrot.slane %v1633, 5
    %v1643 = vadd.f32 %v140, %v1639
    %v1644 = vadd.f32 %v148, %v1640
    %v1645 = vxor.u32 %v1643, 2147483648
    %v1646 = vxor.u32 %v1644, 2147483648
    %v1647 = vmul.f32 %v1645, 1.442695
    %v1648 = vpow.pop %v1647
    %v1649 = vmul.f32 %v1646, 1.442695
    %v1650 = vpow.pop %v1649
    %v1651 = vadd.f32 %v1648, 1.0
    %v1652 = vadd.f32 %v1650, 1.0
    %v1653 = vrcp.pop %v1651
    %v1654 = vmul.f32 1.0, %v1653
    %v1655 = vrcp.pop %v1652
    %v1656 = vmul.f32 1.0, %v1655
    %v1657 = vadd.f32 %v1633, %v231
    %v1659 = vrot.slane %v1657, 4
    %v1660 = vrot.slane %v1657, 5
    %1661 = vrot.lane.b32.xlu0 %v1659, 64
    %v1662 = vpop.permute.xlu0 %1661
    %1663 = vrot.lane.b32.xlu0 %v1660, 64
    %v1664 = vpop.permute.xlu0 %1663
    %v1667 = vmul.f32 %v1654, %v1662
    %v1668 = vmul.f32 %v1656, %v1664
    %1671 = vrot.lane.b32.xlu0 %v1667, 64
    %v1672 = vpop.permute.xlu0 %1671
    %1673 = vrot.lane.b32.xlu0 %v1668, 64
    %v1674 = vpop.permute.xlu0 %1673
    %v1677 = vadd.f32 %v140, %v1672
    %v1678 = vadd.f32 %v148, %v1674
    %v1679 = vtanh.pop %v1677
    %v1680 = vtanh.pop %v1678
    %v1681 = vsub.f32 1.0, %v1654
    %v1682 = vsub.f32 1.0, %v1656
    %1685 = vrot.lane.b32.xlu0 %v1679, 96
    %v1686 = vpop.permute.xlu0 %1685
    %1687 = vrot.lane.b32.xlu0 %v1680, 96
    %v1688 = vpop.permute.xlu0 %1687
    %v1691 = vmul.f32 %v1681, %v1686
    %v1692 = vmul.f32 %v1682, %v1688
    %v1695 = vrot.slane %v1581, 7
    %v1696 = vrot.slane %v1582, 7
    %v1699 = vmul.f32 %v1654, %v1695
    %v1700 = vmul.f32 %v1656, %v1696
    %v1701 = vadd.f32 %v1691, %v1699
    %v1702 = vadd.f32 %v1692, %v1700
    %v1703 = vpack.c.bf16 %v1701, %v1701
    %v1704 = vpack.c.bf16 %v1702, %v1702
    %v1707 = vunpack.c.l.b16 %v1703
    %v1708 = vunpack.c.l.b16 %v1704
    %v1709 = vrot.slane %v1707, 4
    %v1710 = vrot.slane %v1708, 3
    %v1711 = vsel %vm279, %v1710, %v1709
    %v1712 = vpack.c.b16 %v1711, %v1711
    %1713 = vrot.lane.b32.xlu0 %v1712, 96
    %v1714 = vpop.permute.xlu0 %1713
    %v1716 = vsel %vm163, %v1714, 0
    %1718 = vmatprep.subr.bf16.mxu0 0
    %1719 = vmatpush1.bf16.msra.mxu0 0
    %1720 = vmatprep.subr.bf16.mxu0 0
    %1721 = vmatpush1.bf16.msra.mxu0 0
    %1722 = vmatprep.subr.bf16.mxu0 0
    %1723 = vmatpush1.bf16.msra.mxu0 0
    %1724 = vmatprep.subr.bf16.mxu0 0
    %1725 = vmatpush1.bf16.msra.mxu0 0
    %1726 = vmatprep.subr.bf16.mxu0 0
    %1727 = vmatpush1.bf16.msra.mxu0 0
    %1728 = vmatprep.subr.bf16.mxu0 0
    %1729 = vmatpush1.bf16.msra.mxu0 0
    %1730 = vmatprep.subr.bf16.mxu0 0
    %1731 = vmatpush1.bf16.msra.mxu0 %v160
    %1732 = vmatprep.subr.bf16.mxu0 0
    %1733 = vmatpush1.bf16.msra.mxu0 %v159
    %1734 = vmatprep.subr.bf16.mxu0 0
    %1735 = vmatpush2.bf16.msra.mxu0 0
    %1736 = vmatprep.subr.bf16.mxu0 0
    %1737 = vmatpush2.bf16.msra.mxu0 0
    %1738 = vmatprep.subr.bf16.mxu0 0
    %1739 = vmatpush2.bf16.msra.mxu0 0
    %1740 = vmatprep.subr.bf16.mxu0 0
    %1741 = vmatpush2.bf16.msra.mxu0 0
    %1742 = vmatprep.subr.bf16.mxu0 0
    %1743 = vmatpush2.bf16.msra.mxu0 0
    %1744 = vmatprep.subr.bf16.mxu0 0
    %1745 = vmatpush2.bf16.msra.mxu0 0
    %1746 = vmatprep.subr.bf16.mxu0 0
    %1747 = vmatpush2.bf16.msra.mxu0 0
    %1748 = vmatprep.subr.bf16.mxu0 0
    %1749 = vmatpush2.bf16.msra.mxu0 0
    %1750 = vmatprep.mubr.bf16.mxu0 0
    %1751 = vmatmul.mubr.bf16.gmra.mxu0 %v1716
    %v1752 = vpop.f32.mrf.mxu0
    %v1753 = vadd.f32 0.0, %v1752
    %v1754 = vpop.f32.mrf.mxu0
    %v1755 = vpop.f32.mrf.mxu0
    %v1756 = vpop.f32.mrf.mxu0
    %1757 = vdwg.mxu0
    %v1759 = vrot.slane %v1753, 3
    %v1760 = vrot.slane %v1753, 4
    %v1763 = vadd.f32 %v140, %v1759
    %v1764 = vadd.f32 %v148, %v1760
    %v1765 = vxor.u32 %v1763, 2147483648
    %v1766 = vxor.u32 %v1764, 2147483648
    %v1767 = vmul.f32 %v1765, 1.442695
    %v1768 = vpow.pop %v1767
    %v1769 = vmul.f32 %v1766, 1.442695
    %v1770 = vpow.pop %v1769
    %v1771 = vadd.f32 %v1768, 1.0
    %v1772 = vadd.f32 %v1770, 1.0
    %v1773 = vrcp.pop %v1771
    %v1774 = vmul.f32 1.0, %v1773
    %v1775 = vrcp.pop %v1772
    %v1776 = vmul.f32 1.0, %v1775
    %v1777 = vadd.f32 %v1753, %v231
    %v1779 = vrot.slane %v1777, 3
    %v1780 = vrot.slane %v1777, 4
    %1781 = vrot.lane.b32.xlu0 %v1779, 64
    %v1782 = vpop.permute.xlu0 %1781
    %1783 = vrot.lane.b32.xlu0 %v1780, 64
    %v1784 = vpop.permute.xlu0 %1783
    %v1787 = vmul.f32 %v1774, %v1782
    %v1788 = vmul.f32 %v1776, %v1784
    %1791 = vrot.lane.b32.xlu0 %v1787, 64
    %v1792 = vpop.permute.xlu0 %1791
    %1793 = vrot.lane.b32.xlu0 %v1788, 64
    %v1794 = vpop.permute.xlu0 %1793
    %v1797 = vadd.f32 %v140, %v1792
    %v1798 = vadd.f32 %v148, %v1794
    %v1799 = vtanh.pop %v1797
    %v1800 = vtanh.pop %v1798
    %v1801 = vsub.f32 1.0, %v1774
    %v1802 = vsub.f32 1.0, %v1776
    %1805 = vrot.lane.b32.xlu0 %v1799, 96
    %v1806 = vpop.permute.xlu0 %1805
    %1807 = vrot.lane.b32.xlu0 %v1800, 96
    %v1808 = vpop.permute.xlu0 %1807
    %v1811 = vmul.f32 %v1801, %v1806
    %v1812 = vmul.f32 %v1802, %v1808
    %v1815 = vrot.slane %v1701, 7
    %v1816 = vrot.slane %v1702, 7
    %v1819 = vmul.f32 %v1774, %v1815
    %v1820 = vmul.f32 %v1776, %v1816
    %v1821 = vadd.f32 %v1811, %v1819
    %v1822 = vadd.f32 %v1812, %v1820
    %v1823 = vpack.c.bf16 %v1821, %v1821
    %v1824 = vpack.c.bf16 %v1822, %v1822
    %v1827 = vunpack.c.l.b16 %v1823
    %v1828 = vunpack.c.l.b16 %v1824
    %v1829 = vrot.slane %v1827, 5
    %v1830 = vrot.slane %v1828, 4
    %v1831 = vsel %vm279, %v1830, %v1829
    %v1832 = vpack.c.b16 %v1831, %v1831
    %1833 = vrot.lane.b32.xlu0 %v1832, 96
    %v1834 = vpop.permute.xlu0 %1833
    %v1836 = vsel %vm163, %v1834, 0
    %1838 = vmatprep.subr.bf16.mxu0 0
    %1839 = vmatpush1.bf16.msra.mxu0 0
    %1840 = vmatprep.subr.bf16.mxu0 0
    %1841 = vmatpush1.bf16.msra.mxu0 0
    %1842 = vmatprep.subr.bf16.mxu0 0
    %1843 = vmatpush1.bf16.msra.mxu0 0
    %1844 = vmatprep.subr.bf16.mxu0 0
    %1845 = vmatpush1.bf16.msra.mxu0 0
    %1846 = vmatprep.subr.bf16.mxu0 0
    %1847 = vmatpush1.bf16.msra.mxu0 0
    %1848 = vmatprep.subr.bf16.mxu0 0
    %1849 = vmatpush1.bf16.msra.mxu0 0
    %1850 = vmatprep.subr.bf16.mxu0 0
    %1851 = vmatpush1.bf16.msra.mxu0 %v160
    %1852 = vmatprep.subr.bf16.mxu0 0
    %1853 = vmatpush1.bf16.msra.mxu0 %v159
    %1854 = vmatprep.subr.bf16.mxu0 0
    %1855 = vmatpush2.bf16.msra.mxu0 0
    %1856 = vmatprep.subr.bf16.mxu0 0
    %1857 = vmatpush2.bf16.msra.mxu0 0
    %1858 = vmatprep.subr.bf16.mxu0 0
    %1859 = vmatpush2.bf16.msra.mxu0 0
    %1860 = vmatprep.subr.bf16.mxu0 0
    %1861 = vmatpush2.bf16.msra.mxu0 0
    %1862 = vmatprep.subr.bf16.mxu0 0
    %1863 = vmatpush2.bf16.msra.mxu0 0
    %1864 = vmatprep.subr.bf16.mxu0 0
    %1865 = vmatpush2.bf16.msra.mxu0 0
    %1866 = vmatprep.subr.bf16.mxu0 0
    %1867 = vmatpush2.bf16.msra.mxu0 0
    %1868 = vmatprep.subr.bf16.mxu0 0
    %1869 = vmatpush2.bf16.msra.mxu0 0
    %1870 = vmatprep.mubr.bf16.mxu0 0
    %1871 = vmatmul.mubr.bf16.gmra.mxu0 %v1836
    %v1872 = vpop.f32.mrf.mxu0
    %v1873 = vadd.f32 0.0, %v1872
    %v1874 = vpop.f32.mrf.mxu0
    %v1875 = vpop.f32.mrf.mxu0
    %v1876 = vpop.f32.mrf.mxu0
    %1877 = vdwg.mxu0
    %v1879 = vrot.slane %v1873, 2
    %v1880 = vrot.slane %v1873, 3
    %v1883 = vadd.f32 %v140, %v1879
    %v1884 = vadd.f32 %v148, %v1880
    %v1885 = vxor.u32 %v1883, 2147483648
    %v1886 = vxor.u32 %v1884, 2147483648
    %v1887 = vmul.f32 %v1885, 1.442695
    %v1888 = vpow.pop %v1887
    %v1889 = vmul.f32 %v1886, 1.442695
    %v1890 = vpow.pop %v1889
    %v1891 = vadd.f32 %v1888, 1.0
    %v1892 = vadd.f32 %v1890, 1.0
    %v1893 = vrcp.pop %v1891
    %v1894 = vmul.f32 1.0, %v1893
    %v1895 = vrcp.pop %v1892
    %v1896 = vmul.f32 1.0, %v1895
    %v1897 = vadd.f32 %v1873, %v231
    %v1899 = vrot.slane %v1897, 2
    %v1900 = vrot.slane %v1897, 3
    %1901 = vrot.lane.b32.xlu0 %v1899, 64
    %v1902 = vpop.permute.xlu0 %1901
    %1903 = vrot.lane.b32.xlu0 %v1900, 64
    %v1904 = vpop.permute.xlu0 %1903
    %v1907 = vmul.f32 %v1894, %v1902
    %v1908 = vmul.f32 %v1896, %v1904
    %1911 = vrot.lane.b32.xlu0 %v1907, 64
    %v1912 = vpop.permute.xlu0 %1911
    %1913 = vrot.lane.b32.xlu0 %v1908, 64
    %v1914 = vpop.permute.xlu0 %1913
    %v1917 = vadd.f32 %v140, %v1912
    %v1918 = vadd.f32 %v148, %v1914
    %v1919 = vtanh.pop %v1917
    %v1920 = vtanh.pop %v1918
    %v1921 = vsub.f32 1.0, %v1894
    %v1922 = vsub.f32 1.0, %v1896
    %1925 = vrot.lane.b32.xlu0 %v1919, 96
    %v1926 = vpop.permute.xlu0 %1925
    %1927 = vrot.lane.b32.xlu0 %v1920, 96
    %v1928 = vpop.permute.xlu0 %1927
    %v1931 = vmul.f32 %v1921, %v1926
    %v1932 = vmul.f32 %v1922, %v1928
    %v1935 = vrot.slane %v1821, 7
    %v1936 = vrot.slane %v1822, 7
    %v1939 = vmul.f32 %v1894, %v1935
    %v1940 = vmul.f32 %v1896, %v1936
    %v1941 = vadd.f32 %v1931, %v1939
    %v1942 = vadd.f32 %v1932, %v1940
    %v1943 = vpack.c.bf16 %v1941, %v1941
    %v1944 = vpack.c.bf16 %v1942, %v1942
    %v1947 = vunpack.c.l.b16 %v1943
    %v1948 = vunpack.c.l.b16 %v1944
    %v1949 = vrot.slane %v1947, 6
    %v1950 = vrot.slane %v1948, 5
    %v1951 = vsel %vm279, %v1950, %v1949
    %v1952 = vpack.c.b16 %v1951, %v1951
    %1953 = vrot.lane.b32.xlu0 %v1952, 96
    %v1954 = vpop.permute.xlu0 %1953
    %v1956 = vsel %vm163, %v1954, 0
    %1958 = vmatprep.subr.bf16.mxu0 0
    %1959 = vmatpush1.bf16.msra.mxu0 0
    %1960 = vmatprep.subr.bf16.mxu0 0
    %1961 = vmatpush1.bf16.msra.mxu0 0
    %1962 = vmatprep.subr.bf16.mxu0 0
    %1963 = vmatpush1.bf16.msra.mxu0 0
    %1964 = vmatprep.subr.bf16.mxu0 0
    %1965 = vmatpush1.bf16.msra.mxu0 0
    %1966 = vmatprep.subr.bf16.mxu0 0
    %1967 = vmatpush1.bf16.msra.mxu0 0
    %1968 = vmatprep.subr.bf16.mxu0 0
    %1969 = vmatpush1.bf16.msra.mxu0 0
    %1970 = vmatprep.subr.bf16.mxu0 0
    %1971 = vmatpush1.bf16.msra.mxu0 %v160
    %1972 = vmatprep.subr.bf16.mxu0 0
    %1973 = vmatpush1.bf16.msra.mxu0 %v159
    %1974 = vmatprep.subr.bf16.mxu0 0
    %1975 = vmatpush2.bf16.msra.mxu0 0
    %1976 = vmatprep.subr.bf16.mxu0 0
    %1977 = vmatpush2.bf16.msra.mxu0 0
    %1978 = vmatprep.subr.bf16.mxu0 0
    %1979 = vmatpush2.bf16.msra.mxu0 0
    %1980 = vmatprep.subr.bf16.mxu0 0
    %1981 = vmatpush2.bf16.msra.mxu0 0
    %1982 = vmatprep.subr.bf16.mxu0 0
    %1983 = vmatpush2.bf16.msra.mxu0 0
    %1984 = vmatprep.subr.bf16.mxu0 0
    %1985 = vmatpush2.bf16.msra.mxu0 0
    %1986 = vmatprep.subr.bf16.mxu0 0
    %1987 = vmatpush2.bf16.msra.mxu0 0
    %1988 = vmatprep.subr.bf16.mxu0 0
    %1989 = vmatpush2.bf16.msra.mxu0 0
    %1990 = vmatprep.mubr.bf16.mxu0 0
    %1991 = vmatmul.mubr.bf16.gmra.mxu0 %v1956
    %v1992 = vpop.f32.mrf.mxu0
    %v1993 = vadd.f32 0.0, %v1992
    %v1994 = vpop.f32.mrf.mxu0
    %v1995 = vpop.f32.mrf.mxu0
    %v1996 = vpop.f32.mrf.mxu0
    %1997 = vdwg.mxu0
    %v1999 = vrot.slane %v1993, 1
    %v2000 = vrot.slane %v1993, 2
    %v2003 = vadd.f32 %v140, %v1999
    %v2004 = vadd.f32 %v148, %v2000
    %v2005 = vxor.u32 %v2003, 2147483648
    %v2006 = vxor.u32 %v2004, 2147483648
    %v2007 = vmul.f32 %v2005, 1.442695
    %v2008 = vpow.pop %v2007
    %v2009 = vmul.f32 %v2006, 1.442695
    %v2010 = vpow.pop %v2009
    %v2011 = vadd.f32 %v2008, 1.0
    %v2012 = vadd.f32 %v2010, 1.0
    %v2013 = vrcp.pop %v2011
    %v2014 = vmul.f32 1.0, %v2013
    %v2015 = vrcp.pop %v2012
    %v2016 = vmul.f32 1.0, %v2015
    %v2017 = vadd.f32 %v1993, %v231
    %v2019 = vrot.slane %v2017, 1
    %v2020 = vrot.slane %v2017, 2
    %2021 = vrot.lane.b32.xlu0 %v2019, 64
    %v2022 = vpop.permute.xlu0 %2021
    %2023 = vrot.lane.b32.xlu0 %v2020, 64
    %v2024 = vpop.permute.xlu0 %2023
    %v2027 = vmul.f32 %v2014, %v2022
    %v2028 = vmul.f32 %v2016, %v2024
    %2031 = vrot.lane.b32.xlu0 %v2027, 64
    %v2032 = vpop.permute.xlu0 %2031
    %2033 = vrot.lane.b32.xlu0 %v2028, 64
    %v2034 = vpop.permute.xlu0 %2033
    %v2037 = vadd.f32 %v140, %v2032
    %v2038 = vadd.f32 %v148, %v2034
    %v2039 = vtanh.pop %v2037
    %v2040 = vtanh.pop %v2038
    %v2041 = vsub.f32 1.0, %v2014
    %v2042 = vsub.f32 1.0, %v2016
    %2045 = vrot.lane.b32.xlu0 %v2039, 96
    %v2046 = vpop.permute.xlu0 %2045
    %2047 = vrot.lane.b32.xlu0 %v2040, 96
    %v2048 = vpop.permute.xlu0 %2047
    %v2051 = vmul.f32 %v2041, %v2046
    %v2052 = vmul.f32 %v2042, %v2048
    %v2055 = vrot.slane %v1941, 7
    %v2056 = vrot.slane %v1942, 7
    %v2059 = vmul.f32 %v2014, %v2055
    %v2060 = vmul.f32 %v2016, %v2056
    %v2061 = vadd.f32 %v2051, %v2059
    %v2062 = vadd.f32 %v2052, %v2060
    %vm2063 = vcmask 1040384
    %v2064 = vsel %vm2063, %v270, %v388
    %v2065 = vsel %vm2063, %v271, %v389
    %vm2066 = vcmask 1041408
    %v2067 = vsel %vm2066, %v2064, %v507
    %v2068 = vsel %vm2066, %v2065, %v508
    %vm2069 = vcmask 1042432
    %v2070 = vsel %vm2069, %v2067, %v627
    %v2071 = vsel %vm2069, %v2068, %v628
    %v2072 = vsel %vm98, %v2070, %v747
    %v2073 = vsel %vm98, %v2071, %v748
    %vm2074 = vcmask 1044480
    %v2075 = vsel %vm2074, %v2072, %v867
    %v2076 = vsel %vm2074, %v2073, %v868
    %vm2077 = vcmask 1045504
    %v2078 = vsel %vm2077, %v2075, %v987
    %v2079 = vsel %vm2077, %v2076, %v988
    %vm2080 = vcmask 1046528
    %v2081 = vsel %vm2080, %v2078, %v1107
    %v2082 = vsel %vm2080, %v2079, %v1108
    %v2083 = vsel %vm2063, %v1225, %v1342
    %v2084 = vsel %vm2063, %v1226, %v1343
    %v2085 = vsel %vm2066, %v2083, %v1461
    %v2086 = vsel %vm2066, %v2084, %v1462
    %v2087 = vsel %vm2069, %v2085, %v1581
    %v2088 = vsel %vm2069, %v2086, %v1582
    %v2089 = vsel %vm98, %v2087, %v1701
    %v2090 = vsel %vm98, %v2088, %v1702
    %v2091 = vsel %vm2074, %v2089, %v1821
    %v2092 = vsel %vm2074, %v2090, %v1822
    %v2093 = vsel %vm2077, %v2091, %v1941
    %v2094 = vsel %vm2077, %v2092, %v1942
    %v2095 = vsel %vm2080, %v2093, %v2061
    %v2096 = vsel %vm2080, %v2094, %v2062
    %v2097 = vld [vmem:[%s1] sm:$0xf]
    %v2098 = vld [vmem:[%s1 + $0x4] sm:$0xf]
    %v2099 = vld [vmem:[%s6] sm:$0xf]
    %v2100 = vld [vmem:[%s6 + $0x4] sm:$0xf]
    %v2101 = vld [vmem:[%s6 + $0x8] sm:$0xf]
    %v2102 = vld [vmem:[%s6 + $0xc] sm:$0xf]
    %v2103 = vld [vmem:[%s6 + $0x10] sm:$0xf]
    %v2104 = vld [vmem:[%s7] sm:$0xf]
    %v2105 = vld [vmem:[%s7 + $0x4] sm:$0xf]
    %v2106 = vld [vmem:[%s7 + $0x8] sm:$0xf]
    %v2107 = vld [vmem:[%s7 + $0xc] sm:$0xf]
    %v2108 = vld [vmem:[%s8] sm:$0x1]
    %v2109 = vld [vmem:[%s9] sm:$0x1]
    %v2111 = vlaneseq
    %v2112 = vshrl.u32 %v2111, 7
    %v2113 = vsub.s32 0, %v2112
    %v2114 = vrot.slane %v2108, %v2113
    %v2118 = vunpack.c.l.b16 %v2097
    %v2119 = vunpack.c.l.b16 %v2098
    %v2120 = vpack.c.b16 %v2119, %v2118
    %v2126 = vunpack.c.l.b16 %v2099
    %v2127 = vunpack.c.l.b16 %v2100
    %v2128 = vunpack.c.l.b16 %v2101
    %v2129 = vunpack.c.l.b16 %v2102
    %v2130 = vunpack.c.l.b16 %v2103
    %v2131 = vpack.c.b16 %v2127, %v2126
    %v2132 = vpack.c.b16 %v2129, %v2128
    %v2133 = vpack.c.b16 %v2130, %v2130
    %v2137 = vsel %vm91, %v2120, 0
    %v2140 = vsel %vm98, %v2133, 0
    %2142 = vmatprep.subr.bf16.mxu0 0
    %2143 = vmatpush1.bf16.msra.mxu0 0
    %2144 = vmatprep.subr.bf16.mxu0 0
    %2145 = vmatpush1.bf16.msra.mxu0 0
    %2146 = vmatprep.subr.bf16.mxu0 0
    %2147 = vmatpush1.bf16.msra.mxu0 0
    %2148 = vmatprep.subr.bf16.mxu0 0
    %2149 = vmatpush1.bf16.msra.mxu0 0
    %2150 = vmatprep.subr.bf16.mxu0 0
    %2151 = vmatpush1.bf16.msra.mxu0 0
    %2152 = vmatprep.subr.bf16.mxu0 0
    %2153 = vmatpush1.bf16.msra.mxu0 %v2140
    %2154 = vmatprep.subr.bf16.mxu0 0
    %2155 = vmatpush1.bf16.msra.mxu0 %v2132
    %2156 = vmatprep.subr.bf16.mxu0 0
    %2157 = vmatpush1.bf16.msra.mxu0 %v2131
    %2158 = vmatprep.subr.bf16.mxu0 0
    %2159 = vmatpush2.bf16.msra.mxu0 0
    %2160 = vmatprep.subr.bf16.mxu0 0
    %2161 = vmatpush2.bf16.msra.mxu0 0
    %2162 = vmatprep.subr.bf16.mxu0 0
    %2163 = vmatpush2.bf16.msra.mxu0 0
    %2164 = vmatprep.subr.bf16.mxu0 0
    %2165 = vmatpush2.bf16.msra.mxu0 0
    %2166 = vmatprep.subr.bf16.mxu0 0
    %2167 = vmatpush2.bf16.msra.mxu0 0
    %2168 = vmatprep.subr.bf16.mxu0 0
    %2169 = vmatpush2.bf16.msra.mxu0 0
    %2170 = vmatprep.subr.bf16.mxu0 0
    %2171 = vmatpush2.bf16.msra.mxu0 0
    %2172 = vmatprep.subr.bf16.mxu0 0
    %2173 = vmatpush2.bf16.msra.mxu0 0
    %2174 = vmatprep.mubr.bf16.mxu0 0
    %2175 = vmatmul.mubr.bf16.gmra.mxu0 %v2137
    %v2176 = vpop.f32.mrf.mxu0
    %v2177 = vadd.f32 %v2114, %v2176
    %v2178 = vpop.f32.mrf.mxu0
    %v2179 = vpop.f32.mrf.mxu0
    %v2180 = vadd.f32 %v2114, %v2179
    %v2181 = vpop.f32.mrf.mxu0
    %2182 = vdwg.mxu0
    %v2183 = vpack.c.bf16 %v2061, %v2061
    %v2184 = vpack.c.bf16 %v2062, %v2062
    %v2187 = vunpack.c.l.b16 %v2183
    %v2188 = vunpack.c.l.b16 %v2184
    %v2189 = vrot.slane %v2187, 7
    %v2190 = vrot.slane %v2188, 6
    %v2191 = vsel %vm279, %v2190, %v2189
    %v2192 = vpack.c.b16 %v2191, %v2191
    %2193 = vrot.lane.b32.xlu0 %v2192, 96
    %v2194 = vpop.permute.xlu0 %2193
    %v2199 = vunpack.c.l.b16 %v2104
    %v2200 = vunpack.c.l.b16 %v2105
    %v2201 = vunpack.c.l.b16 %v2106
    %v2202 = vunpack.c.l.b16 %v2107
    %v2203 = vpack.c.b16 %v2200, %v2199
    %v2204 = vpack.c.b16 %v2202, %v2201
    %v2208 = vsel %vm163, %v2194, 0
    %2210 = vmatprep.subr.bf16.mxu0 0
    %2211 = vmatpush1.bf16.msra.mxu0 0
    %2212 = vmatprep.subr.bf16.mxu0 0
    %2213 = vmatpush1.bf16.msra.mxu0 0
    %2214 = vmatprep.subr.bf16.mxu0 0
    %2215 = vmatpush1.bf16.msra.mxu0 0
    %2216 = vmatprep.subr.bf16.mxu0 0
    %2217 = vmatpush1.bf16.msra.mxu0 0
    %2218 = vmatprep.subr.bf16.mxu0 0
    %2219 = vmatpush1.bf16.msra.mxu0 0
    %2220 = vmatprep.subr.bf16.mxu0 0
    %2221 = vmatpush1.bf16.msra.mxu0 0
    %2222 = vmatprep.subr.bf16.mxu0 0
    %2223 = vmatpush1.bf16.msra.mxu0 %v2204
    %2224 = vmatprep.subr.bf16.mxu0 0
    %2225 = vmatpush1.bf16.msra.mxu0 %v2203
    %2226 = vmatprep.subr.bf16.mxu0 0
    %2227 = vmatpush2.bf16.msra.mxu0 0
    %2228 = vmatprep.subr.bf16.mxu0 0
    %2229 = vmatpush2.bf16.msra.mxu0 0
    %2230 = vmatprep.subr.bf16.mxu0 0
    %2231 = vmatpush2.bf16.msra.mxu0 0
    %2232 = vmatprep.subr.bf16.mxu0 0
    %2233 = vmatpush2.bf16.msra.mxu0 0
    %2234 = vmatprep.subr.bf16.mxu0 0
    %2235 = vmatpush2.bf16.msra.mxu0 0
    %2236 = vmatprep.subr.bf16.mxu0 0
    %2237 = vmatpush2.bf16.msra.mxu0 0
    %2238 = vmatprep.subr.bf16.mxu0 0
    %2239 = vmatpush2.bf16.msra.mxu0 0
    %2240 = vmatprep.subr.bf16.mxu0 0
    %2241 = vmatpush2.bf16.msra.mxu0 0
    %2242 = vmatprep.mubr.bf16.mxu0 0
    %2243 = vmatmul.mubr.bf16.gmra.mxu0 %v2208
    %v2244 = vpop.f32.mrf.mxu0
    %v2245 = vadd.f32 0.0, %v2244
    %v2246 = vpop.f32.mrf.mxu0
    %v2247 = vpop.f32.mrf.mxu0
    %v2248 = vpop.f32.mrf.mxu0
    %2249 = vdwg.mxu0
    %v2251 = vrot.slane %v2245, 1
    %v2254 = vadd.f32 %v2177, %v2245
    %v2255 = vadd.f32 %v2180, %v2251
    %v2256 = vxor.u32 %v2254, 2147483648
    %v2257 = vxor.u32 %v2255, 2147483648
    %v2258 = vmul.f32 %v2256, 1.442695
    %v2259 = vpow.pop %v2258
    %v2260 = vmul.f32 %v2257, 1.442695
    %v2261 = vpow.pop %v2260
    %v2262 = vadd.f32 %v2259, 1.0
    %v2263 = vadd.f32 %v2261, 1.0
    %v2264 = vrcp.pop %v2262
    %v2265 = vmul.f32 1.0, %v2264
    %v2266 = vrcp.pop %v2263
    %v2267 = vmul.f32 1.0, %v2266
    %v2269 = vlaneseq
    %v2270 = vshrl.u32 %v2269, 7
    %v2271 = vsub.s32 0, %v2270
    %v2272 = vrot.slane %v2109, %v2271
    %2273 = vrot.lane.b32.xlu0 %v2272, 64
    %v2274 = vpop.permute.xlu0 %2273
    %v2276 = vadd.f32 %v2245, %v2274
    %v2278 = vrot.slane %v2276, 1
    %2279 = vrot.lane.b32.xlu0 %v2276, 64
    %v2280 = vpop.permute.xlu0 %2279
    %2281 = vrot.lane.b32.xlu0 %v2278, 64
    %v2282 = vpop.permute.xlu0 %2281
    %v2285 = vmul.f32 %v2265, %v2280
    %v2286 = vmul.f32 %v2267, %v2282
    %2289 = vrot.lane.b32.xlu0 %v2285, 64
    %v2290 = vpop.permute.xlu0 %2289
    %2291 = vrot.lane.b32.xlu0 %v2286, 64
    %v2292 = vpop.permute.xlu0 %2291
    %v2295 = vadd.f32 %v2177, %v2290
    %v2296 = vadd.f32 %v2180, %v2292
    %v2297 = vtanh.pop %v2295
    %v2298 = vtanh.pop %v2296
    %v2299 = vsub.f32 1.0, %v2265
    %v2300 = vsub.f32 1.0, %v2267
    %2303 = vrot.lane.b32.xlu0 %v2297, 96
    %v2304 = vpop.permute.xlu0 %2303
    %2305 = vrot.lane.b32.xlu0 %v2298, 96
    %v2306 = vpop.permute.xlu0 %2305
    %v2309 = vmul.f32 %v2299, %v2304
    %v2310 = vmul.f32 %v2300, %v2306
    %v2313 = vrot.slane %v2061, 7
    %v2314 = vrot.slane %v2062, 7
    %v2317 = vmul.f32 %v2265, %v2313
    %v2318 = vmul.f32 %v2267, %v2314
    %v2319 = vadd.f32 %v2309, %v2317
    %v2320 = vadd.f32 %v2310, %v2318
    %v2321 = vpack.c.bf16 %v2319, %v2319
    %v2322 = vpack.c.bf16 %v2320, %v2320
    %v2325 = vunpack.c.l.b16 %v2321
    %v2326 = vunpack.c.l.b16 %v2322
    %v2327 = vrot.slane %v2326, 7
    %v2328 = vsel %vm279, %v2327, %v2325
    %v2329 = vpack.c.b16 %v2328, %v2328
    %2330 = vrot.lane.b32.xlu0 %v2329, 96
    %v2331 = vpop.permute.xlu0 %2330
    %v2333 = vsel %vm163, %v2331, 0
    %2335 = vmatprep.subr.bf16.mxu0 0
    %2336 = vmatpush1.bf16.msra.mxu0 0
    %2337 = vmatprep.subr.bf16.mxu0 0
    %2338 = vmatpush1.bf16.msra.mxu0 0
    %2339 = vmatprep.subr.bf16.mxu0 0
    %2340 = vmatpush1.bf16.msra.mxu0 0
    %2341 = vmatprep.subr.bf16.mxu0 0
    %2342 = vmatpush1.bf16.msra.mxu0 0
    %2343 = vmatprep.subr.bf16.mxu0 0
    %2344 = vmatpush1.bf16.msra.mxu0 0
    %2345 = vmatprep.subr.bf16.mxu0 0
    %2346 = vmatpush1.bf16.msra.mxu0 0
    %2347 = vmatprep.subr.bf16.mxu0 0
    %2348 = vmatpush1.bf16.msra.mxu0 %v2204
    %2349 = vmatprep.subr.bf16.mxu0 0
    %2350 = vmatpush1.bf16.msra.mxu0 %v2203
    %2351 = vmatprep.subr.bf16.mxu0 0
    %2352 = vmatpush2.bf16.msra.mxu0 0
    %2353 = vmatprep.subr.bf16.mxu0 0
    %2354 = vmatpush2.bf16.msra.mxu0 0
    %2355 = vmatprep.subr.bf16.mxu0 0
    %2356 = vmatpush2.bf16.msra.mxu0 0
    %2357 = vmatprep.subr.bf16.mxu0 0
    %2358 = vmatpush2.bf16.msra.mxu0 0
    %2359 = vmatprep.subr.bf16.mxu0 0
    %2360 = vmatpush2.bf16.msra.mxu0 0
    %2361 = vmatprep.subr.bf16.mxu0 0
    %2362 = vmatpush2.bf16.msra.mxu0 0
    %2363 = vmatprep.subr.bf16.mxu0 0
    %2364 = vmatpush2.bf16.msra.mxu0 0
    %2365 = vmatprep.subr.bf16.mxu0 0
    %2366 = vmatpush2.bf16.msra.mxu0 0
    %2367 = vmatprep.mubr.bf16.mxu0 0
    %2368 = vmatmul.mubr.bf16.gmra.mxu0 %v2333
    %v2369 = vpop.f32.mrf.mxu0
    %v2370 = vadd.f32 0.0, %v2369
    %v2371 = vpop.f32.mrf.mxu0
    %v2372 = vpop.f32.mrf.mxu0
    %v2373 = vpop.f32.mrf.mxu0
    %2374 = vdwg.mxu0
    %v2376 = vrot.slane %v2370, 7
    %v2379 = vadd.f32 %v2177, %v2376
    %v2380 = vadd.f32 %v2180, %v2370
    %v2381 = vxor.u32 %v2379, 2147483648
    %v2382 = vxor.u32 %v2380, 2147483648
    %v2383 = vmul.f32 %v2381, 1.442695
    %v2384 = vpow.pop %v2383
    %v2385 = vmul.f32 %v2382, 1.442695
    %v2386 = vpow.pop %v2385
    %v2387 = vadd.f32 %v2384, 1.0
    %v2388 = vadd.f32 %v2386, 1.0
    %v2389 = vrcp.pop %v2387
    %v2390 = vmul.f32 1.0, %v2389
    %v2391 = vrcp.pop %v2388
    %v2392 = vmul.f32 1.0, %v2391
    %v2393 = vadd.f32 %v2370, %v2274
    %v2395 = vrot.slane %v2393, 7
    %2396 = vrot.lane.b32.xlu0 %v2395, 64
    %v2397 = vpop.permute.xlu0 %2396
    %2398 = vrot.lane.b32.xlu0 %v2393, 64
    %v2399 = vpop.permute.xlu0 %2398
    %v2402 = vmul.f32 %v2390, %v2397
    %v2403 = vmul.f32 %v2392, %v2399
    %2406 = vrot.lane.b32.xlu0 %v2402, 64
    %v2407 = vpop.permute.xlu0 %2406
    %2408 = vrot.lane.b32.xlu0 %v2403, 64
    %v2409 = vpop.permute.xlu0 %2408
    %v2412 = vadd.f32 %v2177, %v2407
    %v2413 = vadd.f32 %v2180, %v2409
    %v2414 = vtanh.pop %v2412
    %v2415 = vtanh.pop %v2413
    %v2416 = vsub.f32 1.0, %v2390
    %v2417 = vsub.f32 1.0, %v2392
    %2420 = vrot.lane.b32.xlu0 %v2414, 96
    %v2421 = vpop.permute.xlu0 %2420
    %2422 = vrot.lane.b32.xlu0 %v2415, 96
    %v2423 = vpop.permute.xlu0 %2422
    %v2426 = vmul.f32 %v2416, %v2421
    %v2427 = vmul.f32 %v2417, %v2423
    %v2430 = vrot.slane %v2319, 7
    %v2431 = vrot.slane %v2320, 7
    %v2434 = vmul.f32 %v2390, %v2430
    %v2435 = vmul.f32 %v2392, %v2431
    %v2436 = vadd.f32 %v2426, %v2434
    %v2437 = vadd.f32 %v2427, %v2435
    %v2438 = vpack.c.bf16 %v2436, %v2436
    %v2439 = vpack.c.bf16 %v2437, %v2437
    %v2442 = vunpack.c.l.b16 %v2438
    %v2443 = vunpack.c.l.b16 %v2439
    %v2444 = vrot.slane %v2442, 1
    %v2445 = vsel %vm279, %v2443, %v2444
    %v2446 = vpack.c.b16 %v2445, %v2445
    %2447 = vrot.lane.b32.xlu0 %v2446, 96
    %v2448 = vpop.permute.xlu0 %2447
    %v2450 = vsel %vm163, %v2448, 0
    %2452 = vmatprep.subr.bf16.mxu0 0
    %2453 = vmatpush1.bf16.msra.mxu0 0
    %2454 = vmatprep.subr.bf16.mxu0 0
    %2455 = vmatpush1.bf16.msra.mxu0 0
    %2456 = vmatprep.subr.bf16.mxu0 0
    %2457 = vmatpush1.bf16.msra.mxu0 0
    %2458 = vmatprep.subr.bf16.mxu0 0
    %2459 = vmatpush1.bf16.msra.mxu0 0
    %2460 = vmatprep.subr.bf16.mxu0 0
    %2461 = vmatpush1.bf16.msra.mxu0 0
    %2462 = vmatprep.subr.bf16.mxu0 0
    %2463 = vmatpush1.bf16.msra.mxu0 0
    %2464 = vmatprep.subr.bf16.mxu0 0
    %2465 = vmatpush1.bf16.msra.mxu0 %v2204
    %2466 = vmatprep.subr.bf16.mxu0 0
    %2467 = vmatpush1.bf16.msra.mxu0 %v2203
    %2468 = vmatprep.subr.bf16.mxu0 0
    %2469 = vmatpush2.bf16.msra.mxu0 0
    %2470 = vmatprep.subr.bf16.mxu0 0
    %2471 = vmatpush2.bf16.msra.mxu0 0
    %2472 = vmatprep.subr.bf16.mxu0 0
    %2473 = vmatpush2.bf16.msra.mxu0 0
    %2474 = vmatprep.subr.bf16.mxu0 0
    %2475 = vmatpush2.bf16.msra.mxu0 0
    %2476 = vmatprep.subr.bf16.mxu0 0
    %2477 = vmatpush2.bf16.msra.mxu0 0
    %2478 = vmatprep.subr.bf16.mxu0 0
    %2479 = vmatpush2.bf16.msra.mxu0 0
    %2480 = vmatprep.subr.bf16.mxu0 0
    %2481 = vmatpush2.bf16.msra.mxu0 0
    %2482 = vmatprep.subr.bf16.mxu0 0
    %2483 = vmatpush2.bf16.msra.mxu0 0
    %2484 = vmatprep.mubr.bf16.mxu0 0
    %2485 = vmatmul.mubr.bf16.gmra.mxu0 %v2450
    %v2486 = vpop.f32.mrf.mxu0
    %v2487 = vadd.f32 0.0, %v2486
    %v2488 = vpop.f32.mrf.mxu0
    %v2489 = vpop.f32.mrf.mxu0
    %v2490 = vpop.f32.mrf.mxu0
    %2491 = vdwg.mxu0
    %v2493 = vrot.slane %v2487, 6
    %v2494 = vrot.slane %v2487, 7
    %v2497 = vadd.f32 %v2177, %v2493
    %v2498 = vadd.f32 %v2180, %v2494
    %v2499 = vxor.u32 %v2497, 2147483648
    %v2500 = vxor.u32 %v2498, 2147483648
    %v2501 = vmul.f32 %v2499, 1.442695
    %v2502 = vpow.pop %v2501
    %v2503 = vmul.f32 %v2500, 1.442695
    %v2504 = vpow.pop %v2503
    %v2505 = vadd.f32 %v2502, 1.0
    %v2506 = vadd.f32 %v2504, 1.0
    %v2507 = vrcp.pop %v2505
    %v2508 = vmul.f32 1.0, %v2507
    %v2509 = vrcp.pop %v2506
    %v2510 = vmul.f32 1.0, %v2509
    %v2511 = vadd.f32 %v2487, %v2274
    %v2513 = vrot.slane %v2511, 6
    %v2514 = vrot.slane %v2511, 7
    %2515 = vrot.lane.b32.xlu0 %v2513, 64
    %v2516 = vpop.permute.xlu0 %2515
    %2517 = vrot.lane.b32.xlu0 %v2514, 64
    %v2518 = vpop.permute.xlu0 %2517
    %v2521 = vmul.f32 %v2508, %v2516
    %v2522 = vmul.f32 %v2510, %v2518
    %2525 = vrot.lane.b32.xlu0 %v2521, 64
    %v2526 = vpop.permute.xlu0 %2525
    %2527 = vrot.lane.b32.xlu0 %v2522, 64
    %v2528 = vpop.permute.xlu0 %2527
    %v2531 = vadd.f32 %v2177, %v2526
    %v2532 = vadd.f32 %v2180, %v2528
    %v2533 = vtanh.pop %v2531
    %v2534 = vtanh.pop %v2532
    %v2535 = vsub.f32 1.0, %v2508
    %v2536 = vsub.f32 1.0, %v2510
    %2539 = vrot.lane.b32.xlu0 %v2533, 96
    %v2540 = vpop.permute.xlu0 %2539
    %2541 = vrot.lane.b32.xlu0 %v2534, 96
    %v2542 = vpop.permute.xlu0 %2541
    %v2545 = vmul.f32 %v2535, %v2540
    %v2546 = vmul.f32 %v2536, %v2542
    %v2549 = vrot.slane %v2436, 7
    %v2550 = vrot.slane %v2437, 7
    %v2553 = vmul.f32 %v2508, %v2549
    %v2554 = vmul.f32 %v2510, %v2550
    %v2555 = vadd.f32 %v2545, %v2553
    %v2556 = vadd.f32 %v2546, %v2554
    %v2557 = vpack.c.bf16 %v2555, %v2555
    %v2558 = vpack.c.bf16 %v2556, %v2556
    %v2561 = vunpack.c.l.b16 %v2557
    %v2562 = vunpack.c.l.b16 %v2558
    %v2563 = vrot.slane %v2561, 2
    %v2564 = vrot.slane %v2562, 1
    %v2565 = vsel %vm279, %v2564, %v2563
    %v2566 = vpack.c.b16 %v2565, %v2565
    %2567 = vrot.lane.b32.xlu0 %v2566, 96
    %v2568 = vpop.permute.xlu0 %2567
    %v2570 = vsel %vm163, %v2568, 0
    %2572 = vmatprep.subr.bf16.mxu0 0
    %2573 = vmatpush1.bf16.msra.mxu0 0
    %2574 = vmatprep.subr.bf16.mxu0 0
    %2575 = vmatpush1.bf16.msra.mxu0 0
    %2576 = vmatprep.subr.bf16.mxu0 0
    %2577 = vmatpush1.bf16.msra.mxu0 0
    %2578 = vmatprep.subr.bf16.mxu0 0
    %2579 = vmatpush1.bf16.msra.mxu0 0
    %2580 = vmatprep.subr.bf16.mxu0 0
    %2581 = vmatpush1.bf16.msra.mxu0 0
    %2582 = vmatprep.subr.bf16.mxu0 0
    %2583 = vmatpush1.bf16.msra.mxu0 0
    %2584 = vmatprep.subr.bf16.mxu0 0
    %2585 = vmatpush1.bf16.msra.mxu0 %v2204
    %2586 = vmatprep.subr.bf16.mxu0 0
    %2587 = vmatpush1.bf16.msra.mxu0 %v2203
    %2588 = vmatprep.subr.bf16.mxu0 0
    %2589 = vmatpush2.bf16.msra.mxu0 0
    %2590 = vmatprep.subr.bf16.mxu0 0
    %2591 = vmatpush2.bf16.msra.mxu0 0
    %2592 = vmatprep.subr.bf16.mxu0 0
    %2593 = vmatpush2.bf16.msra.mxu0 0
    %2594 = vmatprep.subr.bf16.mxu0 0
    %2595 = vmatpush2.bf16.msra.mxu0 0
    %2596 = vmatprep.subr.bf16.mxu0 0
    %2597 = vmatpush2.bf16.msra.mxu0 0
    %2598 = vmatprep.subr.bf16.mxu0 0
    %2599 = vmatpush2.bf16.msra.mxu0 0
    %2600 = vmatprep.subr.bf16.mxu0 0
    %2601 = vmatpush2.bf16.msra.mxu0 0
    %2602 = vmatprep.subr.bf16.mxu0 0
    %2603 = vmatpush2.bf16.msra.mxu0 0
    %2604 = vmatprep.mubr.bf16.mxu0 0
    %2605 = vmatmul.mubr.bf16.gmra.mxu0 %v2570
    %v2606 = vpop.f32.mrf.mxu0
    %v2607 = vadd.f32 0.0, %v2606
    %v2608 = vpop.f32.mrf.mxu0
    %v2609 = vpop.f32.mrf.mxu0
    %v2610 = vpop.f32.mrf.mxu0
    %2611 = vdwg.mxu0
    %v2613 = vrot.slane %v2607, 5
    %v2614 = vrot.slane %v2607, 6
    %v2617 = vadd.f32 %v2177, %v2613
    %v2618 = vadd.f32 %v2180, %v2614
    %v2619 = vxor.u32 %v2617, 2147483648
    %v2620 = vxor.u32 %v2618, 2147483648
    %v2621 = vmul.f32 %v2619, 1.442695
    %v2622 = vpow.pop %v2621
    %v2623 = vmul.f32 %v2620, 1.442695
    %v2624 = vpow.pop %v2623
    %v2625 = vadd.f32 %v2622, 1.0
    %v2626 = vadd.f32 %v2624, 1.0
    %v2627 = vrcp.pop %v2625
    %v2628 = vmul.f32 1.0, %v2627
    %v2629 = vrcp.pop %v2626
    %v2630 = vmul.f32 1.0, %v2629
    %v2631 = vadd.f32 %v2607, %v2274
    %v2633 = vrot.slane %v2631, 5
    %v2634 = vrot.slane %v2631, 6
    %2635 = vrot.lane.b32.xlu0 %v2633, 64
    %v2636 = vpop.permute.xlu0 %2635
    %2637 = vrot.lane.b32.xlu0 %v2634, 64
    %v2638 = vpop.permute.xlu0 %2637
    %v2641 = vmul.f32 %v2628, %v2636
    %v2642 = vmul.f32 %v2630, %v2638
    %2645 = vrot.lane.b32.xlu0 %v2641, 64
    %v2646 = vpop.permute.xlu0 %2645
    %2647 = vrot.lane.b32.xlu0 %v2642, 64
    %v2648 = vpop.permute.xlu0 %2647
    %v2651 = vadd.f32 %v2177, %v2646
    %v2652 = vadd.f32 %v2180, %v2648
    %v2653 = vtanh.pop %v2651
    %v2654 = vtanh.pop %v2652
    %v2655 = vsub.f32 1.0, %v2628
    %v2656 = vsub.f32 1.0, %v2630
    %2659 = vrot.lane.b32.xlu0 %v2653, 96
    %v2660 = vpop.permute.xlu0 %2659
    %2661 = vrot.lane.b32.xlu0 %v2654, 96
    %v2662 = vpop.permute.xlu0 %2661
    %v2665 = vmul.f32 %v2655, %v2660
    %v2666 = vmul.f32 %v2656, %v2662
    %v2669 = vrot.slane %v2555, 7
    %v2670 = vrot.slane %v2556, 7
    %v2673 = vmul.f32 %v2628, %v2669
    %v2674 = vmul.f32 %v2630, %v2670
    %v2675 = vadd.f32 %v2665, %v2673
    %v2676 = vadd.f32 %v2666, %v2674
    %v2677 = vpack.c.bf16 %v2675, %v2675
    %v2678 = vpack.c.bf16 %v2676, %v2676
    %v2681 = vunpack.c.l.b16 %v2677
    %v2682 = vunpack.c.l.b16 %v2678
    %v2683 = vrot.slane %v2681, 3
    %v2684 = vrot.slane %v2682, 2
    %v2685 = vsel %vm279, %v2684, %v2683
    %v2686 = vpack.c.b16 %v2685, %v2685
    %2687 = vrot.lane.b32.xlu0 %v2686, 96
    %v2688 = vpop.permute.xlu0 %2687
    %v2690 = vsel %vm163, %v2688, 0
    %2692 = vmatprep.subr.bf16.mxu0 0
    %2693 = vmatpush1.bf16.msra.mxu0 0
    %2694 = vmatprep.subr.bf16.mxu0 0
    %2695 = vmatpush1.bf16.msra.mxu0 0
    %2696 = vmatprep.subr.bf16.mxu0 0
    %2697 = vmatpush1.bf16.msra.mxu0 0
    %2698 = vmatprep.subr.bf16.mxu0 0
    %2699 = vmatpush1.bf16.msra.mxu0 0
    %2700 = vmatprep.subr.bf16.mxu0 0
    %2701 = vmatpush1.bf16.msra.mxu0 0
    %2702 = vmatprep.subr.bf16.mxu0 0
    %2703 = vmatpush1.bf16.msra.mxu0 0
    %2704 = vmatprep.subr.bf16.mxu0 0
    %2705 = vmatpush1.bf16.msra.mxu0 %v2204
    %2706 = vmatprep.subr.bf16.mxu0 0
    %2707 = vmatpush1.bf16.msra.mxu0 %v2203
    %2708 = vmatprep.subr.bf16.mxu0 0
    %2709 = vmatpush2.bf16.msra.mxu0 0
    %2710 = vmatprep.subr.bf16.mxu0 0
    %2711 = vmatpush2.bf16.msra.mxu0 0
    %2712 = vmatprep.subr.bf16.mxu0 0
    %2713 = vmatpush2.bf16.msra.mxu0 0
    %2714 = vmatprep.subr.bf16.mxu0 0
    %2715 = vmatpush2.bf16.msra.mxu0 0
    %2716 = vmatprep.subr.bf16.mxu0 0
    %2717 = vmatpush2.bf16.msra.mxu0 0
    %2718 = vmatprep.subr.bf16.mxu0 0
    %2719 = vmatpush2.bf16.msra.mxu0 0
    %2720 = vmatprep.subr.bf16.mxu0 0
    %2721 = vmatpush2.bf16.msra.mxu0 0
    %2722 = vmatprep.subr.bf16.mxu0 0
    %2723 = vmatpush2.bf16.msra.mxu0 0
    %2724 = vmatprep.mubr.bf16.mxu0 0
    %2725 = vmatmul.mubr.bf16.gmra.mxu0 %v2690
    %v2726 = vpop.f32.mrf.mxu0
    %v2727 = vadd.f32 0.0, %v2726
    %v2728 = vpop.f32.mrf.mxu0
    %v2729 = vpop.f32.mrf.mxu0
    %v2730 = vpop.f32.mrf.mxu0
    %2731 = vdwg.mxu0
    %v2733 = vrot.slane %v2727, 4
    %v2734 = vrot.slane %v2727, 5
    %v2737 = vadd.f32 %v2177, %v2733
    %v2738 = vadd.f32 %v2180, %v2734
    %v2739 = vxor.u32 %v2737, 2147483648
    %v2740 = vxor.u32 %v2738, 2147483648
    %v2741 = vmul.f32 %v2739, 1.442695
    %v2742 = vpow.pop %v2741
    %v2743 = vmul.f32 %v2740, 1.442695
    %v2744 = vpow.pop %v2743
    %v2745 = vadd.f32 %v2742, 1.0
    %v2746 = vadd.f32 %v2744, 1.0
    %v2747 = vrcp.pop %v2745
    %v2748 = vmul.f32 1.0, %v2747
    %v2749 = vrcp.pop %v2746
    %v2750 = vmul.f32 1.0, %v2749
    %v2751 = vadd.f32 %v2727, %v2274
    %v2753 = vrot.slane %v2751, 4
    %v2754 = vrot.slane %v2751, 5
    %2755 = vrot.lane.b32.xlu0 %v2753, 64
    %v2756 = vpop.permute.xlu0 %2755
    %2757 = vrot.lane.b32.xlu0 %v2754, 64
    %v2758 = vpop.permute.xlu0 %2757
    %v2761 = vmul.f32 %v2748, %v2756
    %v2762 = vmul.f32 %v2750, %v2758
    %2765 = vrot.lane.b32.xlu0 %v2761, 64
    %v2766 = vpop.permute.xlu0 %2765
    %2767 = vrot.lane.b32.xlu0 %v2762, 64
    %v2768 = vpop.permute.xlu0 %2767
    %v2771 = vadd.f32 %v2177, %v2766
    %v2772 = vadd.f32 %v2180, %v2768
    %v2773 = vtanh.pop %v2771
    %v2774 = vtanh.pop %v2772
    %v2775 = vsub.f32 1.0, %v2748
    %v2776 = vsub.f32 1.0, %v2750
    %2779 = vrot.lane.b32.xlu0 %v2773, 96
    %v2780 = vpop.permute.xlu0 %2779
    %2781 = vrot.lane.b32.xlu0 %v2774, 96
    %v2782 = vpop.permute.xlu0 %2781
    %v2785 = vmul.f32 %v2775, %v2780
    %v2786 = vmul.f32 %v2776, %v2782
    %v2789 = vrot.slane %v2675, 7
    %v2790 = vrot.slane %v2676, 7
    %v2793 = vmul.f32 %v2748, %v2789
    %v2794 = vmul.f32 %v2750, %v2790
    %v2795 = vadd.f32 %v2785, %v2793
    %v2796 = vadd.f32 %v2786, %v2794
    %v2797 = vpack.c.bf16 %v2795, %v2795
    %v2798 = vpack.c.bf16 %v2796, %v2796
    %v2801 = vunpack.c.l.b16 %v2797
    %v2802 = vunpack.c.l.b16 %v2798
    %v2803 = vrot.slane %v2801, 4
    %v2804 = vrot.slane %v2802, 3
    %v2805 = vsel %vm279, %v2804, %v2803
    %v2806 = vpack.c.b16 %v2805, %v2805
    %2807 = vrot.lane.b32.xlu0 %v2806, 96
    %v2808 = vpop.permute.xlu0 %2807
    %v2810 = vsel %vm163, %v2808, 0
    %2812 = vmatprep.subr.bf16.mxu0 0
    %2813 = vmatpush1.bf16.msra.mxu0 0
    %2814 = vmatprep.subr.bf16.mxu0 0
    %2815 = vmatpush1.bf16.msra.mxu0 0
    %2816 = vmatprep.subr.bf16.mxu0 0
    %2817 = vmatpush1.bf16.msra.mxu0 0
    %2818 = vmatprep.subr.bf16.mxu0 0
    %2819 = vmatpush1.bf16.msra.mxu0 0
    %2820 = vmatprep.subr.bf16.mxu0 0
    %2821 = vmatpush1.bf16.msra.mxu0 0
    %2822 = vmatprep.subr.bf16.mxu0 0
    %2823 = vmatpush1.bf16.msra.mxu0 0
    %2824 = vmatprep.subr.bf16.mxu0 0
    %2825 = vmatpush1.bf16.msra.mxu0 %v2204
    %2826 = vmatprep.subr.bf16.mxu0 0
    %2827 = vmatpush1.bf16.msra.mxu0 %v2203
    %2828 = vmatprep.subr.bf16.mxu0 0
    %2829 = vmatpush2.bf16.msra.mxu0 0
    %2830 = vmatprep.subr.bf16.mxu0 0
    %2831 = vmatpush2.bf16.msra.mxu0 0
    %2832 = vmatprep.subr.bf16.mxu0 0
    %2833 = vmatpush2.bf16.msra.mxu0 0
    %2834 = vmatprep.subr.bf16.mxu0 0
    %2835 = vmatpush2.bf16.msra.mxu0 0
    %2836 = vmatprep.subr.bf16.mxu0 0
    %2837 = vmatpush2.bf16.msra.mxu0 0
    %2838 = vmatprep.subr.bf16.mxu0 0
    %2839 = vmatpush2.bf16.msra.mxu0 0
    %2840 = vmatprep.subr.bf16.mxu0 0
    %2841 = vmatpush2.bf16.msra.mxu0 0
    %2842 = vmatprep.subr.bf16.mxu0 0
    %2843 = vmatpush2.bf16.msra.mxu0 0
    %2844 = vmatprep.mubr.bf16.mxu0 0
    %2845 = vmatmul.mubr.bf16.gmra.mxu0 %v2810
    %v2846 = vpop.f32.mrf.mxu0
    %v2847 = vadd.f32 0.0, %v2846
    %v2848 = vpop.f32.mrf.mxu0
    %v2849 = vpop.f32.mrf.mxu0
    %v2850 = vpop.f32.mrf.mxu0
    %2851 = vdwg.mxu0
    %v2853 = vrot.slane %v2847, 3
    %v2854 = vrot.slane %v2847, 4
    %v2857 = vadd.f32 %v2177, %v2853
    %v2858 = vadd.f32 %v2180, %v2854
    %v2859 = vxor.u32 %v2857, 2147483648
    %v2860 = vxor.u32 %v2858, 2147483648
    %v2861 = vmul.f32 %v2859, 1.442695
    %v2862 = vpow.pop %v2861
    %v2863 = vmul.f32 %v2860, 1.442695
    %v2864 = vpow.pop %v2863
    %v2865 = vadd.f32 %v2862, 1.0
    %v2866 = vadd.f32 %v2864, 1.0
    %v2867 = vrcp.pop %v2865
    %v2868 = vmul.f32 1.0, %v2867
    %v2869 = vrcp.pop %v2866
    %v2870 = vmul.f32 1.0, %v2869
    %v2871 = vadd.f32 %v2847, %v2274
    %v2873 = vrot.slane %v2871, 3
    %v2874 = vrot.slane %v2871, 4
    %2875 = vrot.lane.b32.xlu0 %v2873, 64
    %v2876 = vpop.permute.xlu0 %2875
    %2877 = vrot.lane.b32.xlu0 %v2874, 64
    %v2878 = vpop.permute.xlu0 %2877
    %v2881 = vmul.f32 %v2868, %v2876
    %v2882 = vmul.f32 %v2870, %v2878
    %2885 = vrot.lane.b32.xlu0 %v2881, 64
    %v2886 = vpop.permute.xlu0 %2885
    %2887 = vrot.lane.b32.xlu0 %v2882, 64
    %v2888 = vpop.permute.xlu0 %2887
    %v2891 = vadd.f32 %v2177, %v2886
    %v2892 = vadd.f32 %v2180, %v2888
    %v2893 = vtanh.pop %v2891
    %v2894 = vtanh.pop %v2892
    %v2895 = vsub.f32 1.0, %v2868
    %v2896 = vsub.f32 1.0, %v2870
    %2899 = vrot.lane.b32.xlu0 %v2893, 96
    %v2900 = vpop.permute.xlu0 %2899
    %2901 = vrot.lane.b32.xlu0 %v2894, 96
    %v2902 = vpop.permute.xlu0 %2901
    %v2905 = vmul.f32 %v2895, %v2900
    %v2906 = vmul.f32 %v2896, %v2902
    %v2909 = vrot.slane %v2795, 7
    %v2910 = vrot.slane %v2796, 7
    %v2913 = vmul.f32 %v2868, %v2909
    %v2914 = vmul.f32 %v2870, %v2910
    %v2915 = vadd.f32 %v2905, %v2913
    %v2916 = vadd.f32 %v2906, %v2914
    %v2917 = vpack.c.bf16 %v2915, %v2915
    %v2918 = vpack.c.bf16 %v2916, %v2916
    %v2921 = vunpack.c.l.b16 %v2917
    %v2922 = vunpack.c.l.b16 %v2918
    %v2923 = vrot.slane %v2921, 5
    %v2924 = vrot.slane %v2922, 4
    %v2925 = vsel %vm279, %v2924, %v2923
    %v2926 = vpack.c.b16 %v2925, %v2925
    %2927 = vrot.lane.b32.xlu0 %v2926, 96
    %v2928 = vpop.permute.xlu0 %2927
    %v2930 = vsel %vm163, %v2928, 0
    %2932 = vmatprep.subr.bf16.mxu0 0
    %2933 = vmatpush1.bf16.msra.mxu0 0
    %2934 = vmatprep.subr.bf16.mxu0 0
    %2935 = vmatpush1.bf16.msra.mxu0 0
    %2936 = vmatprep.subr.bf16.mxu0 0
    %2937 = vmatpush1.bf16.msra.mxu0 0
    %2938 = vmatprep.subr.bf16.mxu0 0
    %2939 = vmatpush1.bf16.msra.mxu0 0
    %2940 = vmatprep.subr.bf16.mxu0 0
    %2941 = vmatpush1.bf16.msra.mxu0 0
    %2942 = vmatprep.subr.bf16.mxu0 0
    %2943 = vmatpush1.bf16.msra.mxu0 0
    %2944 = vmatprep.subr.bf16.mxu0 0
    %2945 = vmatpush1.bf16.msra.mxu0 %v2204
    %2946 = vmatprep.subr.bf16.mxu0 0
    %2947 = vmatpush1.bf16.msra.mxu0 %v2203
    %2948 = vmatprep.subr.bf16.mxu0 0
    %2949 = vmatpush2.bf16.msra.mxu0 0
    %2950 = vmatprep.subr.bf16.mxu0 0
    %2951 = vmatpush2.bf16.msra.mxu0 0
    %2952 = vmatprep.subr.bf16.mxu0 0
    %2953 = vmatpush2.bf16.msra.mxu0 0
    %2954 = vmatprep.subr.bf16.mxu0 0
    %2955 = vmatpush2.bf16.msra.mxu0 0
    %2956 = vmatprep.subr.bf16.mxu0 0
    %2957 = vmatpush2.bf16.msra.mxu0 0
    %2958 = vmatprep.subr.bf16.mxu0 0
    %2959 = vmatpush2.bf16.msra.mxu0 0
    %2960 = vmatprep.subr.bf16.mxu0 0
    %2961 = vmatpush2.bf16.msra.mxu0 0
    %2962 = vmatprep.subr.bf16.mxu0 0
    %2963 = vmatpush2.bf16.msra.mxu0 0
    %2964 = vmatprep.mubr.bf16.mxu0 0
    %2965 = vmatmul.mubr.bf16.gmra.mxu0 %v2930
    %v2966 = vpop.f32.mrf.mxu0
    %v2967 = vadd.f32 0.0, %v2966
    %v2968 = vpop.f32.mrf.mxu0
    %v2969 = vpop.f32.mrf.mxu0
    %v2970 = vpop.f32.mrf.mxu0
    %2971 = vdwg.mxu0
    %v2973 = vrot.slane %v2967, 2
    %v2974 = vrot.slane %v2967, 3
    %v2977 = vadd.f32 %v2177, %v2973
    %v2978 = vadd.f32 %v2180, %v2974
    %v2979 = vxor.u32 %v2977, 2147483648
    %v2980 = vxor.u32 %v2978, 2147483648
    %v2981 = vmul.f32 %v2979, 1.442695
    %v2982 = vpow.pop %v2981
    %v2983 = vmul.f32 %v2980, 1.442695
    %v2984 = vpow.pop %v2983
    %v2985 = vadd.f32 %v2982, 1.0
    %v2986 = vadd.f32 %v2984, 1.0
    %v2987 = vrcp.pop %v2985
    %v2988 = vmul.f32 1.0, %v2987
    %v2989 = vrcp.pop %v2986
    %v2990 = vmul.f32 1.0, %v2989
    %v2991 = vadd.f32 %v2967, %v2274
    %v2993 = vrot.slane %v2991, 2
    %v2994 = vrot.slane %v2991, 3
    %2995 = vrot.lane.b32.xlu0 %v2993, 64
    %v2996 = vpop.permute.xlu0 %2995
    %2997 = vrot.lane.b32.xlu0 %v2994, 64
    %v2998 = vpop.permute.xlu0 %2997
    %v3001 = vmul.f32 %v2988, %v2996
    %v3002 = vmul.f32 %v2990, %v2998
    %3005 = vrot.lane.b32.xlu0 %v3001, 64
    %v3006 = vpop.permute.xlu0 %3005
    %3007 = vrot.lane.b32.xlu0 %v3002, 64
    %v3008 = vpop.permute.xlu0 %3007
    %v3011 = vadd.f32 %v2177, %v3006
    %v3012 = vadd.f32 %v2180, %v3008
    %v3013 = vtanh.pop %v3011
    %v3014 = vtanh.pop %v3012
    %v3015 = vsub.f32 1.0, %v2988
    %v3016 = vsub.f32 1.0, %v2990
    %3019 = vrot.lane.b32.xlu0 %v3013, 96
    %v3020 = vpop.permute.xlu0 %3019
    %3021 = vrot.lane.b32.xlu0 %v3014, 96
    %v3022 = vpop.permute.xlu0 %3021
    %v3025 = vmul.f32 %v3015, %v3020
    %v3026 = vmul.f32 %v3016, %v3022
    %v3029 = vrot.slane %v2915, 7
    %v3030 = vrot.slane %v2916, 7
    %v3033 = vmul.f32 %v2988, %v3029
    %v3034 = vmul.f32 %v2990, %v3030
    %v3035 = vadd.f32 %v3025, %v3033
    %v3036 = vadd.f32 %v3026, %v3034
    %v3037 = vpack.c.bf16 %v3035, %v3035
    %v3038 = vpack.c.bf16 %v3036, %v3036
    %v3041 = vunpack.c.l.b16 %v3037
    %v3042 = vunpack.c.l.b16 %v3038
    %v3043 = vrot.slane %v3041, 6
    %v3044 = vrot.slane %v3042, 5
    %v3045 = vsel %vm279, %v3044, %v3043
    %v3046 = vpack.c.b16 %v3045, %v3045
    %3047 = vrot.lane.b32.xlu0 %v3046, 96
    %v3048 = vpop.permute.xlu0 %3047
    %v3050 = vsel %vm163, %v3048, 0
    %3052 = vmatprep.subr.bf16.mxu0 0
    %3053 = vmatpush1.bf16.msra.mxu0 0
    %3054 = vmatprep.subr.bf16.mxu0 0
    %3055 = vmatpush1.bf16.msra.mxu0 0
    %3056 = vmatprep.subr.bf16.mxu0 0
    %3057 = vmatpush1.bf16.msra.mxu0 0
    %3058 = vmatprep.subr.bf16.mxu0 0
    %3059 = vmatpush1.bf16.msra.mxu0 0
    %3060 = vmatprep.subr.bf16.mxu0 0
    %3061 = vmatpush1.bf16.msra.mxu0 0
    %3062 = vmatprep.subr.bf16.mxu0 0
    %3063 = vmatpush1.bf16.msra.mxu0 0
    %3064 = vmatprep.subr.bf16.mxu0 0
    %3065 = vmatpush1.bf16.msra.mxu0 %v2204
    %3066 = vmatprep.subr.bf16.mxu0 0
    %3067 = vmatpush1.bf16.msra.mxu0 %v2203
    %3068 = vmatprep.subr.bf16.mxu0 0
    %3069 = vmatpush2.bf16.msra.mxu0 0
    %3070 = vmatprep.subr.bf16.mxu0 0
    %3071 = vmatpush2.bf16.msra.mxu0 0
    %3072 = vmatprep.subr.bf16.mxu0 0
    %3073 = vmatpush2.bf16.msra.mxu0 0
    %3074 = vmatprep.subr.bf16.mxu0 0
    %3075 = vmatpush2.bf16.msra.mxu0 0
    %3076 = vmatprep.subr.bf16.mxu0 0
    %3077 = vmatpush2.bf16.msra.mxu0 0
    %3078 = vmatprep.subr.bf16.mxu0 0
    %3079 = vmatpush2.bf16.msra.mxu0 0
    %3080 = vmatprep.subr.bf16.mxu0 0
    %3081 = vmatpush2.bf16.msra.mxu0 0
    %3082 = vmatprep.subr.bf16.mxu0 0
    %3083 = vmatpush2.bf16.msra.mxu0 0
    %3084 = vmatprep.mubr.bf16.mxu0 0
    %3085 = vmatmul.mubr.bf16.gmra.mxu0 %v3050
    %v3086 = vpop.f32.mrf.mxu0
    %v3087 = vadd.f32 0.0, %v3086
    %v3088 = vpop.f32.mrf.mxu0
    %v3089 = vpop.f32.mrf.mxu0
    %v3090 = vpop.f32.mrf.mxu0
    %3091 = vdwg.mxu0
    %v3093 = vrot.slane %v3087, 1
    %v3094 = vrot.slane %v3087, 2
    %v3097 = vadd.f32 %v2177, %v3093
    %v3098 = vadd.f32 %v2180, %v3094
    %v3099 = vxor.u32 %v3097, 2147483648
    %v3100 = vxor.u32 %v3098, 2147483648
    %v3101 = vmul.f32 %v3099, 1.442695
    %v3102 = vpow.pop %v3101
    %v3103 = vmul.f32 %v3100, 1.442695
    %v3104 = vpow.pop %v3103
    %v3105 = vadd.f32 %v3102, 1.0
    %v3106 = vadd.f32 %v3104, 1.0
    %v3107 = vrcp.pop %v3105
    %v3108 = vmul.f32 1.0, %v3107
    %v3109 = vrcp.pop %v3106
    %v3110 = vmul.f32 1.0, %v3109
    %v3111 = vadd.f32 %v3087, %v2274
    %v3113 = vrot.slane %v3111, 1
    %v3114 = vrot.slane %v3111, 2
    %3115 = vrot.lane.b32.xlu0 %v3113, 64
    %v3116 = vpop.permute.xlu0 %3115
    %3117 = vrot.lane.b32.xlu0 %v3114, 64
    %v3118 = vpop.permute.xlu0 %3117
    %v3121 = vmul.f32 %v3108, %v3116
    %v3122 = vmul.f32 %v3110, %v3118
    %3125 = vrot.lane.b32.xlu0 %v3121, 64
    %v3126 = vpop.permute.xlu0 %3125
    %3127 = vrot.lane.b32.xlu0 %v3122, 64
    %v3128 = vpop.permute.xlu0 %3127
    %v3131 = vadd.f32 %v2177, %v3126
    %v3132 = vadd.f32 %v2180, %v3128
    %v3133 = vtanh.pop %v3131
    %v3134 = vtanh.pop %v3132
    %v3135 = vsub.f32 1.0, %v3108
    %v3136 = vsub.f32 1.0, %v3110
    %3139 = vrot.lane.b32.xlu0 %v3133, 96
    %v3140 = vpop.permute.xlu0 %3139
    %3141 = vrot.lane.b32.xlu0 %v3134, 96
    %v3142 = vpop.permute.xlu0 %3141
    %v3145 = vmul.f32 %v3135, %v3140
    %v3146 = vmul.f32 %v3136, %v3142
    %v3149 = vrot.slane %v3035, 7
    %v3150 = vrot.slane %v3036, 7
    %v3153 = vmul.f32 %v3108, %v3149
    %v3154 = vmul.f32 %v3110, %v3150
    %v3155 = vadd.f32 %v3145, %v3153
    %v3156 = vadd.f32 %v3146, %v3154
    %v3157 = vsel %vm2063, %v2319, %v2436
    %v3158 = vsel %vm2063, %v2320, %v2437
    %v3159 = vsel %vm2066, %v3157, %v2555
    %v3160 = vsel %vm2066, %v3158, %v2556
    %v3161 = vsel %vm2069, %v3159, %v2675
    %v3162 = vsel %vm2069, %v3160, %v2676
    %v3163 = vsel %vm98, %v3161, %v2795
    %v3164 = vsel %vm98, %v3162, %v2796
    %v3165 = vsel %vm2074, %v3163, %v2915
    %v3166 = vsel %vm2074, %v3164, %v2916
    %v3167 = vsel %vm2077, %v3165, %v3035
    %v3168 = vsel %vm2077, %v3166, %v3036
    %v3169 = vsel %vm2080, %v3167, %v3155
    %v3170 = vsel %vm2080, %v3168, %v3156
    %v3171 = vpack.c.bf16 %v2095, %v2081
    %v3172 = vpack.c.bf16 %v3169, %v3169
    %3174 = vrot.lane.b32.xlu0 %v3171, 96
    %v3175 = vpop.permute.xlu0 %3174
    %3177 = vrot.lane.b32.xlu0 %v3172, 96
    %v3178 = vpop.permute.xlu0 %3177
    %v3180 = vsel %vm163, %v3175, 0
    %v3183 = vsel %vm163, %v3178, 0
    %3185 = vmatprep.subr.bf16.mxu0 0
    %3186 = vmatpush1.bf16.xpose.msra.mxu0 0
    %3187 = vmatprep.subr.bf16.mxu0 0
    %3188 = vmatpush1.bf16.xpose.msra.mxu0 0
    %3189 = vmatprep.subr.bf16.mxu0 0
    %3190 = vmatpush1.bf16.xpose.msra.mxu0 0
    %3191 = vmatprep.subr.bf16.mxu0 0
    %3192 = vmatpush1.bf16.xpose.msra.mxu0 0
    %3193 = vmatprep.subr.bf16.mxu0 0
    %3194 = vmatpush1.bf16.xpose.msra.mxu0 0
    %3195 = vmatprep.subr.bf16.mxu0 0
    %3196 = vmatpush1.bf16.xpose.msra.mxu0 0
    %3197 = vmatprep.subr.bf16.mxu0 0
    %3198 = vmatpush1.bf16.xpose.msra.mxu0 0
    %3199 = vmatprep.subr.bf16.mxu0 0
    %3200 = vmatpush1.bf16.xpose.msra.mxu0 %v3183
    %3201 = vmatprep.subr.bf16.mxu0 0
    %3202 = vmatpush2.bf16.xpose.msra.mxu0 0
    %3203 = vmatprep.subr.bf16.mxu0 0
    %3204 = vmatpush2.bf16.xpose.msra.mxu0 0
    %3205 = vmatprep.subr.bf16.mxu0 0
    %3206 = vmatpush2.bf16.xpose.msra.mxu0 0
    %3207 = vmatprep.subr.bf16.mxu0 0
    %3208 = vmatpush2.bf16.xpose.msra.mxu0 0
    %3209 = vmatprep.subr.bf16.mxu0 0
    %3210 = vmatpush2.bf16.xpose.msra.mxu0 0
    %3211 = vmatprep.subr.bf16.mxu0 0
    %3212 = vmatpush2.bf16.xpose.msra.mxu0 0
    %3213 = vmatprep.subr.bf16.mxu0 0
    %3214 = vmatpush2.bf16.xpose.msra.mxu0 0
    %3215 = vmatprep.subr.bf16.mxu0 0
    %3216 = vmatpush2.bf16.xpose.msra.mxu0 0
    %3217 = vmatprep.mubr.bf16.mxu0 0
    %3218 = vmatmul.mubr.bf16.gmra.mxu0 %v3180
    %v3219 = vpop.f32.mrf.mxu0
    %v3220 = vadd.f32 0.0, %v3219
    %v3221 = vpop.f32.mrf.mxu0
    %v3222 = vpop.f32.mrf.mxu0
    %v3223 = vadd.f32 0.0, %v3222
    %v3224 = vpop.f32.mrf.mxu0
    %3225 = vdwg.mxu0
    %vm3226 = vcmask 64512
    %v3227 = vsel %vm3226, %v3220, -inf
    %v3228 = vsel %vm3226, %v3223, -inf
    %v3229 = vmax.f32 %v3227, %v3228
    %v3230 = vrot.slane %v3229, 4
    %v3231 = vmax.f32 %v3229, %v3230
    %v3232 = vrot.slane %v3231, 2
    %v3233 = vmax.f32 %v3231, %v3232
    %v3234 = vrot.slane %v3233, 1
    %v3235 = vmax.f32 %v3233, %v3234
    %v3236 = vsub.f32 %v3220, %v3235
    %v3237 = vsub.f32 %v3223, %v3235
    %v3238 = vmul.f32 %v3236, 1.442695
    %v3239 = vpow.pop %v3238
    %v3240 = vmul.f32 %v3237, 1.442695
    %v3241 = vpow.pop %v3240
    %v3242 = vsel %vm3226, %v3239, 0.0
    %v3243 = vsel %vm3226, %v3241, 0.0
    %v3244 = vadd.f32 %v3242, %v3243
    %v3245 = vrot.slane %v3244, 4
    %v3246 = vadd.f32 %v3244, %v3245
    %v3247 = vrot.slane %v3246, 2
    %v3248 = vadd.f32 %v3246, %v3247
    %v3249 = vrot.slane %v3248, 1
    %v3250 = vadd.f32 %v3248, %v3249
    %v3251 = vrcp.pop %v3250
    %v3252 = vmul.f32 %v3239, %v3251
    %v3253 = vmul.f32 %v3241, %v3251
    %v3254 = vpack.c.bf16 %v3253, %v3252
    %3255 = vxpose.xlu0.c.b16.start [1/8] %v3254, 128
    %3256 = vxpose.xlu0.c.b16.cont [2/8] 0, 128
    %3257 = vxpose.xlu0.c.b16.cont [3/8] 0, 128
    %3258 = vxpose.xlu0.c.b16.cont [4/8] 0, 128
    %3259 = vxpose.xlu0.c.b16.cont [5/8] 0, 128
    %3260 = vxpose.xlu0.c.b16.cont [6/8] 0, 128
    %3261 = vxpose.xlu0.c.b16.cont [7/8] 0, 128
    %3262 = vxpose.xlu0.c.b16.end [8/8] 0, 128
    %v3263 = vpop.trf.xlu0
    %v3264 = vpop.trf.xlu0
    %v3265 = vpop.trf.xlu0
    %v3266 = vpop.trf.xlu0
    %v3267 = vpop.trf.xlu0
    %v3268 = vpop.trf.xlu0
    %v3269 = vpop.trf.xlu0
    %v3270 = vpop.trf.xlu0
    %vm3272 = vcmask 130048
    %v3274 = vsel %vm3272, %v3263, 0
    %3276 = vmatprep.subr.bf16.mxu0 0
    %3277 = vmatpush1.bf16.msra.mxu0 0
    %3278 = vmatprep.subr.bf16.mxu0 0
    %3279 = vmatpush1.bf16.msra.mxu0 0
    %3280 = vmatprep.subr.bf16.mxu0 0
    %3281 = vmatpush1.bf16.msra.mxu0 0
    %3282 = vmatprep.subr.bf16.mxu0 0
    %3283 = vmatpush1.bf16.msra.mxu0 0
    %3284 = vmatprep.subr.bf16.mxu0 0
    %3285 = vmatpush1.bf16.msra.mxu0 0
    %3286 = vmatprep.subr.bf16.mxu0 0
    %3287 = vmatpush1.bf16.msra.mxu0 0
    %3288 = vmatprep.subr.bf16.mxu0 0
    %3289 = vmatpush1.bf16.msra.mxu0 0
    %3290 = vmatprep.subr.bf16.mxu0 0
    %3291 = vmatpush1.bf16.msra.mxu0 %v3175
    %3292 = vmatprep.subr.bf16.mxu0 0
    %3293 = vmatpush2.bf16.msra.mxu0 0
    %3294 = vmatprep.subr.bf16.mxu0 0
    %3295 = vmatpush2.bf16.msra.mxu0 0
    %3296 = vmatprep.subr.bf16.mxu0 0
    %3297 = vmatpush2.bf16.msra.mxu0 0
    %3298 = vmatprep.subr.bf16.mxu0 0
    %3299 = vmatpush2.bf16.msra.mxu0 0
    %3300 = vmatprep.subr.bf16.mxu0 0
    %3301 = vmatpush2.bf16.msra.mxu0 0
    %3302 = vmatprep.subr.bf16.mxu0 0
    %3303 = vmatpush2.bf16.msra.mxu0 0
    %3304 = vmatprep.subr.bf16.mxu0 0
    %3305 = vmatpush2.bf16.msra.mxu0 0
    %3306 = vmatprep.subr.bf16.mxu0 0
    %3307 = vmatpush2.bf16.msra.mxu0 0
    %3308 = vmatprep.mubr.bf16.mxu0 0
    %3309 = vmatmul.mubr.bf16.gmra.mxu0 %v3274
    %v3310 = vpop.f32.mrf.mxu0
    %v3311 = vadd.f32 0.0, %v3310
    %v3312 = vpop.f32.mrf.mxu0
    %v3313 = vpop.f32.mrf.mxu0
    %v3314 = vpop.f32.mrf.mxu0
    %3315 = vdwg.mxu0
    %3316 = vst.msk [vmem:[%s13] sm:$0xff] %vm3226, %v3252
    %3317 = vst.msk [vmem:[%s13 + $0x8] sm:$0xff] %vm3226, %v3253
    %v3318 = vpack.c.bf16 %v2096, %v2082
    %v3319 = vpack.c.bf16 %v3170, %v3170
    %3321 = vrot.lane.b32.xlu0 %v3318, 96
    %v3322 = vpop.permute.xlu0 %3321
    %3324 = vrot.lane.b32.xlu0 %v3319, 96
    %v3325 = vpop.permute.xlu0 %3324
    %v3327 = vsel %vm163, %v3322, 0
    %v3330 = vsel %vm163, %v3325, 0
    %3332 = vmatprep.subr.bf16.mxu0 0
    %3333 = vmatpush1.bf16.xpose.msra.mxu0 0
    %3334 = vmatprep.subr.bf16.mxu0 0
    %3335 = vmatpush1.bf16.xpose.msra.mxu0 0
    %3336 = vmatprep.subr.bf16.mxu0 0
    %3337 = vmatpush1.bf16.xpose.msra.mxu0 0
    %3338 = vmatprep.subr.bf16.mxu0 0
    %3339 = vmatpush1.bf16.xpose.msra.mxu0 0
    %3340 = vmatprep.subr.bf16.mxu0 0
    %3341 = vmatpush1.bf16.xpose.msra.mxu0 0
    %3342 = vmatprep.subr.bf16.mxu0 0
    %3343 = vmatpush1.bf16.xpose.msra.mxu0 0
    %3344 = vmatprep.subr.bf16.mxu0 0
    %3345 = vmatpush1.bf16.xpose.msra.mxu0 0
    %3346 = vmatprep.subr.bf16.mxu0 0
    %3347 = vmatpush1.bf16.xpose.msra.mxu0 %v3330
    %3348 = vmatprep.subr.bf16.mxu0 0
    %3349 = vmatpush2.bf16.xpose.msra.mxu0 0
    %3350 = vmatprep.subr.bf16.mxu0 0
    %3351 = vmatpush2.bf16.xpose.msra.mxu0 0
    %3352 = vmatprep.subr.bf16.mxu0 0
    %3353 = vmatpush2.bf16.xpose.msra.mxu0 0
    %3354 = vmatprep.subr.bf16.mxu0 0
    %3355 = vmatpush2.bf16.xpose.msra.mxu0 0
    %3356 = vmatprep.subr.bf16.mxu0 0
    %3357 = vmatpush2.bf16.xpose.msra.mxu0 0
    %3358 = vmatprep.subr.bf16.mxu0 0
    %3359 = vmatpush2.bf16.xpose.msra.mxu0 0
    %3360 = vmatprep.subr.bf16.mxu0 0
    %3361 = vmatpush2.bf16.xpose.msra.mxu0 0
    %3362 = vmatprep.subr.bf16.mxu0 0
    %3363 = vmatpush2.bf16.xpose.msra.mxu0 0
    %3364 = vmatprep.mubr.bf16.mxu0 0
    %3365 = vmatmul.mubr.bf16.gmra.mxu0 %v3327
    %v3366 = vpop.f32.mrf.mxu0
    %v3367 = vadd.f32 0.0, %v3366
    %v3368 = vpop.f32.mrf.mxu0
    %v3369 = vpop.f32.mrf.mxu0
    %v3370 = vadd.f32 0.0, %v3369
    %v3371 = vpop.f32.mrf.mxu0
    %3372 = vdwg.mxu0
    %v3373 = vsel %vm3226, %v3367, -inf
    %v3374 = vsel %vm3226, %v3370, -inf
    %v3375 = vmax.f32 %v3373, %v3374
    %v3376 = vrot.slane %v3375, 4
    %v3377 = vmax.f32 %v3375, %v3376
    %v3378 = vrot.slane %v3377, 2
    %v3379 = vmax.f32 %v3377, %v3378
    %v3380 = vrot.slane %v3379, 1
    %v3381 = vmax.f32 %v3379, %v3380
    %v3382 = vsub.f32 %v3367, %v3381
    %v3383 = vsub.f32 %v3370, %v3381
    %v3384 = vmul.f32 %v3382, 1.442695
    %v3385 = vpow.pop %v3384
    %v3386 = vmul.f32 %v3383, 1.442695
    %v3387 = vpow.pop %v3386
    %v3388 = vsel %vm3226, %v3385, 0.0
    %v3389 = vsel %vm3226, %v3387, 0.0
    %v3390 = vadd.f32 %v3388, %v3389
    %v3391 = vrot.slane %v3390, 4
    %v3392 = vadd.f32 %v3390, %v3391
    %v3393 = vrot.slane %v3392, 2
    %v3394 = vadd.f32 %v3392, %v3393
    %v3395 = vrot.slane %v3394, 1
    %v3396 = vadd.f32 %v3394, %v3395
    %v3397 = vrcp.pop %v3396
    %v3398 = vmul.f32 %v3385, %v3397
    %v3399 = vmul.f32 %v3387, %v3397
    %v3400 = vpack.c.bf16 %v3399, %v3398
    %3401 = vxpose.xlu0.c.b16.start [1/8] %v3400, 128
    %3402 = vxpose.xlu0.c.b16.cont [2/8] 0, 128
    %3403 = vxpose.xlu0.c.b16.cont [3/8] 0, 128
    %3404 = vxpose.xlu0.c.b16.cont [4/8] 0, 128
    %3405 = vxpose.xlu0.c.b16.cont [5/8] 0, 128
    %3406 = vxpose.xlu0.c.b16.cont [6/8] 0, 128
    %3407 = vxpose.xlu0.c.b16.cont [7/8] 0, 128
    %3408 = vxpose.xlu0.c.b16.end [8/8] 0, 128
    %v3409 = vpop.trf.xlu0
    %v3410 = vpop.trf.xlu0
    %v3411 = vpop.trf.xlu0
    %v3412 = vpop.trf.xlu0
    %v3413 = vpop.trf.xlu0
    %v3414 = vpop.trf.xlu0
    %v3415 = vpop.trf.xlu0
    %v3416 = vpop.trf.xlu0
    %v3419 = vsel %vm3272, %v3409, 0
    %3421 = vmatprep.subr.bf16.mxu0 0
    %3422 = vmatpush1.bf16.msra.mxu0 0
    %3423 = vmatprep.subr.bf16.mxu0 0
    %3424 = vmatpush1.bf16.msra.mxu0 0
    %3425 = vmatprep.subr.bf16.mxu0 0
    %3426 = vmatpush1.bf16.msra.mxu0 0
    %3427 = vmatprep.subr.bf16.mxu0 0
    %3428 = vmatpush1.bf16.msra.mxu0 0
    %3429 = vmatprep.subr.bf16.mxu0 0
    %3430 = vmatpush1.bf16.msra.mxu0 0
    %3431 = vmatprep.subr.bf16.mxu0 0
    %3432 = vmatpush1.bf16.msra.mxu0 0
    %3433 = vmatprep.subr.bf16.mxu0 0
    %3434 = vmatpush1.bf16.msra.mxu0 0
    %3435 = vmatprep.subr.bf16.mxu0 0
    %3436 = vmatpush1.bf16.msra.mxu0 %v3322
    %3437 = vmatprep.subr.bf16.mxu0 0
    %3438 = vmatpush2.bf16.msra.mxu0 0
    %3439 = vmatprep.subr.bf16.mxu0 0
    %3440 = vmatpush2.bf16.msra.mxu0 0
    %3441 = vmatprep.subr.bf16.mxu0 0
    %3442 = vmatpush2.bf16.msra.mxu0 0
    %3443 = vmatprep.subr.bf16.mxu0 0
    %3444 = vmatpush2.bf16.msra.mxu0 0
    %3445 = vmatprep.subr.bf16.mxu0 0
    %3446 = vmatpush2.bf16.msra.mxu0 0
    %3447 = vmatprep.subr.bf16.mxu0 0
    %3448 = vmatpush2.bf16.msra.mxu0 0
    %3449 = vmatprep.subr.bf16.mxu0 0
    %3450 = vmatpush2.bf16.msra.mxu0 0
    %3451 = vmatprep.subr.bf16.mxu0 0
    %3452 = vmatpush2.bf16.msra.mxu0 0
    %3453 = vmatprep.mubr.bf16.mxu0 0
    %3454 = vmatmul.mubr.bf16.gmra.mxu0 %v3419
    %v3455 = vpop.f32.mrf.mxu0
    %v3456 = vadd.f32 0.0, %v3455
    %v3457 = vpop.f32.mrf.mxu0
    %v3458 = vpop.f32.mrf.mxu0
    %v3459 = vpop.f32.mrf.mxu0
    %3460 = vdwg.mxu0
    %s3461 = scalar_lea.vmem %s13, 16
    %3462 = vst.msk [vmem:[%s3461] sm:$0xff] %vm3226, %v3398
    %3463 = vst.msk [vmem:[%s3461 + $0x8] sm:$0xff] %vm3226, %v3399
    %v3464 = vpack.c.bf16 %v3170, %v3169
    %v3465 = vpack.c.bf16 %v3456, %v3311
    %v3466 = vld [vmem:[%s10] sm:$0xf]
    %v3467 = vld [vmem:[%s10 + $0x4] sm:$0xf]
    %v3468 = vld [vmem:[%s10 + $0x8] sm:$0xf]
    %v3469 = vld [vmem:[%s10 + $0xc] sm:$0xf]
    %s3470 = scalar_lea.vmem %s10, 16
    %v3471 = vld [vmem:[%s3470] sm:$0xf]
    %v3472 = vld [vmem:[%s3470 + $0x4] sm:$0xf]
    %v3473 = vld [vmem:[%s3470 + $0x8] sm:$0xf]
    %v3474 = vld [vmem:[%s3470 + $0xc] sm:$0xf]
    %v3479 = vunpack.c.l.b16 %v3471
    %v3480 = vunpack.c.l.b16 %v3472
    %v3481 = vunpack.c.l.b16 %v3473
    %v3482 = vunpack.c.l.b16 %v3474
    %v3483 = vpack.c.b16 %v3480, %v3479
    %v3484 = vpack.c.b16 %v3482, %v3481
    %v3488 = vsel %vm163, %v3465, 0
    %3490 = vmatprep.subr.bf16.mxu0 0
    %3491 = vmatpush1.bf16.msra.mxu0 0
    %3492 = vmatprep.subr.bf16.mxu0 0
    %3493 = vmatpush1.bf16.msra.mxu0 0
    %3494 = vmatprep.subr.bf16.mxu0 0
    %3495 = vmatpush1.bf16.msra.mxu0 0
    %3496 = vmatprep.subr.bf16.mxu0 0
    %3497 = vmatpush1.bf16.msra.mxu0 0
    %3498 = vmatprep.subr.bf16.mxu0 0
    %3499 = vmatpush1.bf16.msra.mxu0 0
    %3500 = vmatprep.subr.bf16.mxu0 0
    %3501 = vmatpush1.bf16.msra.mxu0 0
    %3502 = vmatprep.subr.bf16.mxu0 0
    %3503 = vmatpush1.bf16.msra.mxu0 %v3484
    %3504 = vmatprep.subr.bf16.mxu0 0
    %3505 = vmatpush1.bf16.msra.mxu0 %v3483
    %3506 = vmatprep.subr.bf16.mxu0 0
    %3507 = vmatpush2.bf16.msra.mxu0 0
    %3508 = vmatprep.subr.bf16.mxu0 0
    %3509 = vmatpush2.bf16.msra.mxu0 0
    %3510 = vmatprep.subr.bf16.mxu0 0
    %3511 = vmatpush2.bf16.msra.mxu0 0
    %3512 = vmatprep.subr.bf16.mxu0 0
    %3513 = vmatpush2.bf16.msra.mxu0 0
    %3514 = vmatprep.subr.bf16.mxu0 0
    %3515 = vmatpush2.bf16.msra.mxu0 0
    %3516 = vmatprep.subr.bf16.mxu0 0
    %3517 = vmatpush2.bf16.msra.mxu0 0
    %3518 = vmatprep.subr.bf16.mxu0 0
    %3519 = vmatpush2.bf16.msra.mxu0 0
    %3520 = vmatprep.subr.bf16.mxu0 0
    %3521 = vmatpush2.bf16.msra.mxu0 0
    %3522 = vmatprep.mubr.bf16.mxu0 0
    %3523 = vmatmul.mubr.bf16.gmra.mxu0 %v3488
    %v3524 = vpop.f32.mrf.mxu0
    %v3525 = vadd.f32 0.0, %v3524
    %v3526 = vpop.f32.mrf.mxu0
    %v3527 = vpop.f32.mrf.mxu0
    %v3528 = vadd.f32 0.0, %v3527
    %v3529 = vpop.f32.mrf.mxu0
    %3530 = vdwg.mxu0
    %3532 = vrot.lane.b32.xlu0 %v3464, 96
    %v3533 = vpop.permute.xlu0 %3532
    %v3538 = vunpack.c.l.b16 %v3466
    %v3539 = vunpack.c.l.b16 %v3467
    %v3540 = vunpack.c.l.b16 %v3468
    %v3541 = vunpack.c.l.b16 %v3469
    %v3542 = vpack.c.b16 %v3539, %v3538
    %v3543 = vpack.c.b16 %v3541, %v3540
    %v3547 = vsel %vm163, %v3533, 0
    %3549 = vmatprep.subr.bf16.mxu0 0
    %3550 = vmatpush1.bf16.msra.mxu0 0
    %3551 = vmatprep.subr.bf16.mxu0 0
    %3552 = vmatpush1.bf16.msra.mxu0 0
    %3553 = vmatprep.subr.bf16.mxu0 0
    %3554 = vmatpush1.bf16.msra.mxu0 0
    %3555 = vmatprep.subr.bf16.mxu0 0
    %3556 = vmatpush1.bf16.msra.mxu0 0
    %3557 = vmatprep.subr.bf16.mxu0 0
    %3558 = vmatpush1.bf16.msra.mxu0 0
    %3559 = vmatprep.subr.bf16.mxu0 0
    %3560 = vmatpush1.bf16.msra.mxu0 0
    %3561 = vmatprep.subr.bf16.mxu0 0
    %3562 = vmatpush1.bf16.msra.mxu0 %v3543
    %3563 = vmatprep.subr.bf16.mxu0 0
    %3564 = vmatpush1.bf16.msra.mxu0 %v3542
    %3565 = vmatprep.subr.bf16.mxu0 0
    %3566 = vmatpush2.bf16.msra.mxu0 0
    %3567 = vmatprep.subr.bf16.mxu0 0
    %3568 = vmatpush2.bf16.msra.mxu0 0
    %3569 = vmatprep.subr.bf16.mxu0 0
    %3570 = vmatpush2.bf16.msra.mxu0 0
    %3571 = vmatprep.subr.bf16.mxu0 0
    %3572 = vmatpush2.bf16.msra.mxu0 0
    %3573 = vmatprep.subr.bf16.mxu0 0
    %3574 = vmatpush2.bf16.msra.mxu0 0
    %3575 = vmatprep.subr.bf16.mxu0 0
    %3576 = vmatpush2.bf16.msra.mxu0 0
    %3577 = vmatprep.subr.bf16.mxu0 0
    %3578 = vmatpush2.bf16.msra.mxu0 0
    %3579 = vmatprep.subr.bf16.mxu0 0
    %3580 = vmatpush2.bf16.msra.mxu0 0
    %3581 = vmatprep.mubr.bf16.mxu0 0
    %3582 = vmatmul.mubr.bf16.gmra.mxu0 %v3547
    %v3583 = vpop.f32.mrf.mxu0
    %v3584 = vadd.f32 %v3525, %v3583
    %v3585 = vpop.f32.mrf.mxu0
    %v3586 = vpop.f32.mrf.mxu0
    %v3587 = vadd.f32 %v3528, %v3586
    %v3588 = vpop.f32.mrf.mxu0
    %3589 = vdwg.mxu0
    %v3590 = vld [vmem:[%s11] sm:$0x1]
    %v3592 = vlaneseq
    %v3593 = vshrl.u32 %v3592, 7
    %v3594 = vsub.s32 0, %v3593
    %v3595 = vrot.slane %v3590, %v3594
    %v3597 = vadd.f32 %v3584, %v3595
    %v3598 = vadd.f32 %v3587, %v3595
    %vm3599 = vcmask 293888
    %3600 = vst.msk [vmem:[#allocation2] sm:$0xff] %vm3599, %v3597
    %3601 = vst.msk [vmem:[#allocation2 + $0x8] sm:$0xff] %vm3599, %v3598
    // Predicated region
    $region50: #{attention_seq2seq_forward.1} parent=1 // pred_check
      _
    $region51: #{attention_seq2seq_forward.1} parent=1 // pred_check_branch
      %3603 = sbr.rel (0) target = $region53
    $region52: #{attention_seq2seq_forward.1} parent=1 // pred_region
      %s3605 = ssub.s32 256, 256
      %3606 = vsyncadd [#allocation3], %s3605
      %s3607 = sshll.u32 [#allocation2], 4
      %s3608 = int_to_ptr.vmem [resolvable:$true] %s3607
      %3613 = dma.vmem_to_hbm [thread:$0]  %s3608, 256, %s12, [#allocation3], 128, 128, 8
    $region53: #{attention_seq2seq_forward.1} parent=1 // pred_fallthru
      _
    // Predicated region
    $region54: #{attention_seq2seq_forward.1} parent=1 // pred_check
      _
    $region55: #{attention_seq2seq_forward.1} parent=1 // pred_check_branch
      %3615 = sbr.rel (0) target = $region57
    $region56: #{attention_seq2seq_forward.1} parent=1 // pred_region
      _
    $region57: #{attention_seq2seq_forward.1} parent=1 // pred_fallthru
      _
    // Predicated region
    $region58: #{attention_seq2seq_forward.1} parent=1 // pred_check
      _
    $region59: #{attention_seq2seq_forward.1} parent=1 // pred_check_branch
      %3617 = sbr.rel (0) target = $region61
    $region60: #{attention_seq2seq_forward.1} parent=1 // pred_region
      %3618 = dma.done [#allocation3], 256
    $region61: #{attention_seq2seq_forward.1} parent=1 // pred_fallthru
      _
    // Predicated region
    $region62: #{attention_seq2seq_forward.1} parent=1 // pred_check
      _
    $region63: #{attention_seq2seq_forward.1} parent=1 // pred_check_branch
      %3620 = sbr.rel (0) target = $region65
    $region64: #{attention_seq2seq_forward.1} parent=1 // pred_region
      _
    $region65: #{attention_seq2seq_forward.1} parent=1 // pred_fallthru
      _
    %3621 = vsyncpa [#allocation3], 1

</llo_original>
